<compile_context>
chip_gen: v7x
topology: tpu7x:2x2x1
jax: 0.10.0
libtpu: 0.0.40
codegen_flags: <defaults>
</compile_context>

<pallas_src>
import functools

import jax
import jax.numpy as jnp
from jax.experimental import pallas as pl
from jax.experimental.pallas import tpu as pltpu

BN_EPS = 1e-5  # PyTorch BatchNorm2d default


def _round_up(x, m):
    return ((x + m - 1) // m) * m


# ----------------------------------------------------------------------------
# Fused kernel: conv1(3x3,s2) -> [BN2+ReLU on both halves] -> conv2(3x3,s1)
# One grid step = one batch element; the activated conv1 map lives only in VMEM.
# ----------------------------------------------------------------------------
def _conv2x_kernel(p1_ref, rp_ref, w1_ref, sc2y_ref, sh2y_ref, w2y_ref, w2r_ref,
                   o_ref, y_ref, *, OW, OWp, M, TM, nblk, S0):
    # p1_ref : (1, 4, R1, Cin)  bf16  shifted phase-split of padded relu(bn1(x))
    # rp_ref : (1, R2, Cout)    bf16  zero-padded relu(bn2_r(rem)), OWp row groups
    # w1_ref : (9, Cin, Cout)   bf16  conv1 weight, tap-major
    # sc2y/sh2y : (1, Cout)     f32   folded BN2 scale/shift for the conv1 half
    # w2y/w2r: (9, Cout, Cout)  bf16  conv2 weight split along its input channels
    # o_ref  : (1, Mo, Cout)    bf16  conv2 output, OWp row groups (2 scrap cols)
    # y_ref  : VMEM (Ry, Cout)  bf16  zero-padded relu(bn2_y(conv1(x))) scratch
    Cout = o_ref.shape[-1]
    Ry = y_ref.shape[0]
    TOP = S0 + OWp            # scratch rows [0, TOP): alignment scrap + top pad row
    BOT = TOP + nblk * TM     # scratch rows [BOT, Ry): bottom pad rows + scrap

    # Zero only the small pad borders; the interior slab is fully rewritten every
    # grid step below, so no program_id gating is needed (megacore-safe).
    y_ref[0:TOP, :] = jnp.zeros((TOP, Cout), y_ref.dtype)
    y_ref[BOT:, :] = jnp.zeros((Ry - BOT, Cout), y_ref.dtype)

    sc2y = sc2y_ref[...]
    sh2y = sh2y_ref[...]

    # ---- stage 1: conv1 (3x3, s2) + BN2(y half) + ReLU -> padded Y scratch -----
    def conv1_block(b, carry):
        start = b * TM
        acc = jnp.zeros((TM, Cout), jnp.float32)
        for dy in range(3):
            for dx in range(3):
                phase = (dy % 2) * 2 + (dx % 2)
                off = (dy // 2) * OWp + (dx // 2)
                tap = p1_ref[0, phase, pl.ds(start + off, TM), :]    # (TM, Cin)
                acc = acc + jnp.dot(tap, w1_ref[dy * 3 + dx],
                                    preferred_element_type=jnp.float32)
        a = jnp.maximum(acc * sc2y + sh2y, 0.0)
        # Zero conv2's spatial-pad columns / overrun rows in-value so the scratch
        # write below is one unconditional, aligned slab store.
        rows = start + jax.lax.broadcasted_iota(jnp.int32, (TM, 1), 0)
        col = rows % OWp
        valid = (col >= 1) & (col <= OW) & (rows < M)
        a = jnp.where(valid, a, 0.0).astype(y_ref.dtype)
        y_ref[pl.ds(TOP + start, TM), :] = a
        return carry

    jax.lax.fori_loop(0, nblk, conv1_block, 0, unroll=nblk <= 8)

    # ---- stage 2: conv2 (3x3, s1) = Y-half + REM-half partial products ---------
    def conv2_block(b, carry):
        start = b * TM
        acc = jnp.zeros((TM, Cout), jnp.float32)
        for dy in range(3):
            for dx in range(3):
                t = dy * 3 + dx
                off = dy * OWp + dx
                y_tap = y_ref[pl.ds(S0 + start + off, TM), :]        # (TM, Cout)
                r_tap = rp_ref[0, pl.ds(start + off, TM), :]         # (TM, Cout)
                acc = acc + jnp.dot(y_tap, w2y_ref[t],
                                    preferred_element_type=jnp.float32)
                acc = acc + jnp.dot(r_tap, w2r_ref[t],
                                    preferred_element_type=jnp.float32)
        o_ref[0, pl.ds(start, TM), :] = acc.astype(o_ref.dtype)
        return carry

    jax.lax.fori_loop(0, nblk, conv2_block, 0, unroll=nblk <= 8)


# ----------------------------------------------------------------------------
# Conv2x forward (deconv=False, is_3d=False, concat=True, bn=True, relu=True,
#                 is_conv2=True)
# ----------------------------------------------------------------------------
def conv2x_forward(x_nchw, rem_nchw, params):
    N, Cin, H, W = x_nchw.shape
    Cout = params["w1"].shape[0]

    OH = (H - 1) // 2 + 1               # 3x3, stride 2, pad 1
    OW = (W - 1) // 2 + 1
    OWp = OW + 2                        # conv2 padded-map row width
    M = OH * OWp                        # flattened rows (2 scrap cols per group)
    TM = min(512, _round_up(M, 16))     # accumulator row block (bounds live range)
    nblk = -(-M // TM)
    Mo = nblk * TM
    S0 = (-OWp) % 16                    # scratch offset so the slab store is aligned
    R1 = _round_up(Mo + OWp + 2, 8)
    R2 = _round_up(Mo + 2 * OWp + 2, 8)
    Ry = _round_up(S0 + Mo + 2 * OWp + 2, 16)

    # BN1 (inference) + ReLU on the raw input; bf16 cast *before* the pad /
    # space-to-depth chain.  Zero-padding the activated map afterwards matches
    # PyTorch exactly, so no pad mask is needed anywhere.
    g1, b1, m1, v1 = params["bn1"]
    sc1 = g1 / jnp.sqrt(v1 + BN_EPS)
    sh1 = b1 - m1 * sc1
    x = jnp.transpose(x_nchw, (0, 2, 3, 1)).astype(jnp.float32)     # NCHW -> NHWC
    a1 = jnp.maximum(x * sc1 + sh1, 0.0).astype(jnp.bfloat16)

    # Pad: 1 conv pad + 2 extra left columns so the 2x2 space-to-depth phases
    # come out with row width OWp and a built-in +1 column shift -- conv1's
    # output rows then land directly in conv2's padded-map layout.
    a1p = jnp.pad(a1, ((0, 0), (1, 1 + H % 2), (3, 1 + W % 2), (0, 0)))
    PH = a1p.shape[1] // 2
    assert a1p.shape[2] == 2 * OWp
    p1 = a1p.reshape(N, PH, 2, OWp, 2, Cin).transpose(0, 2, 4, 1, 3, 5)
    p1 = p1.reshape(N, 4, PH * OWp, Cin)
    p1 = jnp.pad(p1, ((0, 0), (0, 0), (0, R1 - PH * OWp), (0, 0)))

    # BN2 acts on concat(conv1_out, rem); split its affine per half.
    g2, b2, m2, v2 = params["bn2"]
    sc2 = g2 / jnp.sqrt(v2 + BN_EPS)
    sh2 = b2 - m2 * sc2
    sc2y = sc2[:Cout].reshape(1, Cout).astype(jnp.float32)
    sh2y = sh2[:Cout].reshape(1, Cout).astype(jnp.float32)

    # REM half: BN2 + ReLU + conv2 zero-pad in the wrapper, streamed as bf16;
    # the kernel then needs no scratch / stores at all for this half.
    rem = jnp.transpose(rem_nchw, (0, 2, 3, 1)).astype(jnp.float32)
    assert rem.shape == (N, OH, OW, Cout)  # mirrors `assert x.size() == rem.size()`
    a_r = jnp.maximum(rem * sc2[Cout:] + sh2[Cout:], 0.0).astype(jnp.bfloat16)
    a_rp = jnp.pad(a_r, ((0, 0), (1, 1), (1, 1), (0, 0)))           # (N, OH+2, OWp, Cout)
    rpad = a_rp.reshape(N, (OH + 2) * OWp, Cout)
    rpad = jnp.pad(rpad, ((0, 0), (0, R2 - (OH + 2) * OWp), (0, 0)))

    # Conv weights, tap-major; w2 split along its input channels (the concat dim:
    # concat along contraction == sum of two partial products).
    w1 = jnp.transpose(params["w1"], (2, 3, 1, 0)).reshape(9, Cin, Cout)
    w1 = w1.astype(jnp.bfloat16)
    w2 = jnp.transpose(params["w2"], (2, 3, 1, 0)).reshape(9, 2 * Cout, Cout)
    w2y = w2[:, :Cout, :].astype(jnp.bfloat16)
    w2r = w2[:, Cout:, :].astype(jnp.bfloat16)

    kernel = functools.partial(_conv2x_kernel, OW=OW, OWp=OWp, M=M, TM=TM,
                               nblk=nblk, S0=S0)

    out = pl.pallas_call(
        kernel,
        out_shape=jax.ShapeDtypeStruct((N, Mo, Cout), jnp.bfloat16),
        grid_spec=pltpu.PrefetchScalarGridSpec(
            num_scalar_prefetch=0,
            grid=(N,),
            in_specs=[
                pl.BlockSpec((1, 4, R1, Cin), lambda n: (n, 0, 0, 0)),
                pl.BlockSpec((1, R2, Cout), lambda n: (n, 0, 0)),
                pl.BlockSpec((9, Cin, Cout), lambda n: (0, 0, 0)),
                pl.BlockSpec((1, Cout), lambda n: (0, 0)),
                pl.BlockSpec((1, Cout), lambda n: (0, 0)),
                pl.BlockSpec((9, Cout, Cout), lambda n: (0, 0, 0)),
                pl.BlockSpec((9, Cout, Cout), lambda n: (0, 0, 0)),
            ],
            out_specs=pl.BlockSpec((1, Mo, Cout), lambda n: (n, 0, 0)),
            scratch_shapes=[pltpu.VMEM((Ry, Cout), jnp.bfloat16)],
        ),
        compiler_params=pltpu.CompilerParams(
            dimension_semantics=("parallel",),
            vmem_limit_bytes=64 * 1024 * 1024),
    )(p1, rpad, w1, sc2y, sh2y, w2y, w2r)

    # Drop scrap rows/columns, back to NCHW f32.
    out = out[:, :M, :].reshape(N, OH, OWp, Cout)[:, :, :OW, :]
    return jnp.transpose(out, (0, 3, 1, 2)).astype(jnp.float32)


# ----------------------------------------------------------------------------
# Deterministic parameter initialization
# ----------------------------------------------------------------------------
def init_params(key, in_channels, out_channels):
    kw1, kw2 = jax.random.split(key, 2)

    def bn_params(c):
        gamma = 1.0 + 0.1 * jnp.arange(c, dtype=jnp.float32)
        beta = 0.05 * jnp.arange(c, dtype=jnp.float32)
        mean = 0.01 * jnp.arange(c, dtype=jnp.float32)
        var = 1.0 + 0.02 * jnp.arange(c, dtype=jnp.float32)
        return (gamma, beta, mean, var)

    w1 = 0.1 * jax.random.normal(kw1, (out_channels, in_channels, 3, 3), jnp.float32)
    w2 = 0.1 * jax.random.normal(kw2, (out_channels, 2 * out_channels, 3, 3), jnp.float32)
    return {
        "bn1": bn_params(in_channels),
        "w1": w1,
        "bn2": bn_params(2 * out_channels),
        "w2": w2,
    }


# ----------------------------------------------------------------------------
# Pure-JAX reference (mirrors the PyTorch module, inference-mode BN).
# Conv inputs/weights are cast to bf16 with f32 accumulation -- the same matmul
# precision the kernel uses -- so the comparison stays tight.
# ----------------------------------------------------------------------------
def conv2x_reference(x, rem, params):
    def bn_relu(t, bn):
        g, b, m, v = bn
        y = (t - m[None, :, None, None]) / jnp.sqrt(v[None, :, None, None] + BN_EPS)
        y = y * g[None, :, None, None] + b[None, :, None, None]
        return jnp.maximum(y, 0.0)

    def conv(t, w, s):
        return jax.lax.conv_general_dilated(
            t.astype(jnp.bfloat16), w.astype(jnp.bfloat16), (s, s), ((1, 1), (1, 1)),
            dimension_numbers=("NCHW", "OIHW", "NCHW"),
            preferred_element_type=jnp.float32)

    y = conv(bn_relu(x, params["bn1"]), params["w1"], 2)
    y = jnp.concatenate([y, rem], axis=1)
    y = conv(bn_relu(y, params["bn2"]), params["w2"], 1)
    return y


if __name__ == "__main__":
    N, Cin, H, W, Cout = 2, 4, 16, 16, 8

    key = jax.random.PRNGKey(0)
    kx, kr, kp = jax.random.split(key, 3)
    x = jax.random.normal(kx, (N, Cin, H, W), dtype=jnp.float32)
    rem = jax.random.normal(kr, (N, Cout, H // 2, W // 2), dtype=jnp.float32)
    params = init_params(kp, Cin, Cout)

    out = jax.jit(conv2x_forward)(x, rem, params)
    out = jax.block_until_ready(out)

    ref = conv2x_reference(x, rem, params)
    assert out.shape == (N, Cout, H // 2, W // 2)
    # Kernel emits bf16 (halved writeback, per perf review); tolerance covers the
    # final bf16 rounding on top of the shared bf16-matmul precision.
    assert jnp.allclose(out, ref, rtol=2e-2, atol=2e-2), "mismatch vs reference"

    print("KERNEL_OK")
</pallas_src>

<mosaic_0001>
module attributes {stable_mosaic.version = 11 : i64} {
  func.func @_conv2x_kernel(%arg0: i32, %arg1: memref<1x4x96x4xbf16, #tpu.memory_space<vmem>>, %arg2: memref<1x104x8xbf16, #tpu.memory_space<vmem>>, %arg3: memref<9x4x8xbf16, #tpu.memory_space<vmem>>, %arg4: memref<1x8xf32, #tpu.memory_space<vmem>>, %arg5: memref<1x8xf32, #tpu.memory_space<vmem>>, %arg6: memref<9x8x8xbf16, #tpu.memory_space<vmem>>, %arg7: memref<9x8x8xbf16, #tpu.memory_space<vmem>>, %arg8: memref<1x80x8xbf16, #tpu.memory_space<vmem>>, %arg9: memref<112x8xbf16, #tpu.memory_space<vmem>>) attributes {dimension_semantics = [#tpu.dimension_semantics<parallel>], iteration_bounds = array<i64: 2>, scalar_prefetch = 0 : i64, scratch_operands = 1 : i64, tpu.core_type = #tpu.core_type<tc>, window_params = [{transform_indices = @transform_0, window_bounds = array<i64: 1, 4, 96, 4>}, {transform_indices = @transform_1, window_bounds = array<i64: 1, 104, 8>}, {pipeline_mode = #tpu.pipeline_mode<synchronous>, transform_indices = @transform_2, window_bounds = array<i64: 9, 4, 8>}, {pipeline_mode = #tpu.pipeline_mode<synchronous>, transform_indices = @transform_3, window_bounds = array<i64: 1, 8>}, {pipeline_mode = #tpu.pipeline_mode<synchronous>, transform_indices = @transform_4, window_bounds = array<i64: 1, 8>}, {pipeline_mode = #tpu.pipeline_mode<synchronous>, transform_indices = @transform_5, window_bounds = array<i64: 9, 8, 8>}, {pipeline_mode = #tpu.pipeline_mode<synchronous>, transform_indices = @transform_6, window_bounds = array<i64: 9, 8, 8>}, {transform_indices = @transform_7, window_bounds = array<i64: 1, 80, 8>}]} {
    %cst = arith.constant 0.000000e+00 : bf16
    %0 = vector.broadcast %cst : bf16 to vector<16x8xbf16>
    %c0 = arith.constant 0 : index
    %c0_0 = arith.constant 0 : index
    %1 = vector.load %arg9[%c0, %c0_0] : memref<112x8xbf16, #tpu.memory_space<vmem>>, vector<16x8xbf16>
    tpu.vector_store %arg9[%c0, %c0_0], %0 {strides = array<i32>} : memref<112x8xbf16, #tpu.memory_space<vmem>>, vector<16x8xbf16>,
    %cst_1 = arith.constant 0.000000e+00 : bf16
    %2 = vector.broadcast %cst_1 : bf16 to vector<16x8xbf16>
    %c96 = arith.constant 96 : index
    %c0_2 = arith.constant 0 : index
    %3 = vector.load %arg9[%c96, %c0_2] : memref<112x8xbf16, #tpu.memory_space<vmem>>, vector<16x8xbf16>
    tpu.vector_store %arg9[%c96, %c0_2], %2 {strides = array<i32>} : memref<112x8xbf16, #tpu.memory_space<vmem>>, vector<16x8xbf16>,
    %c0_3 = arith.constant 0 : index
    %c0_4 = arith.constant 0 : index
    %4 = vector.load %arg4[%c0_3, %c0_4] : memref<1x8xf32, #tpu.memory_space<vmem>>, vector<1x8xf32>
    %c0_5 = arith.constant 0 : index
    %c0_6 = arith.constant 0 : index
    %5 = vector.load %arg5[%c0_5, %c0_6] : memref<1x8xf32, #tpu.memory_space<vmem>>, vector<1x8xf32>
    %c0_i32 = arith.constant 0 : i32
    %c80_i32 = arith.constant 80 : i32
    %6 = arith.muli %c0_i32, %c80_i32 : i32
    %cst_7 = arith.constant 0.000000e+00 : f32
    %7 = vector.broadcast %cst_7 : f32 to vector<80x8xf32>
    %c0_i32_8 = arith.constant 0 : i32
    %8 = arith.addi %6, %c0_i32_8 : i32
    %c0_9 = arith.constant 0 : index
    %c0_10 = arith.constant 0 : index
    %9 = arith.index_cast %8 : i32 to index
    %c0_11 = arith.constant 0 : index
    %10 = vector.load %arg1[%c0_9, %c0_10, %9, %c0_11] : memref<1x4x96x4xbf16, #tpu.memory_space<vmem>>, vector<1x1x80x4xbf16>
    %11 = vector.shape_cast %10 : vector<1x1x80x4xbf16> to vector<80x4xbf16>
    %c0_12 = arith.constant 0 : index
    %c0_13 = arith.constant 0 : index
    %c0_14 = arith.constant 0 : index
    %12 = vector.load %arg3[%c0_12, %c0_13, %c0_14] : memref<9x4x8xbf16, #tpu.memory_space<vmem>>, vector<1x4x8xbf16>
    %13 = vector.shape_cast %12 : vector<1x4x8xbf16> to vector<4x8xbf16>
    %cst_15 = arith.constant dense<0.000000e+00> : vector<80x8xf32>
    %14 = tpu.matmul %11, %13, %cst_15 {dimension_numbers = #tpu.dot_dimension_numbers<[1], [0], [0], [1], [0, 0, 1, 1], [], []>} : vector<80x4xbf16>, vector<4x8xbf16>, vector<80x8xf32> -> vector<80x8xf32>
    %15 = arith.addf %7, %14 : vector<80x8xf32>
    %c0_i32_16 = arith.constant 0 : i32
    %16 = arith.addi %6, %c0_i32_16 : i32
    %c0_17 = arith.constant 0 : index
    %c1 = arith.constant 1 : index
    %17 = arith.index_cast %16 : i32 to index
    %c0_18 = arith.constant 0 : index
    %18 = vector.load %arg1[%c0_17, %c1, %17, %c0_18] : memref<1x4x96x4xbf16, #tpu.memory_space<vmem>>, vector<1x1x80x4xbf16>
    %19 = vector.shape_cast %18 : vector<1x1x80x4xbf16> to vector<80x4xbf16>
    %c1_19 = arith.constant 1 : index
    %c0_20 = arith.constant 0 : index
    %c0_21 = arith.constant 0 : index
    %20 = vector.load %arg3[%c1_19, %c0_20, %c0_21] : memref<9x4x8xbf16, #tpu.memory_space<vmem>>, vector<1x4x8xbf16>
    %21 = vector.shape_cast %20 : vector<1x4x8xbf16> to vector<4x8xbf16>
    %cst_22 = arith.constant dense<0.000000e+00> : vector<80x8xf32>
    %22 = tpu.matmul %19, %21, %cst_22 {dimension_numbers = #tpu.dot_dimension_numbers<[1], [0], [0], [1], [0, 0, 1, 1], [], []>} : vector<80x4xbf16>, vector<4x8xbf16>, vector<80x8xf32> -> vector<80x8xf32>
    %23 = arith.addf %15, %22 : vector<80x8xf32>
    %c1_i32 = arith.constant 1 : i32
    %24 = arith.addi %6, %c1_i32 : i32
    %c0_23 = arith.constant 0 : index
    %c0_24 = arith.constant 0 : index
    %25 = arith.index_cast %24 : i32 to index
    %c0_25 = arith.constant 0 : index
    %26 = vector.load %arg1[%c0_23, %c0_24, %25, %c0_25] : memref<1x4x96x4xbf16, #tpu.memory_space<vmem>>, vector<1x1x80x4xbf16>
    %27 = vector.shape_cast %26 : vector<1x1x80x4xbf16> to vector<80x4xbf16>
    %c2 = arith.constant 2 : index
    %c0_26 = arith.constant 0 : index
    %c0_27 = arith.constant 0 : index
    %28 = vector.load %arg3[%c2, %c0_26, %c0_27] : memref<9x4x8xbf16, #tpu.memory_space<vmem>>, vector<1x4x8xbf16>
    %29 = vector.shape_cast %28 : vector<1x4x8xbf16> to vector<4x8xbf16>
    %cst_28 = arith.constant dense<0.000000e+00> : vector<80x8xf32>
    %30 = tpu.matmul %27, %29, %cst_28 {dimension_numbers = #tpu.dot_dimension_numbers<[1], [0], [0], [1], [0, 0, 1, 1], [], []>} : vector<80x4xbf16>, vector<4x8xbf16>, vector<80x8xf32> -> vector<80x8xf32>
    %31 = arith.addf %23, %30 : vector<80x8xf32>
    %c0_i32_29 = arith.constant 0 : i32
    %32 = arith.addi %6, %c0_i32_29 : i32
    %c0_30 = arith.constant 0 : index
    %c2_31 = arith.constant 2 : index
    %33 = arith.index_cast %32 : i32 to index
    %c0_32 = arith.constant 0 : index
    %34 = vector.load %arg1[%c0_30, %c2_31, %33, %c0_32] : memref<1x4x96x4xbf16, #tpu.memory_space<vmem>>, vector<1x1x80x4xbf16>
    %35 = vector.shape_cast %34 : vector<1x1x80x4xbf16> to vector<80x4xbf16>
    %c3 = arith.constant 3 : index
    %c0_33 = arith.constant 0 : index
    %c0_34 = arith.constant 0 : index
    %36 = vector.load %arg3[%c3, %c0_33, %c0_34] : memref<9x4x8xbf16, #tpu.memory_space<vmem>>, vector<1x4x8xbf16>
    %37 = vector.shape_cast %36 : vector<1x4x8xbf16> to vector<4x8xbf16>
    %cst_35 = arith.constant dense<0.000000e+00> : vector<80x8xf32>
    %38 = tpu.matmul %35, %37, %cst_35 {dimension_numbers = #tpu.dot_dimension_numbers<[1], [0], [0], [1], [0, 0, 1, 1], [], []>} : vector<80x4xbf16>, vector<4x8xbf16>, vector<80x8xf32> -> vector<80x8xf32>
    %39 = arith.addf %31, %38 : vector<80x8xf32>
    %c0_i32_36 = arith.constant 0 : i32
    %40 = arith.addi %6, %c0_i32_36 : i32
    %c0_37 = arith.constant 0 : index
    %c3_38 = arith.constant 3 : index
    %41 = arith.index_cast %40 : i32 to index
    %c0_39 = arith.constant 0 : index
    %42 = vector.load %arg1[%c0_37, %c3_38, %41, %c0_39] : memref<1x4x96x4xbf16, #tpu.memory_space<vmem>>, vector<1x1x80x4xbf16>
    %43 = vector.shape_cast %42 : vector<1x1x80x4xbf16> to vector<80x4xbf16>
    %c4 = arith.constant 4 : index
    %c0_40 = arith.constant 0 : index
    %c0_41 = arith.constant 0 : index
    %44 = vector.load %arg3[%c4, %c0_40, %c0_41] : memref<9x4x8xbf16, #tpu.memory_space<vmem>>, vector<1x4x8xbf16>
    %45 = vector.shape_cast %44 : vector<1x4x8xbf16> to vector<4x8xbf16>
    %cst_42 = arith.constant dense<0.000000e+00> : vector<80x8xf32>
    %46 = tpu.matmul %43, %45, %cst_42 {dimension_numbers = #tpu.dot_dimension_numbers<[1], [0], [0], [1], [0, 0, 1, 1], [], []>} : vector<80x4xbf16>, vector<4x8xbf16>, vector<80x8xf32> -> vector<80x8xf32>
    %47 = arith.addf %39, %46 : vector<80x8xf32>
    %c1_i32_43 = arith.constant 1 : i32
    %48 = arith.addi %6, %c1_i32_43 : i32
    %c0_44 = arith.constant 0 : index
    %c2_45 = arith.constant 2 : index
    %49 = arith.index_cast %48 : i32 to index
    %c0_46 = arith.constant 0 : index
    %50 = vector.load %arg1[%c0_44, %c2_45, %49, %c0_46] : memref<1x4x96x4xbf16, #tpu.memory_space<vmem>>, vector<1x1x80x4xbf16>
    %51 = vector.shape_cast %50 : vector<1x1x80x4xbf16> to vector<80x4xbf16>
    %c5 = arith.constant 5 : index
    %c0_47 = arith.constant 0 : index
    %c0_48 = arith.constant 0 : index
    %52 = vector.load %arg3[%c5, %c0_47, %c0_48] : memref<9x4x8xbf16, #tpu.memory_space<vmem>>, vector<1x4x8xbf16>
    %53 = vector.shape_cast %52 : vector<1x4x8xbf16> to vector<4x8xbf16>
    %cst_49 = arith.constant dense<0.000000e+00> : vector<80x8xf32>
    %54 = tpu.matmul %51, %53, %cst_49 {dimension_numbers = #tpu.dot_dimension_numbers<[1], [0], [0], [1], [0, 0, 1, 1], [], []>} : vector<80x4xbf16>, vector<4x8xbf16>, vector<80x8xf32> -> vector<80x8xf32>
    %55 = arith.addf %47, %54 : vector<80x8xf32>
    %c10_i32 = arith.constant 10 : i32
    %56 = arith.addi %6, %c10_i32 : i32
    %c0_50 = arith.constant 0 : index
    %c0_51 = arith.constant 0 : index
    %57 = arith.index_cast %56 : i32 to index
    %c0_52 = arith.constant 0 : index
    %58 = vector.load %arg1[%c0_50, %c0_51, %57, %c0_52] : memref<1x4x96x4xbf16, #tpu.memory_space<vmem>>, vector<1x1x80x4xbf16>
    %59 = vector.shape_cast %58 : vector<1x1x80x4xbf16> to vector<80x4xbf16>
    %c6 = arith.constant 6 : index
    %c0_53 = arith.constant 0 : index
    %c0_54 = arith.constant 0 : index
    %60 = vector.load %arg3[%c6, %c0_53, %c0_54] : memref<9x4x8xbf16, #tpu.memory_space<vmem>>, vector<1x4x8xbf16>
    %61 = vector.shape_cast %60 : vector<1x4x8xbf16> to vector<4x8xbf16>
    %cst_55 = arith.constant dense<0.000000e+00> : vector<80x8xf32>
    %62 = tpu.matmul %59, %61, %cst_55 {dimension_numbers = #tpu.dot_dimension_numbers<[1], [0], [0], [1], [0, 0, 1, 1], [], []>} : vector<80x4xbf16>, vector<4x8xbf16>, vector<80x8xf32> -> vector<80x8xf32>
    %63 = arith.addf %55, %62 : vector<80x8xf32>
    %c10_i32_56 = arith.constant 10 : i32
    %64 = arith.addi %6, %c10_i32_56 : i32
    %c0_57 = arith.constant 0 : index
    %c1_58 = arith.constant 1 : index
    %65 = arith.index_cast %64 : i32 to index
    %c0_59 = arith.constant 0 : index
    %66 = vector.load %arg1[%c0_57, %c1_58, %65, %c0_59] : memref<1x4x96x4xbf16, #tpu.memory_space<vmem>>, vector<1x1x80x4xbf16>
    %67 = vector.shape_cast %66 : vector<1x1x80x4xbf16> to vector<80x4xbf16>
    %c7 = arith.constant 7 : index
    %c0_60 = arith.constant 0 : index
    %c0_61 = arith.constant 0 : index
    %68 = vector.load %arg3[%c7, %c0_60, %c0_61] : memref<9x4x8xbf16, #tpu.memory_space<vmem>>, vector<1x4x8xbf16>
    %69 = vector.shape_cast %68 : vector<1x4x8xbf16> to vector<4x8xbf16>
    %cst_62 = arith.constant dense<0.000000e+00> : vector<80x8xf32>
    %70 = tpu.matmul %67, %69, %cst_62 {dimension_numbers = #tpu.dot_dimension_numbers<[1], [0], [0], [1], [0, 0, 1, 1], [], []>} : vector<80x4xbf16>, vector<4x8xbf16>, vector<80x8xf32> -> vector<80x8xf32>
    %71 = arith.addf %63, %70 : vector<80x8xf32>
    %c11_i32 = arith.constant 11 : i32
    %72 = arith.addi %6, %c11_i32 : i32
    %c0_63 = arith.constant 0 : index
    %c0_64 = arith.constant 0 : index
    %73 = arith.index_cast %72 : i32 to index
    %c0_65 = arith.constant 0 : index
    %74 = vector.load %arg1[%c0_63, %c0_64, %73, %c0_65] : memref<1x4x96x4xbf16, #tpu.memory_space<vmem>>, vector<1x1x80x4xbf16>
    %75 = vector.shape_cast %74 : vector<1x1x80x4xbf16> to vector<80x4xbf16>
    %c8 = arith.constant 8 : index
    %c0_66 = arith.constant 0 : index
    %c0_67 = arith.constant 0 : index
    %76 = vector.load %arg3[%c8, %c0_66, %c0_67] : memref<9x4x8xbf16, #tpu.memory_space<vmem>>, vector<1x4x8xbf16>
    %77 = vector.shape_cast %76 : vector<1x4x8xbf16> to vector<4x8xbf16>
    %cst_68 = arith.constant dense<0.000000e+00> : vector<80x8xf32>
    %78 = tpu.matmul %75, %77, %cst_68 {dimension_numbers = #tpu.dot_dimension_numbers<[1], [0], [0], [1], [0, 0, 1, 1], [], []>} : vector<80x4xbf16>, vector<4x8xbf16>, vector<80x8xf32> -> vector<80x8xf32>
    %79 = arith.addf %71, %78 : vector<80x8xf32>
    %80 = vector.broadcast %4 : vector<1x8xf32> to vector<80x8xf32>
    %81 = arith.mulf %79, %80 : vector<80x8xf32>
    %82 = vector.broadcast %5 : vector<1x8xf32> to vector<80x8xf32>
    %83 = arith.addf %81, %82 : vector<80x8xf32>
    %cst_69 = arith.constant 0.000000e+00 : f32
    %84 = vector.broadcast %cst_69 : f32 to vector<80x8xf32>
    %85 = arith.maximumf %83, %84 : vector<80x8xf32>
    %86 = tpu.iota {dimensions = array<i32: 0>} : vector<80x1xi32>
    %87 = vector.broadcast %6 : i32 to vector<80x1xi32>
    %88 = arith.addi %87, %86 : vector<80x1xi32>
    %c10_i32_70 = arith.constant 10 : i32
    %c0_i32_71 = arith.constant 0 : i32
    %89 = arith.cmpi eq, %c10_i32_70, %c0_i32_71 : i32
    %c1_i32_72 = arith.constant 1 : i32
    %90 = arith.select %89, %c1_i32_72, %c10_i32_70 : i32
    %91 = vector.broadcast %90 : i32 to vector<80x1xi32>
    %92 = arith.remsi %88, %91 : vector<80x1xi32>
    %c0_i32_73 = arith.constant 0 : i32
    %93 = vector.broadcast %c0_i32_73 : i32 to vector<80x1xi32>
    %94 = arith.cmpi ne, %92, %93 : vector<80x1xi32>
    %c0_i32_74 = arith.constant 0 : i32
    %95 = vector.broadcast %c0_i32_74 : i32 to vector<80x1xi32>
    %96 = arith.cmpi slt, %92, %95 : vector<80x1xi32>
    %c0_i32_75 = arith.constant 0 : i32
    %97 = arith.cmpi slt, %90, %c0_i32_75 : i32
    %98 = vector.broadcast %97 : i1 to vector<80x1xi1>
    %99 = vector.broadcast %98 : vector<80x1xi1> to vector<80x1xi1>
    %100 = arith.xori %96, %99 : vector<80x1xi1>
    %101 = arith.andi %100, %94 : vector<80x1xi1>
    %102 = vector.broadcast %90 : i32 to vector<80x1xi32>
    %103 = arith.addi %92, %102 : vector<80x1xi32>
    %104 = arith.select %101, %103, %92 : vector<80x1xi1>, vector<80x1xi32>
    %c1_i32_76 = arith.constant 1 : i32
    %105 = vector.broadcast %c1_i32_76 : i32 to vector<80x1xi32>
    %106 = arith.cmpi sge, %104, %105 : vector<80x1xi32>
    %c8_i32 = arith.constant 8 : i32
    %107 = vector.broadcast %c8_i32 : i32 to vector<80x1xi32>
    %108 = arith.cmpi sle, %104, %107 : vector<80x1xi32>
    %109 = arith.andi %106, %108 : vector<80x1xi1>
    %c80_i32_77 = arith.constant 80 : i32
    %110 = vector.broadcast %c80_i32_77 : i32 to vector<80x1xi32>
    %111 = arith.cmpi slt, %88, %110 : vector<80x1xi32>
    %112 = arith.andi %109, %111 : vector<80x1xi1>
    %cst_78 = arith.constant 0.000000e+00 : f32
    %113 = vector.shape_cast %112 : vector<80x1xi1> to vector<80x1xi1>
    %114 = vector.broadcast %113 : vector<80x1xi1> to vector<80x8xi1>
    %115 = vector.broadcast %cst_78 : f32 to vector<80x8xf32>
    %116 = arith.select %114, %85, %115 : vector<80x8xi1>, vector<80x8xf32>
    %117 = arith.truncf %116 : vector<80x8xf32> to vector<80x8xbf16>
    %c16_i32 = arith.constant 16 : i32
    %118 = arith.addi %c16_i32, %6 : i32
    %119 = arith.index_cast %118 : i32 to index
    %c0_79 = arith.constant 0 : index
    %120 = vector.load %arg9[%119, %c0_79] : memref<112x8xbf16, #tpu.memory_space<vmem>>, vector<80x8xbf16>
    tpu.vector_store %arg9[%119, %c0_79], %117 {strides = array<i32>} : memref<112x8xbf16, #tpu.memory_space<vmem>>, vector<80x8xbf16>,
    %c1_i32_80 = arith.constant 1 : i32
    %c0_i32_81 = arith.constant 0 : i32
    %c80_i32_82 = arith.constant 80 : i32
    %121 = arith.muli %c0_i32_81, %c80_i32_82 : i32
    %cst_83 = arith.constant 0.000000e+00 : f32
    %122 = vector.broadcast %cst_83 : f32 to vector<80x8xf32>
    %c6_i32 = arith.constant 6 : i32
    %123 = arith.addi %c6_i32, %121 : i32
    %c0_i32_84 = arith.constant 0 : i32
    %124 = arith.addi %123, %c0_i32_84 : i32
    %125 = arith.index_cast %124 : i32 to index
    %c0_85 = arith.constant 0 : index
    %126 = vector.load %arg9[%125, %c0_85] : memref<112x8xbf16, #tpu.memory_space<vmem>>, vector<80x8xbf16>
    %c0_i32_86 = arith.constant 0 : i32
    %127 = arith.addi %121, %c0_i32_86 : i32
    %c0_87 = arith.constant 0 : index
    %128 = arith.index_cast %127 : i32 to index
    %c0_88 = arith.constant 0 : index
    %129 = vector.load %arg2[%c0_87, %128, %c0_88] : memref<1x104x8xbf16, #tpu.memory_space<vmem>>, vector<1x80x8xbf16>
    %130 = vector.shape_cast %129 : vector<1x80x8xbf16> to vector<80x8xbf16>
    %c0_89 = arith.constant 0 : index
    %c0_90 = arith.constant 0 : index
    %c0_91 = arith.constant 0 : index
    %131 = vector.load %arg6[%c0_89, %c0_90, %c0_91] : memref<9x8x8xbf16, #tpu.memory_space<vmem>>, vector<1x8x8xbf16>
    %132 = vector.shape_cast %131 : vector<1x8x8xbf16> to vector<8x8xbf16>
    %cst_92 = arith.constant dense<0.000000e+00> : vector<80x8xf32>
    %133 = tpu.matmul %126, %132, %cst_92 {dimension_numbers = #tpu.dot_dimension_numbers<[1], [0], [0], [1], [0, 0, 1, 1], [], []>} : vector<80x8xbf16>, vector<8x8xbf16>, vector<80x8xf32> -> vector<80x8xf32>
    %134 = arith.addf %122, %133 : vector<80x8xf32>
    %c0_93 = arith.constant 0 : index
    %c0_94 = arith.constant 0 : index
    %c0_95 = arith.constant 0 : index
    %135 = vector.load %arg7[%c0_93, %c0_94, %c0_95] : memref<9x8x8xbf16, #tpu.memory_space<vmem>>, vector<1x8x8xbf16>
    %136 = vector.shape_cast %135 : vector<1x8x8xbf16> to vector<8x8xbf16>
    %cst_96 = arith.constant dense<0.000000e+00> : vector<80x8xf32>
    %137 = tpu.matmul %130, %136, %cst_96 {dimension_numbers = #tpu.dot_dimension_numbers<[1], [0], [0], [1], [0, 0, 1, 1], [], []>} : vector<80x8xbf16>, vector<8x8xbf16>, vector<80x8xf32> -> vector<80x8xf32>
    %138 = arith.addf %134, %137 : vector<80x8xf32>
    %c6_i32_97 = arith.constant 6 : i32
    %139 = arith.addi %c6_i32_97, %121 : i32
    %c1_i32_98 = arith.constant 1 : i32
    %140 = arith.addi %139, %c1_i32_98 : i32
    %141 = arith.index_cast %140 : i32 to index
    %c0_99 = arith.constant 0 : index
    %142 = vector.load %arg9[%141, %c0_99] : memref<112x8xbf16, #tpu.memory_space<vmem>>, vector<80x8xbf16>
    %c1_i32_100 = arith.constant 1 : i32
    %143 = arith.addi %121, %c1_i32_100 : i32
    %c0_101 = arith.constant 0 : index
    %144 = arith.index_cast %143 : i32 to index
    %c0_102 = arith.constant 0 : index
    %145 = vector.load %arg2[%c0_101, %144, %c0_102] : memref<1x104x8xbf16, #tpu.memory_space<vmem>>, vector<1x80x8xbf16>
    %146 = vector.shape_cast %145 : vector<1x80x8xbf16> to vector<80x8xbf16>
    %c1_103 = arith.constant 1 : index
    %c0_104 = arith.constant 0 : index
    %c0_105 = arith.constant 0 : index
    %147 = vector.load %arg6[%c1_103, %c0_104, %c0_105] : memref<9x8x8xbf16, #tpu.memory_space<vmem>>, vector<1x8x8xbf16>
    %148 = vector.shape_cast %147 : vector<1x8x8xbf16> to vector<8x8xbf16>
    %cst_106 = arith.constant dense<0.000000e+00> : vector<80x8xf32>
    %149 = tpu.matmul %142, %148, %cst_106 {dimension_numbers = #tpu.dot_dimension_numbers<[1], [0], [0], [1], [0, 0, 1, 1], [], []>} : vector<80x8xbf16>, vector<8x8xbf16>, vector<80x8xf32> -> vector<80x8xf32>
    %150 = arith.addf %138, %149 : vector<80x8xf32>
    %c1_107 = arith.constant 1 : index
    %c0_108 = arith.constant 0 : index
    %c0_109 = arith.constant 0 : index
    %151 = vector.load %arg7[%c1_107, %c0_108, %c0_109] : memref<9x8x8xbf16, #tpu.memory_space<vmem>>, vector<1x8x8xbf16>
    %152 = vector.shape_cast %151 : vector<1x8x8xbf16> to vector<8x8xbf16>
    %cst_110 = arith.constant dense<0.000000e+00> : vector<80x8xf32>
    %153 = tpu.matmul %146, %152, %cst_110 {dimension_numbers = #tpu.dot_dimension_numbers<[1], [0], [0], [1], [0, 0, 1, 1], [], []>} : vector<80x8xbf16>, vector<8x8xbf16>, vector<80x8xf32> -> vector<80x8xf32>
    %154 = arith.addf %150, %153 : vector<80x8xf32>
    %c6_i32_111 = arith.constant 6 : i32
    %155 = arith.addi %c6_i32_111, %121 : i32
    %c2_i32 = arith.constant 2 : i32
    %156 = arith.addi %155, %c2_i32 : i32
    %157 = arith.index_cast %156 : i32 to index
    %c0_112 = arith.constant 0 : index
    %158 = vector.load %arg9[%157, %c0_112] : memref<112x8xbf16, #tpu.memory_space<vmem>>, vector<80x8xbf16>
    %c2_i32_113 = arith.constant 2 : i32
    %159 = arith.addi %121, %c2_i32_113 : i32
    %c0_114 = arith.constant 0 : index
    %160 = arith.index_cast %159 : i32 to index
    %c0_115 = arith.constant 0 : index
    %161 = vector.load %arg2[%c0_114, %160, %c0_115] : memref<1x104x8xbf16, #tpu.memory_space<vmem>>, vector<1x80x8xbf16>
    %162 = vector.shape_cast %161 : vector<1x80x8xbf16> to vector<80x8xbf16>
    %c2_116 = arith.constant 2 : index
    %c0_117 = arith.constant 0 : index
    %c0_118 = arith.constant 0 : index
    %163 = vector.load %arg6[%c2_116, %c0_117, %c0_118] : memref<9x8x8xbf16, #tpu.memory_space<vmem>>, vector<1x8x8xbf16>
    %164 = vector.shape_cast %163 : vector<1x8x8xbf16> to vector<8x8xbf16>
    %cst_119 = arith.constant dense<0.000000e+00> : vector<80x8xf32>
    %165 = tpu.matmul %158, %164, %cst_119 {dimension_numbers = #tpu.dot_dimension_numbers<[1], [0], [0], [1], [0, 0, 1, 1], [], []>} : vector<80x8xbf16>, vector<8x8xbf16>, vector<80x8xf32> -> vector<80x8xf32>
    %166 = arith.addf %154, %165 : vector<80x8xf32>
    %c2_120 = arith.constant 2 : index
    %c0_121 = arith.constant 0 : index
    %c0_122 = arith.constant 0 : index
    %167 = vector.load %arg7[%c2_120, %c0_121, %c0_122] : memref<9x8x8xbf16, #tpu.memory_space<vmem>>, vector<1x8x8xbf16>
    %168 = vector.shape_cast %167 : vector<1x8x8xbf16> to vector<8x8xbf16>
    %cst_123 = arith.constant dense<0.000000e+00> : vector<80x8xf32>
    %169 = tpu.matmul %162, %168, %cst_123 {dimension_numbers = #tpu.dot_dimension_numbers<[1], [0], [0], [1], [0, 0, 1, 1], [], []>} : vector<80x8xbf16>, vector<8x8xbf16>, vector<80x8xf32> -> vector<80x8xf32>
    %170 = arith.addf %166, %169 : vector<80x8xf32>
    %c6_i32_124 = arith.constant 6 : i32
    %171 = arith.addi %c6_i32_124, %121 : i32
    %c10_i32_125 = arith.constant 10 : i32
    %172 = arith.addi %171, %c10_i32_125 : i32
    %173 = arith.index_cast %172 : i32 to index
    %c0_126 = arith.constant 0 : index
    %174 = vector.load %arg9[%173, %c0_126] : memref<112x8xbf16, #tpu.memory_space<vmem>>, vector<80x8xbf16>
    %c10_i32_127 = arith.constant 10 : i32
    %175 = arith.addi %121, %c10_i32_127 : i32
    %c0_128 = arith.constant 0 : index
    %176 = arith.index_cast %175 : i32 to index
    %c0_129 = arith.constant 0 : index
    %177 = vector.load %arg2[%c0_128, %176, %c0_129] : memref<1x104x8xbf16, #tpu.memory_space<vmem>>, vector<1x80x8xbf16>
    %178 = vector.shape_cast %177 : vector<1x80x8xbf16> to vector<80x8xbf16>
    %c3_130 = arith.constant 3 : index
    %c0_131 = arith.constant 0 : index
    %c0_132 = arith.constant 0 : index
    %179 = vector.load %arg6[%c3_130, %c0_131, %c0_132] : memref<9x8x8xbf16, #tpu.memory_space<vmem>>, vector<1x8x8xbf16>
    %180 = vector.shape_cast %179 : vector<1x8x8xbf16> to vector<8x8xbf16>
    %cst_133 = arith.constant dense<0.000000e+00> : vector<80x8xf32>
    %181 = tpu.matmul %174, %180, %cst_133 {dimension_numbers = #tpu.dot_dimension_numbers<[1], [0], [0], [1], [0, 0, 1, 1], [], []>} : vector<80x8xbf16>, vector<8x8xbf16>, vector<80x8xf32> -> vector<80x8xf32>
    %182 = arith.addf %170, %181 : vector<80x8xf32>
    %c3_134 = arith.constant 3 : index
    %c0_135 = arith.constant 0 : index
    %c0_136 = arith.constant 0 : index
    %183 = vector.load %arg7[%c3_134, %c0_135, %c0_136] : memref<9x8x8xbf16, #tpu.memory_space<vmem>>, vector<1x8x8xbf16>
    %184 = vector.shape_cast %183 : vector<1x8x8xbf16> to vector<8x8xbf16>
    %cst_137 = arith.constant dense<0.000000e+00> : vector<80x8xf32>
    %185 = tpu.matmul %178, %184, %cst_137 {dimension_numbers = #tpu.dot_dimension_numbers<[1], [0], [0], [1], [0, 0, 1, 1], [], []>} : vector<80x8xbf16>, vector<8x8xbf16>, vector<80x8xf32> -> vector<80x8xf32>
    %186 = arith.addf %182, %185 : vector<80x8xf32>
    %c6_i32_138 = arith.constant 6 : i32
    %187 = arith.addi %c6_i32_138, %121 : i32
    %c11_i32_139 = arith.constant 11 : i32
    %188 = arith.addi %187, %c11_i32_139 : i32
    %189 = arith.index_cast %188 : i32 to index
    %c0_140 = arith.constant 0 : index
    %190 = vector.load %arg9[%189, %c0_140] : memref<112x8xbf16, #tpu.memory_space<vmem>>, vector<80x8xbf16>
    %c11_i32_141 = arith.constant 11 : i32
    %191 = arith.addi %121, %c11_i32_141 : i32
    %c0_142 = arith.constant 0 : index
    %192 = arith.index_cast %191 : i32 to index
    %c0_143 = arith.constant 0 : index
    %193 = vector.load %arg2[%c0_142, %192, %c0_143] : memref<1x104x8xbf16, #tpu.memory_space<vmem>>, vector<1x80x8xbf16>
    %194 = vector.shape_cast %193 : vector<1x80x8xbf16> to vector<80x8xbf16>
    %c4_144 = arith.constant 4 : index
    %c0_145 = arith.constant 0 : index
    %c0_146 = arith.constant 0 : index
    %195 = vector.load %arg6[%c4_144, %c0_145, %c0_146] : memref<9x8x8xbf16, #tpu.memory_space<vmem>>, vector<1x8x8xbf16>
    %196 = vector.shape_cast %195 : vector<1x8x8xbf16> to vector<8x8xbf16>
    %cst_147 = arith.constant dense<0.000000e+00> : vector<80x8xf32>
    %197 = tpu.matmul %190, %196, %cst_147 {dimension_numbers = #tpu.dot_dimension_numbers<[1], [0], [0], [1], [0, 0, 1, 1], [], []>} : vector<80x8xbf16>, vector<8x8xbf16>, vector<80x8xf32> -> vector<80x8xf32>
    %198 = arith.addf %186, %197 : vector<80x8xf32>
    %c4_148 = arith.constant 4 : index
    %c0_149 = arith.constant 0 : index
    %c0_150 = arith.constant 0 : index
    %199 = vector.load %arg7[%c4_148, %c0_149, %c0_150] : memref<9x8x8xbf16, #tpu.memory_space<vmem>>, vector<1x8x8xbf16>
    %200 = vector.shape_cast %199 : vector<1x8x8xbf16> to vector<8x8xbf16>
    %cst_151 = arith.constant dense<0.000000e+00> : vector<80x8xf32>
    %201 = tpu.matmul %194, %200, %cst_151 {dimension_numbers = #tpu.dot_dimension_numbers<[1], [0], [0], [1], [0, 0, 1, 1], [], []>} : vector<80x8xbf16>, vector<8x8xbf16>, vector<80x8xf32> -> vector<80x8xf32>
    %202 = arith.addf %198, %201 : vector<80x8xf32>
    %c6_i32_152 = arith.constant 6 : i32
    %203 = arith.addi %c6_i32_152, %121 : i32
    %c12_i32 = arith.constant 12 : i32
    %204 = arith.addi %203, %c12_i32 : i32
    %205 = arith.index_cast %204 : i32 to index
    %c0_153 = arith.constant 0 : index
    %206 = vector.load %arg9[%205, %c0_153] : memref<112x8xbf16, #tpu.memory_space<vmem>>, vector<80x8xbf16>
    %c12_i32_154 = arith.constant 12 : i32
    %207 = arith.addi %121, %c12_i32_154 : i32
    %c0_155 = arith.constant 0 : index
    %208 = arith.index_cast %207 : i32 to index
    %c0_156 = arith.constant 0 : index
    %209 = vector.load %arg2[%c0_155, %208, %c0_156] : memref<1x104x8xbf16, #tpu.memory_space<vmem>>, vector<1x80x8xbf16>
    %210 = vector.shape_cast %209 : vector<1x80x8xbf16> to vector<80x8xbf16>
    %c5_157 = arith.constant 5 : index
    %c0_158 = arith.constant 0 : index
    %c0_159 = arith.constant 0 : index
    %211 = vector.load %arg6[%c5_157, %c0_158, %c0_159] : memref<9x8x8xbf16, #tpu.memory_space<vmem>>, vector<1x8x8xbf16>
    %212 = vector.shape_cast %211 : vector<1x8x8xbf16> to vector<8x8xbf16>
    %cst_160 = arith.constant dense<0.000000e+00> : vector<80x8xf32>
    %213 = tpu.matmul %206, %212, %cst_160 {dimension_numbers = #tpu.dot_dimension_numbers<[1], [0], [0], [1], [0, 0, 1, 1], [], []>} : vector<80x8xbf16>, vector<8x8xbf16>, vector<80x8xf32> -> vector<80x8xf32>
    %214 = arith.addf %202, %213 : vector<80x8xf32>
    %c5_161 = arith.constant 5 : index
    %c0_162 = arith.constant 0 : index
    %c0_163 = arith.constant 0 : index
    %215 = vector.load %arg7[%c5_161, %c0_162, %c0_163] : memref<9x8x8xbf16, #tpu.memory_space<vmem>>, vector<1x8x8xbf16>
    %216 = vector.shape_cast %215 : vector<1x8x8xbf16> to vector<8x8xbf16>
    %cst_164 = arith.constant dense<0.000000e+00> : vector<80x8xf32>
    %217 = tpu.matmul %210, %216, %cst_164 {dimension_numbers = #tpu.dot_dimension_numbers<[1], [0], [0], [1], [0, 0, 1, 1], [], []>} : vector<80x8xbf16>, vector<8x8xbf16>, vector<80x8xf32> -> vector<80x8xf32>
    %218 = arith.addf %214, %217 : vector<80x8xf32>
    %c6_i32_165 = arith.constant 6 : i32
    %219 = arith.addi %c6_i32_165, %121 : i32
    %c20_i32 = arith.constant 20 : i32
    %220 = arith.addi %219, %c20_i32 : i32
    %221 = arith.index_cast %220 : i32 to index
    %c0_166 = arith.constant 0 : index
    %222 = vector.load %arg9[%221, %c0_166] : memref<112x8xbf16, #tpu.memory_space<vmem>>, vector<80x8xbf16>
    %c20_i32_167 = arith.constant 20 : i32
    %223 = arith.addi %121, %c20_i32_167 : i32
    %c0_168 = arith.constant 0 : index
    %224 = arith.index_cast %223 : i32 to index
    %c0_169 = arith.constant 0 : index
    %225 = vector.load %arg2[%c0_168, %224, %c0_169] : memref<1x104x8xbf16, #tpu.memory_space<vmem>>, vector<1x80x8xbf16>
    %226 = vector.shape_cast %225 : vector<1x80x8xbf16> to vector<80x8xbf16>
    %c6_170 = arith.constant 6 : index
    %c0_171 = arith.constant 0 : index
    %c0_172 = arith.constant 0 : index
    %227 = vector.load %arg6[%c6_170, %c0_171, %c0_172] : memref<9x8x8xbf16, #tpu.memory_space<vmem>>, vector<1x8x8xbf16>
    %228 = vector.shape_cast %227 : vector<1x8x8xbf16> to vector<8x8xbf16>
    %cst_173 = arith.constant dense<0.000000e+00> : vector<80x8xf32>
    %229 = tpu.matmul %222, %228, %cst_173 {dimension_numbers = #tpu.dot_dimension_numbers<[1], [0], [0], [1], [0, 0, 1, 1], [], []>} : vector<80x8xbf16>, vector<8x8xbf16>, vector<80x8xf32> -> vector<80x8xf32>
    %230 = arith.addf %218, %229 : vector<80x8xf32>
    %c6_174 = arith.constant 6 : index
    %c0_175 = arith.constant 0 : index
    %c0_176 = arith.constant 0 : index
    %231 = vector.load %arg7[%c6_174, %c0_175, %c0_176] : memref<9x8x8xbf16, #tpu.memory_space<vmem>>, vector<1x8x8xbf16>
    %232 = vector.shape_cast %231 : vector<1x8x8xbf16> to vector<8x8xbf16>
    %cst_177 = arith.constant dense<0.000000e+00> : vector<80x8xf32>
    %233 = tpu.matmul %226, %232, %cst_177 {dimension_numbers = #tpu.dot_dimension_numbers<[1], [0], [0], [1], [0, 0, 1, 1], [], []>} : vector<80x8xbf16>, vector<8x8xbf16>, vector<80x8xf32> -> vector<80x8xf32>
    %234 = arith.addf %230, %233 : vector<80x8xf32>
    %c6_i32_178 = arith.constant 6 : i32
    %235 = arith.addi %c6_i32_178, %121 : i32
    %c21_i32 = arith.constant 21 : i32
    %236 = arith.addi %235, %c21_i32 : i32
    %237 = arith.index_cast %236 : i32 to index
    %c0_179 = arith.constant 0 : index
    %238 = vector.load %arg9[%237, %c0_179] : memref<112x8xbf16, #tpu.memory_space<vmem>>, vector<80x8xbf16>
    %c21_i32_180 = arith.constant 21 : i32
    %239 = arith.addi %121, %c21_i32_180 : i32
    %c0_181 = arith.constant 0 : index
    %240 = arith.index_cast %239 : i32 to index
    %c0_182 = arith.constant 0 : index
    %241 = vector.load %arg2[%c0_181, %240, %c0_182] : memref<1x104x8xbf16, #tpu.memory_space<vmem>>, vector<1x80x8xbf16>
    %242 = vector.shape_cast %241 : vector<1x80x8xbf16> to vector<80x8xbf16>
    %c7_183 = arith.constant 7 : index
    %c0_184 = arith.constant 0 : index
    %c0_185 = arith.constant 0 : index
    %243 = vector.load %arg6[%c7_183, %c0_184, %c0_185] : memref<9x8x8xbf16, #tpu.memory_space<vmem>>, vector<1x8x8xbf16>
    %244 = vector.shape_cast %243 : vector<1x8x8xbf16> to vector<8x8xbf16>
    %cst_186 = arith.constant dense<0.000000e+00> : vector<80x8xf32>
    %245 = tpu.matmul %238, %244, %cst_186 {dimension_numbers = #tpu.dot_dimension_numbers<[1], [0], [0], [1], [0, 0, 1, 1], [], []>} : vector<80x8xbf16>, vector<8x8xbf16>, vector<80x8xf32> -> vector<80x8xf32>
    %246 = arith.addf %234, %245 : vector<80x8xf32>
    %c7_187 = arith.constant 7 : index
    %c0_188 = arith.constant 0 : index
    %c0_189 = arith.constant 0 : index
    %247 = vector.load %arg7[%c7_187, %c0_188, %c0_189] : memref<9x8x8xbf16, #tpu.memory_space<vmem>>, vector<1x8x8xbf16>
    %248 = vector.shape_cast %247 : vector<1x8x8xbf16> to vector<8x8xbf16>
    %cst_190 = arith.constant dense<0.000000e+00> : vector<80x8xf32>
    %249 = tpu.matmul %242, %248, %cst_190 {dimension_numbers = #tpu.dot_dimension_numbers<[1], [0], [0], [1], [0, 0, 1, 1], [], []>} : vector<80x8xbf16>, vector<8x8xbf16>, vector<80x8xf32> -> vector<80x8xf32>
    %250 = arith.addf %246, %249 : vector<80x8xf32>
    %c6_i32_191 = arith.constant 6 : i32
    %251 = arith.addi %c6_i32_191, %121 : i32
    %c22_i32 = arith.constant 22 : i32
    %252 = arith.addi %251, %c22_i32 : i32
    %253 = arith.index_cast %252 : i32 to index
    %c0_192 = arith.constant 0 : index
    %254 = vector.load %arg9[%253, %c0_192] : memref<112x8xbf16, #tpu.memory_space<vmem>>, vector<80x8xbf16>
    %c22_i32_193 = arith.constant 22 : i32
    %255 = arith.addi %121, %c22_i32_193 : i32
    %c0_194 = arith.constant 0 : index
    %256 = arith.index_cast %255 : i32 to index
    %c0_195 = arith.constant 0 : index
    %257 = vector.load %arg2[%c0_194, %256, %c0_195] : memref<1x104x8xbf16, #tpu.memory_space<vmem>>, vector<1x80x8xbf16>
    %258 = vector.shape_cast %257 : vector<1x80x8xbf16> to vector<80x8xbf16>
    %c8_196 = arith.constant 8 : index
    %c0_197 = arith.constant 0 : index
    %c0_198 = arith.constant 0 : index
    %259 = vector.load %arg6[%c8_196, %c0_197, %c0_198] : memref<9x8x8xbf16, #tpu.memory_space<vmem>>, vector<1x8x8xbf16>
    %260 = vector.shape_cast %259 : vector<1x8x8xbf16> to vector<8x8xbf16>
    %cst_199 = arith.constant dense<0.000000e+00> : vector<80x8xf32>
    %261 = tpu.matmul %254, %260, %cst_199 {dimension_numbers = #tpu.dot_dimension_numbers<[1], [0], [0], [1], [0, 0, 1, 1], [], []>} : vector<80x8xbf16>, vector<8x8xbf16>, vector<80x8xf32> -> vector<80x8xf32>
    %262 = arith.addf %250, %261 : vector<80x8xf32>
    %c8_200 = arith.constant 8 : index
    %c0_201 = arith.constant 0 : index
    %c0_202 = arith.constant 0 : index
    %263 = vector.load %arg7[%c8_200, %c0_201, %c0_202] : memref<9x8x8xbf16, #tpu.memory_space<vmem>>, vector<1x8x8xbf16>
    %264 = vector.shape_cast %263 : vector<1x8x8xbf16> to vector<8x8xbf16>
    %cst_203 = arith.constant dense<0.000000e+00> : vector<80x8xf32>
    %265 = tpu.matmul %258, %264, %cst_203 {dimension_numbers = #tpu.dot_dimension_numbers<[1], [0], [0], [1], [0, 0, 1, 1], [], []>} : vector<80x8xbf16>, vector<8x8xbf16>, vector<80x8xf32> -> vector<80x8xf32>
    %266 = arith.addf %262, %265 : vector<80x8xf32>
    %267 = arith.truncf %266 : vector<80x8xf32> to vector<80x8xbf16>
    %c0_204 = arith.constant 0 : index
    %268 = arith.index_cast %121 : i32 to index
    %c0_205 = arith.constant 0 : index
    %269 = vector.load %arg8[%c0_204, %268, %c0_205] : memref<1x80x8xbf16, #tpu.memory_space<vmem>>, vector<1x80x8xbf16>
    %270 = vector.shape_cast %269 : vector<1x80x8xbf16> to vector<80x8xbf16>
    %271 = vector.shape_cast %267 : vector<80x8xbf16> to vector<1x80x8xbf16>
    tpu.vector_store %arg8[%c0_204, %268, %c0_205], %271 {strides = array<i32>} : memref<1x80x8xbf16, #tpu.memory_space<vmem>>, vector<1x80x8xbf16>,
    %c1_i32_206 = arith.constant 1 : i32
    return
  }
  func.func @transform_0(%arg0: i32) -> (i32, i32, i32, i32) {
    %c0_i32 = arith.constant 0 : i32
    %c0_i32_0 = arith.constant 0 : i32
    %c0_i32_1 = arith.constant 0 : i32
    %c0_i32_2 = arith.constant 0 : i32
    return %arg0, %c0_i32, %c0_i32_0, %c0_i32_1 : i32, i32, i32, i32
  }
  func.func @transform_1(%arg0: i32) -> (i32, i32, i32) {
    %c0_i32 = arith.constant 0 : i32
    %c0_i32_0 = arith.constant 0 : i32
    %c0_i32_1 = arith.constant 0 : i32
    return %arg0, %c0_i32, %c0_i32_0 : i32, i32, i32
  }
  func.func @transform_2(%arg0: i32) -> (i32, i32, i32) {
    %c0_i32 = arith.constant 0 : i32
    %c0_i32_0 = arith.constant 0 : i32
    %c0_i32_1 = arith.constant 0 : i32
    %c0_i32_2 = arith.constant 0 : i32
    return %c0_i32, %c0_i32_0, %c0_i32_1 : i32, i32, i32
  }
  func.func @transform_3(%arg0: i32) -> (i32, i32) {
    %c0_i32 = arith.constant 0 : i32
    %c0_i32_0 = arith.constant 0 : i32
    %c0_i32_1 = arith.constant 0 : i32
    return %c0_i32, %c0_i32_0 : i32, i32
  }
  func.func @transform_4(%arg0: i32) -> (i32, i32) {
    %c0_i32 = arith.constant 0 : i32
    %c0_i32_0 = arith.constant 0 : i32
    %c0_i32_1 = arith.constant 0 : i32
    return %c0_i32, %c0_i32_0 : i32, i32
  }
  func.func @transform_5(%arg0: i32) -> (i32, i32, i32) {
    %c0_i32 = arith.constant 0 : i32
    %c0_i32_0 = arith.constant 0 : i32
    %c0_i32_1 = arith.constant 0 : i32
    %c0_i32_2 = arith.constant 0 : i32
    return %c0_i32, %c0_i32_0, %c0_i32_1 : i32, i32, i32
  }
  func.func @transform_6(%arg0: i32) -> (i32, i32, i32) {
    %c0_i32 = arith.constant 0 : i32
    %c0_i32_0 = arith.constant 0 : i32
    %c0_i32_1 = arith.constant 0 : i32
    %c0_i32_2 = arith.constant 0 : i32
    return %c0_i32, %c0_i32_0, %c0_i32_1 : i32, i32, i32
  }
  func.func @transform_7(%arg0: i32) -> (i32, i32, i32) {
    %c0_i32 = arith.constant 0 : i32
    %c0_i32_0 = arith.constant 0 : i32
    %c0_i32_1 = arith.constant 0 : i32
    return %arg0, %c0_i32, %c0_i32_0 : i32, i32, i32
  }
}

</mosaic_0001>

<llo_original>
// kernel: conv2x_forward.1
$region0: #{conv2x_forward.1}
  #allocation0 [shape = 'u32[]', space=smem, size = 0x4, offset = 0x4, fixed_abs, tag = 'smem constant byte address 0x4 - core index']
  #allocation1 [shape = 'u32[144,128]{1,0:T(1,128)}', space=vmem, size = 0x12000, scoped, tag = 'internal scratch']
  #allocation2 [shape = 'bf16[112,8]{1,0:T(16,128)(2,1)}', space=vmem, size = 0x7000, scoped, tag = 'scratch operand']
  %s0 = inlined_call_operand.hbm [shape: bf16[2,4,96,4], index: 0, kind: input, shape index: {}]
  %s1 = inlined_call_operand.hbm [shape: bf16[2,104,8], index: 1, kind: input, shape index: {}]
  %s2 = inlined_call_operand.hbm [shape: bf16[9,4,8], index: 2, kind: input, shape index: {}]
  %s3 = inlined_call_operand.hbm [shape: f32[1,8], index: 3, kind: input, shape index: {}]
  %s4 = inlined_call_operand.hbm [shape: f32[1,8], index: 4, kind: input, shape index: {}]
  %s5 = inlined_call_operand.hbm [shape: bf16[9,8,8], index: 5, kind: input, shape index: {}]
  %s6 = inlined_call_operand.hbm [shape: bf16[9,8,8], index: 6, kind: input, shape index: {}]
  %s7 = inlined_call_operand.hbm [shape: bf16[2,80,8], index: 7, kind: output, shape index: {}]
  %s8 = sld [smem:[#allocation0]]
  $region89: #{conv2x_forward.1} parent=0
    _
  %s10 = ssub.s32 1, %s8
  %s11 = scalar_select 0, %s10, %s8
  $region1: #{conv2x_forward.1} parent=0
    #allocation3 [shape = 'u8[196608]{0}', space=vmem, size = 0x30000, scoped, tag = 'input window, operand 0']
    #allocation4 [shape = 's32[2]{0}', space=sflag, size = 0x8, scoped, tag = 'scoped memory for conv2x_forward.1']
    #allocation5 [shape = 's32[2]{0}', space=sflag, size = 0x8, scoped, tag = 'scoped memory for conv2x_forward.1']
    #allocation6 [shape = 'u8[53248]{0}', space=vmem, size = 0xd000, scoped, tag = 'input window, operand 1']
    #allocation7 [shape = 's32[2]{0}', space=sflag, size = 0x8, scoped, tag = 'scoped memory for conv2x_forward.1']
    #allocation8 [shape = 'u8[9216]{0}', space=vmem, size = 0x2400, scoped, tag = 'input window, operand 2, single buffered']
    #allocation9 [shape = 'u8[512]{0}', space=vmem, size = 0x400, scoped, tag = 'input window, operand 3, single buffered']
    #allocation10 [shape = 's32[1]{0}', space=sflag, size = 0x4, scoped, tag = 'scoped memory for conv2x_forward.1']
    #allocation11 [shape = 'u8[512]{0}', space=vmem, size = 0x400, scoped, tag = 'input window, operand 4, single buffered']
    #allocation12 [shape = 'u8[18432]{0}', space=vmem, size = 0x4800, scoped, tag = 'input window, operand 5, single buffered']
    #allocation13 [shape = 's32[1]{0}', space=sflag, size = 0x4, scoped, tag = 'scoped memory for conv2x_forward.1']
    #allocation14 [shape = 'u8[18432]{0}', space=vmem, size = 0x4800, scoped, tag = 'input window, operand 6, single buffered']
    #allocation15 [shape = 'u8[40960]{0}', space=vmem, size = 0xa000, scoped, tag = 'output window, operand 0']
    %12 = vsyncpa [#allocation4], 0
    %s13 = scalar_lea.sflag [#allocation4], 1
    %14 = vsyncpa %s13, 0
    %15 = vsyncpa [#allocation7], 0
    %s16 = scalar_lea.sflag [#allocation7], 1
    %17 = vsyncpa %s16, 0
    %18 = vsyncpa [#allocation10], 0
    %19 = vsyncpa [#allocation13], 0
    %20 = vsyncpa [#allocation5], 0
    %s21 = scalar_lea.sflag [#allocation5], 1
    %22 = vsyncpa %s21, 0
    loop: start=0, step=1, limit=4
    $region2: #{conv2x_forward.1} parent=1 // loop_pre_header
      _
    $region3: #{conv2x_forward.1} parent=1 // loop_header
      %s24 = sphi 0, %s28
      %p25 = scmp.ge.s32.totalorder %s24, 4
      %s34 = sphi 0, %s36
      %s37 = sphi 0, %s34
      %s38 = sphi 0, %s37
      %s54 = sphi 0, %s38
      %s60 = sphi 0, %s62
      %s63 = sphi 0, %s60
      %s64 = sphi 0, %s63
      %s80 = sphi 0, %s64
      %s84 = sphi 0, %s84
      %s86 = sphi 0, %s84
      %s87 = sphi 0, %s86
      %s101 = sphi 0, %s87
      %s105 = sphi 0, %s105
      %s107 = sphi 0, %s105
      %s108 = sphi 0, %s107
      %s122 = sphi 0, %s108
      %s126 = sphi 0, %s126
      %s128 = sphi 0, %s126
      %s129 = sphi 0, %s128
      %s143 = sphi 0, %s129
      %s147 = sphi 0, %s147
      %s149 = sphi 0, %s147
      %s150 = sphi 0, %s149
      %s164 = sphi 0, %s150
      %s168 = sphi 0, %s168
      %s170 = sphi 0, %s168
      %s171 = sphi 0, %s170
      %s185 = sphi 0, %s171
      %s191 = sphi 0, %s193
      %s194 = sphi 0, %s191
      %s195 = sphi 0, %s194
      %s211 = sphi 0, %s195
    $region4: #{conv2x_forward.1} parent=1 // loop_header_branch
      %27 = sbr.rel (%p25) target = $region8
    $region5: #{conv2x_forward.1} parent=1 // loop_body
      %s29 = ssub.s32 %s24, 1
      %s30 = ssub.s32 %s24, 2
      %s31 = sadd.s32 %s24, 1
      %s32 = ssub.s32 %s24, %s31
      %p33 = scmp.eq.s32.totalorder %s32, 0
      %s35 = sadd.s32 %s34, 1
      %s36 = scalar_select %p33, %s34, %s35
      %p39 = pneg %p33
      %p40 = scmp.eq.s32.totalorder %s24, 1
      %p41 = por %p39, %p40
      %p42 = scmp.ne.s32.totalorder %s34, %s37
      %p43 = scmp.eq.s32.totalorder %s24, 0
      %p44 = por %p42, %p43
      %p45 = scmp.ne.s32.totalorder %s34, %s37
      %p46 = scmp.eq.s32.totalorder %s29, 1
      %p47 = por %p45, %p46
      %p48 = scmp.ne.s32.totalorder %s37, %s38
      %p49 = scmp.eq.s32.totalorder %s29, 0
      %p50 = por %p48, %p49
      %p51 = scmp.ne.s32.totalorder %s37, %s38
      %p52 = scmp.eq.s32.totalorder %s30, 1
      %p53 = por %p51, %p52
      %p55 = scmp.ne.s32.totalorder %s38, %s54
      %p56 = scmp.eq.s32.totalorder %s30, 0
      %p57 = por %p55, %p56
      %s58 = ssub.s32 %s24, %s31
      %p59 = scmp.eq.s32.totalorder %s58, 0
      %s61 = sadd.s32 %s60, 1
      %s62 = scalar_select %p59, %s60, %s61
      %p65 = pneg %p59
      %p66 = scmp.eq.s32.totalorder %s24, 1
      %p67 = por %p65, %p66
      %p68 = scmp.ne.s32.totalorder %s60, %s63
      %p69 = scmp.eq.s32.totalorder %s24, 0
      %p70 = por %p68, %p69
      %p71 = scmp.ne.s32.totalorder %s60, %s63
      %p72 = scmp.eq.s32.totalorder %s29, 1
      %p73 = por %p71, %p72
      %p74 = scmp.ne.s32.totalorder %s63, %s64
      %p75 = scmp.eq.s32.totalorder %s29, 0
      %p76 = por %p74, %p75
      %p77 = scmp.ne.s32.totalorder %s63, %s64
      %p78 = scmp.eq.s32.totalorder %s30, 1
      %p79 = por %p77, %p78
      %p81 = scmp.ne.s32.totalorder %s64, %s80
      %p82 = scmp.eq.s32.totalorder %s30, 0
      %p83 = por %p81, %p82
      %s85 = sadd.s32 %s84, 1
      %p88 = scmp.eq.s32.totalorder %s24, 1
      %p89 = scmp.ne.s32.totalorder %s84, %s86
      %p90 = scmp.eq.s32.totalorder %s24, 0
      %p91 = por %p89, %p90
      %p92 = scmp.ne.s32.totalorder %s84, %s86
      %p93 = scmp.eq.s32.totalorder %s29, 1
      %p94 = por %p92, %p93
      %p95 = scmp.ne.s32.totalorder %s86, %s87
      %p96 = scmp.eq.s32.totalorder %s29, 0
      %p97 = por %p95, %p96
      %p98 = scmp.ne.s32.totalorder %s86, %s87
      %p99 = scmp.eq.s32.totalorder %s30, 1
      %p100 = por %p98, %p99
      %p102 = scmp.ne.s32.totalorder %s87, %s101
      %p103 = scmp.eq.s32.totalorder %s30, 0
      %p104 = por %p102, %p103
      %s106 = sadd.s32 %s105, 1
      %p109 = scmp.eq.s32.totalorder %s24, 1
      %p110 = scmp.ne.s32.totalorder %s105, %s107
      %p111 = scmp.eq.s32.totalorder %s24, 0
      %p112 = por %p110, %p111
      %p113 = scmp.ne.s32.totalorder %s105, %s107
      %p114 = scmp.eq.s32.totalorder %s29, 1
      %p115 = por %p113, %p114
      %p116 = scmp.ne.s32.totalorder %s107, %s108
      %p117 = scmp.eq.s32.totalorder %s29, 0
      %p118 = por %p116, %p117
      %p119 = scmp.ne.s32.totalorder %s107, %s108
      %p120 = scmp.eq.s32.totalorder %s30, 1
      %p121 = por %p119, %p120
      %p123 = scmp.ne.s32.totalorder %s108, %s122
      %p124 = scmp.eq.s32.totalorder %s30, 0
      %p125 = por %p123, %p124
      %s127 = sadd.s32 %s126, 1
      %p130 = scmp.eq.s32.totalorder %s24, 1
      %p131 = scmp.ne.s32.totalorder %s126, %s128
      %p132 = scmp.eq.s32.totalorder %s24, 0
      %p133 = por %p131, %p132
      %p134 = scmp.ne.s32.totalorder %s126, %s128
      %p135 = scmp.eq.s32.totalorder %s29, 1
      %p136 = por %p134, %p135
      %p137 = scmp.ne.s32.totalorder %s128, %s129
      %p138 = scmp.eq.s32.totalorder %s29, 0
      %p139 = por %p137, %p138
      %p140 = scmp.ne.s32.totalorder %s128, %s129
      %p141 = scmp.eq.s32.totalorder %s30, 1
      %p142 = por %p140, %p141
      %p144 = scmp.ne.s32.totalorder %s129, %s143
      %p145 = scmp.eq.s32.totalorder %s30, 0
      %p146 = por %p144, %p145
      %s148 = sadd.s32 %s147, 1
      %p151 = scmp.eq.s32.totalorder %s24, 1
      %p152 = scmp.ne.s32.totalorder %s147, %s149
      %p153 = scmp.eq.s32.totalorder %s24, 0
      %p154 = por %p152, %p153
      %p155 = scmp.ne.s32.totalorder %s147, %s149
      %p156 = scmp.eq.s32.totalorder %s29, 1
      %p157 = por %p155, %p156
      %p158 = scmp.ne.s32.totalorder %s149, %s150
      %p159 = scmp.eq.s32.totalorder %s29, 0
      %p160 = por %p158, %p159
      %p161 = scmp.ne.s32.totalorder %s149, %s150
      %p162 = scmp.eq.s32.totalorder %s30, 1
      %p163 = por %p161, %p162
      %p165 = scmp.ne.s32.totalorder %s150, %s164
      %p166 = scmp.eq.s32.totalorder %s30, 0
      %p167 = por %p165, %p166
      %s169 = sadd.s32 %s168, 1
      %p172 = scmp.eq.s32.totalorder %s24, 1
      %p173 = scmp.ne.s32.totalorder %s168, %s170
      %p174 = scmp.eq.s32.totalorder %s24, 0
      %p175 = por %p173, %p174
      %p176 = scmp.ne.s32.totalorder %s168, %s170
      %p177 = scmp.eq.s32.totalorder %s29, 1
      %p178 = por %p176, %p177
      %p179 = scmp.ne.s32.totalorder %s170, %s171
      %p180 = scmp.eq.s32.totalorder %s29, 0
      %p181 = por %p179, %p180
      %p182 = scmp.ne.s32.totalorder %s170, %s171
      %p183 = scmp.eq.s32.totalorder %s30, 1
      %p184 = por %p182, %p183
      %p186 = scmp.ne.s32.totalorder %s171, %s185
      %p187 = scmp.eq.s32.totalorder %s30, 0
      %p188 = por %p186, %p187
      %s189 = ssub.s32 %s24, %s31
      %p190 = scmp.eq.s32.totalorder %s189, 0
      %s192 = sadd.s32 %s191, 1
      %s193 = scalar_select %p190, %s191, %s192
      %p196 = pneg %p190
      %p197 = scmp.eq.s32.totalorder %s24, 1
      %p198 = por %p196, %p197
      %p199 = scmp.ne.s32.totalorder %s191, %s194
      %p200 = scmp.eq.s32.totalorder %s24, 0
      %p201 = por %p199, %p200
      %p202 = scmp.ne.s32.totalorder %s191, %s194
      %p203 = scmp.eq.s32.totalorder %s29, 1
      %p204 = por %p202, %p203
      %p205 = scmp.ne.s32.totalorder %s194, %s195
      %p206 = scmp.eq.s32.totalorder %s29, 0
      %p207 = por %p205, %p206
      %p208 = scmp.ne.s32.totalorder %s194, %s195
      %p209 = scmp.eq.s32.totalorder %s30, 1
      %p210 = por %p208, %p209
      %p212 = scmp.ne.s32.totalorder %s195, %s211
      %p213 = scmp.eq.s32.totalorder %s30, 0
      %p214 = por %p212, %p213
      %p215 = scmp.le.s32.totalorder 1, %s24
      %p216 = scmp.lt.s32.totalorder %s24, 3
      %p217 = pnand %p215, %p216
      %p218 = pneg %p217
      // Predicated region
      $region9: #{conv2x_forward.1} parent=5 // pred_check
        _
      $region10: #{conv2x_forward.1} parent=5 // pred_check_branch
        %220 = sbr.rel (%p217) target = $region12
      $region11: #{conv2x_forward.1} parent=5 // pred_region
        %s221 = ssub.s32 %s24, 1
        // Predicated region
        $region13: #{conv2x_forward.1} parent=11 // pred_check
          %p222 = pneg %p97
        $region14: #{conv2x_forward.1} parent=11 // pred_check_branch
          %224 = sbr.rel (%p222) target = $region16
        $region15: #{conv2x_forward.1} parent=11 // pred_region
          %s226 = ssub.s32 288, 288
          %227 = vsyncadd [#allocation7], %s226
          %s228 = sshll.u32 [#allocation8], 4
          %s229 = int_to_ptr.vmem [resolvable:$true] %s228
          %234 = dma.hbm_to_vmem [thread:$0]  %s2, 288, %s229, [#allocation7], 32, 32, 2
        $region16: #{conv2x_forward.1} parent=11 // pred_fallthru
          _
        // Predicated region
        $region17: #{conv2x_forward.1} parent=11 // pred_check
          %p235 = pneg %p118
        $region18: #{conv2x_forward.1} parent=11 // pred_check_branch
          %237 = sbr.rel (%p235) target = $region20
        $region19: #{conv2x_forward.1} parent=11 // pred_region
          %s239 = ssub.s32 16, 16
          %240 = vsyncadd [#allocation10], %s239
          %s242 = sshll.u32 [#allocation9], 4
          %s243 = int_to_ptr.vmem [resolvable:$true] %s242
          %245 = dma.hbm_to_vmem [thread:$0]  %s3, 16, %s243, [#allocation10]
        $region20: #{conv2x_forward.1} parent=11 // pred_fallthru
          _
        // Predicated region
        $region21: #{conv2x_forward.1} parent=11 // pred_check
          %p246 = pneg %p139
        $region22: #{conv2x_forward.1} parent=11 // pred_check_branch
          %248 = sbr.rel (%p246) target = $region24
        $region23: #{conv2x_forward.1} parent=11 // pred_region
          %s250 = ssub.s32 16, 16
          %251 = vsyncadd [#allocation10], %s250
          %s253 = sshll.u32 [#allocation11], 4
          %s254 = int_to_ptr.vmem [resolvable:$true] %s253
          %256 = dma.hbm_to_vmem [thread:$0]  %s4, 16, %s254, [#allocation10]
        $region24: #{conv2x_forward.1} parent=11 // pred_fallthru
          _
        // Predicated region
        $region25: #{conv2x_forward.1} parent=11 // pred_check
          %p257 = pneg %p160
        $region26: #{conv2x_forward.1} parent=11 // pred_check_branch
          %259 = sbr.rel (%p257) target = $region28
        $region27: #{conv2x_forward.1} parent=11 // pred_region
          %s261 = ssub.s32 576, 576
          %262 = vsyncadd [#allocation13], %s261
          %s263 = sshll.u32 [#allocation12], 4
          %s264 = int_to_ptr.vmem [resolvable:$true] %s263
          %269 = dma.hbm_to_vmem [thread:$0]  %s5, 576, %s264, [#allocation13], 64, 64, 4
        $region28: #{conv2x_forward.1} parent=11 // pred_fallthru
          _
        // Predicated region
        $region29: #{conv2x_forward.1} parent=11 // pred_check
          %p270 = pneg %p181
        $region30: #{conv2x_forward.1} parent=11 // pred_check_branch
          %272 = sbr.rel (%p270) target = $region32
        $region31: #{conv2x_forward.1} parent=11 // pred_region
          %s274 = ssub.s32 576, 576
          %275 = vsyncadd [#allocation13], %s274
          %s276 = sshll.u32 [#allocation14], 4
          %s277 = int_to_ptr.vmem [resolvable:$true] %s276
          %282 = dma.hbm_to_vmem [thread:$0]  %s6, 576, %s277, [#allocation13], 64, 64, 4
        $region32: #{conv2x_forward.1} parent=11 // pred_fallthru
          _
      $region12: #{conv2x_forward.1} parent=5 // pred_fallthru
        _
      %p283 = scmp.lt.s32.totalorder %s24, 2
      // Predicated region
      $region33: #{conv2x_forward.1} parent=5 // pred_check
        %p284 = pneg %p283
      $region34: #{conv2x_forward.1} parent=5 // pred_check_branch
        %286 = sbr.rel (%p284) target = $region36
      $region35: #{conv2x_forward.1} parent=5 // pred_region
        // Predicated region
        $region37: #{conv2x_forward.1} parent=35 // pred_check
          %p287 = pneg %p44
        $region38: #{conv2x_forward.1} parent=35 // pred_check_branch
          %289 = sbr.rel (%p287) target = $region40
        $region39: #{conv2x_forward.1} parent=35 // pred_region
          %s290 = sand.u32 %s34, 1
          %s291 = scalar_lea.sflag [#allocation4], %s290
          %s292 = sand.u32 %s34, 1
          %s293 = smul.addr %s292, 192
          %s294 = scalar_lea.vmem [#allocation3], %s293
          %s296 = ssub.s32 3072, 3072
          %297 = vsyncadd %s291, %s296
          %s298 = smul.addr %s24, 48
          %s299 = smul.addr %s298, 64
          %s300 = scalar_lea.hbm %s0, %s299
          %s301 = sshll.u32 %s294, 4
          %s302 = int_to_ptr.vmem [resolvable:$true] %s301
          %307 = dma.hbm_to_vmem [thread:$0]  %s300, 3072, %s302, %s291, 64, 64, 4
        $region40: #{conv2x_forward.1} parent=35 // pred_fallthru
          _
        // Predicated region
        $region41: #{conv2x_forward.1} parent=35 // pred_check
          %p308 = pneg %p70
        $region42: #{conv2x_forward.1} parent=35 // pred_check_branch
          %310 = sbr.rel (%p308) target = $region44
        $region43: #{conv2x_forward.1} parent=35 // pred_region
          %s311 = sand.u32 %s24, 1
          %s312 = scalar_lea.sflag [#allocation7], %s311
          %s313 = sand.u32 %s60, 1
          %s314 = smul.addr %s313, 52
          %s315 = scalar_lea.vmem [#allocation6], %s314
          %s317 = ssub.s32 832, 832
          %318 = vsyncadd %s312, %s317
          %s319 = smul.addr %s24, 13
          %s320 = smul.addr %s319, 64
          %s321 = scalar_lea.hbm %s1, %s320
          %s322 = sshll.u32 %s315, 4
          %s323 = int_to_ptr.vmem [resolvable:$true] %s322
          %328 = dma.hbm_to_vmem [thread:$0]  %s321, 832, %s323, %s312, 64, 64, 4
        $region44: #{conv2x_forward.1} parent=35 // pred_fallthru
          _
      $region36: #{conv2x_forward.1} parent=5 // pred_fallthru
        _
      %p329 = scmp.le.s32.totalorder 1, %s24
      %p330 = scmp.lt.s32.totalorder %s24, 3
      %p331 = pnand %p329, %p330
      %p332 = pneg %p331
      // Predicated region
      $region45: #{conv2x_forward.1} parent=5 // pred_check
        _
      $region46: #{conv2x_forward.1} parent=5 // pred_check_branch
        %334 = sbr.rel (%p331) target = $region48
      $region47: #{conv2x_forward.1} parent=5 // pred_region
        %s335 = ssub.s32 %s24, 1
        %s336 = sand.u32 %s37, 1
        %s337 = scalar_lea.sflag [#allocation4], %s336
        %s338 = sand.u32 %s37, 1
        %s339 = smul.addr %s338, 192
        %s340 = scalar_lea.vmem [#allocation3], %s339
        // Predicated region
        $region49: #{conv2x_forward.1} parent=47 // pred_check
          %p341 = pneg %p50
        $region50: #{conv2x_forward.1} parent=47 // pred_check_branch
          %343 = sbr.rel (%p341) target = $region52
        $region51: #{conv2x_forward.1} parent=47 // pred_region
          %344 = dma.done %s337, 3072
        $region52: #{conv2x_forward.1} parent=47 // pred_fallthru
          _
        %s345 = sand.u32 %s29, 1
        %s346 = scalar_lea.sflag [#allocation7], %s345
        %s347 = sand.u32 %s63, 1
        %s348 = smul.addr %s347, 52
        %s349 = scalar_lea.vmem [#allocation6], %s348
        // Predicated region
        $region53: #{conv2x_forward.1} parent=47 // pred_check
          %p350 = pneg %p76
        $region54: #{conv2x_forward.1} parent=47 // pred_check_branch
          %352 = sbr.rel (%p350) target = $region56
        $region55: #{conv2x_forward.1} parent=47 // pred_region
          %353 = dma.done %s346, 832
        $region56: #{conv2x_forward.1} parent=47 // pred_fallthru
          _
        // Predicated region
        $region57: #{conv2x_forward.1} parent=47 // pred_check
          %p354 = pneg %p97
        $region58: #{conv2x_forward.1} parent=47 // pred_check_branch
          %356 = sbr.rel (%p354) target = $region60
        $region59: #{conv2x_forward.1} parent=47 // pred_region
          %357 = dma.done [#allocation7], 288
        $region60: #{conv2x_forward.1} parent=47 // pred_fallthru
          _
        // Predicated region
        $region61: #{conv2x_forward.1} parent=47 // pred_check
          %p358 = pneg %p118
        $region62: #{conv2x_forward.1} parent=47 // pred_check_branch
          %360 = sbr.rel (%p358) target = $region64
        $region63: #{conv2x_forward.1} parent=47 // pred_region
          %361 = dma.done [#allocation10], 16
        $region64: #{conv2x_forward.1} parent=47 // pred_fallthru
          _
        // Predicated region
        $region65: #{conv2x_forward.1} parent=47 // pred_check
          %p362 = pneg %p139
        $region66: #{conv2x_forward.1} parent=47 // pred_check_branch
          %364 = sbr.rel (%p362) target = $region68
        $region67: #{conv2x_forward.1} parent=47 // pred_region
          %365 = dma.done [#allocation10], 16
        $region68: #{conv2x_forward.1} parent=47 // pred_fallthru
          _
        // Predicated region
        $region69: #{conv2x_forward.1} parent=47 // pred_check
          %p366 = pneg %p160
        $region70: #{conv2x_forward.1} parent=47 // pred_check_branch
          %368 = sbr.rel (%p366) target = $region72
        $region71: #{conv2x_forward.1} parent=47 // pred_region
          %369 = dma.done [#allocation13], 576
        $region72: #{conv2x_forward.1} parent=47 // pred_fallthru
          _
        // Predicated region
        $region73: #{conv2x_forward.1} parent=47 // pred_check
          %p370 = pneg %p181
        $region74: #{conv2x_forward.1} parent=47 // pred_check_branch
          %372 = sbr.rel (%p370) target = $region76
        $region75: #{conv2x_forward.1} parent=47 // pred_region
          %373 = dma.done [#allocation13], 576
        $region76: #{conv2x_forward.1} parent=47 // pred_fallthru
          _
        %s374 = sand.u32 %s37, 1
        %s375 = scalar_lea.sflag [#allocation4], %s374
        %s376 = sand.u32 %s37, 1
        %s377 = smul.addr %s376, 192
        %s378 = scalar_lea.vmem [#allocation3], %s377
        %p379 = pneg %p50
        %p380 = pneg %p47
        %s381 = sand.u32 %s29, 1
        %s382 = scalar_lea.sflag [#allocation7], %s381
        %s383 = sand.u32 %s63, 1
        %s384 = smul.addr %s383, 52
        %s385 = scalar_lea.vmem [#allocation6], %s384
        %p386 = pneg %p76
        %p387 = pneg %p73
        %p388 = pneg %p97
        %p389 = pneg %p94
        %p390 = pneg %p118
        %p391 = pneg %p115
        %p392 = pneg %p139
        %p393 = pneg %p136
        %p394 = pneg %p160
        %p395 = pneg %p157
        %p396 = pneg %p181
        %p397 = pneg %p178
        %p398 = pneg %p207
        %p399 = pneg %p204
        %s400 = sand.u32 %s194, 1
        %s401 = scalar_lea.sflag [#allocation5], %s400
        %s402 = sand.u32 %s194, 1
        %s403 = smul.addr %s402, 40
        %s404 = scalar_lea.vmem [#allocation15], %s403
        %vm406 = vcmask 64512
        %407 = vst.msk [vmem:[#allocation2] sm:$0xff] %vm406, 0
        %408 = vst.msk [vmem:[#allocation2 + $0x30] sm:$0xff] %vm406, 0
        %v409 = vld [vmem:[#allocation9] sm:$0x1]
        %v410 = vld [vmem:[#allocation11] sm:$0x1]
        %v411 = vld [vmem:[%s340] sm:$0xf]
        %v412 = vld [vmem:[%s340 + $0x4] sm:$0xf]
        %v413 = vld [vmem:[%s340 + $0x8] sm:$0xf]
        %v414 = vld [vmem:[%s340 + $0xc] sm:$0xf]
        %v415 = vld [vmem:[%s340 + $0x10] sm:$0xf]
        %v416 = vld [vmem:[%s340 + $0x14] sm:$0xf]
        %v417 = vld [vmem:[%s340 + $0x18] sm:$0xf]
        %v418 = vld [vmem:[%s340 + $0x1c] sm:$0xf]
        %v419 = vld [vmem:[%s340 + $0x20] sm:$0xf]
        %v420 = vld [vmem:[%s340 + $0x24] sm:$0xf]
        %v421 = vld [vmem:[#allocation8] sm:$0x3]
        %s422 = scalar_lea.vmem %s340, 48 [#allocation3]
        %v423 = vld [vmem:[%s422] sm:$0xf]
        %v424 = vld [vmem:[%s422 + $0x4] sm:$0xf]
        %v425 = vld [vmem:[%s422 + $0x8] sm:$0xf]
        %v426 = vld [vmem:[%s422 + $0xc] sm:$0xf]
        %v427 = vld [vmem:[%s422 + $0x10] sm:$0xf]
        %v428 = vld [vmem:[%s422 + $0x14] sm:$0xf]
        %v429 = vld [vmem:[%s422 + $0x18] sm:$0xf]
        %v430 = vld [vmem:[%s422 + $0x1c] sm:$0xf]
        %v431 = vld [vmem:[%s422 + $0x20] sm:$0xf]
        %v432 = vld [vmem:[%s422 + $0x24] sm:$0xf]
        %s433 = scalar_lea.vmem [#allocation8], 2
        %v434 = vld [vmem:[%s433] sm:$0x3]
        %v445 = vunpack.c.l.b16 %v423
        %v446 = vunpack.c.l.b16 %v424
        %v447 = vunpack.c.l.b16 %v425
        %v448 = vunpack.c.l.b16 %v426
        %v449 = vunpack.c.l.b16 %v427
        %v450 = vunpack.c.l.b16 %v428
        %v451 = vunpack.c.l.b16 %v429
        %v452 = vunpack.c.l.b16 %v430
        %v453 = vunpack.c.l.b16 %v431
        %v454 = vunpack.c.l.b16 %v432
        %v455 = vpack.c.b16 %v446, %v445
        %v456 = vpack.c.b16 %v448, %v447
        %v457 = vpack.c.b16 %v450, %v449
        %v458 = vpack.c.b16 %v452, %v451
        %v459 = vpack.c.b16 %v454, %v453
        %vm460 = vcmask 31744
        %v462 = vsel %vm460, %v455, 0
        %v465 = vsel %vm460, %v456, 0
        %v468 = vsel %vm460, %v457, 0
        %v471 = vsel %vm460, %v458, 0
        %v474 = vsel %vm460, %v459, 0
        %vm476 = vcmask 1041408
        %v478 = vsel %vm476, %v434, 0
        %480 = vmatprep.subr.bf16.mxu0 0
        %481 = vmatpush1.bf16.msra.mxu0 %v478
        %482 = vmatprep.subr.bf16.mxu0 0
        %483 = vmatpush1.bf16.msra.mxu0 0
        %484 = vmatprep.subr.bf16.mxu0 0
        %485 = vmatpush1.bf16.msra.mxu0 0
        %486 = vmatprep.subr.bf16.mxu0 0
        %487 = vmatpush1.bf16.msra.mxu0 0
        %488 = vmatprep.subr.bf16.mxu0 0
        %489 = vmatpush1.bf16.msra.mxu0 0
        %490 = vmatprep.subr.bf16.mxu0 0
        %491 = vmatpush1.bf16.msra.mxu0 0
        %492 = vmatprep.subr.bf16.mxu0 0
        %493 = vmatpush1.bf16.msra.mxu0 0
        %494 = vmatprep.subr.bf16.mxu0 0
        %495 = vmatpush1.bf16.msra.mxu0 0
        %496 = vmatprep.subr.bf16.mxu0 0
        %497 = vmatpush1.bf16.msra.mxu0 0
        %498 = vmatprep.subr.bf16.mxu0 0
        %499 = vmatpush1.bf16.msra.mxu0 0
        %500 = vmatprep.subr.bf16.mxu0 0
        %501 = vmatpush1.bf16.msra.mxu0 0
        %502 = vmatprep.subr.bf16.mxu0 0
        %503 = vmatpush1.bf16.msra.mxu0 0
        %504 = vmatprep.subr.bf16.mxu0 0
        %505 = vmatpush1.bf16.msra.mxu0 0
        %506 = vmatprep.subr.bf16.mxu0 0
        %507 = vmatpush1.bf16.msra.mxu0 0
        %508 = vmatprep.subr.bf16.mxu0 0
        %509 = vmatpush1.bf16.msra.mxu0 0
        %510 = vmatprep.subr.bf16.mxu0 0
        %511 = vmatpush1.bf16.msra.mxu0 0
        %512 = vmatprep.mubr.bf16.mxu0 0
        %513 = vmatmul.mubr.bf16.gmra.mrb[0].mxu0 %v462
        %v514 = vpop.f32.mrb[0].mxu0
        %v515 = vadd.f32 0.0, %v514
        %v516 = vpop.f32.mrb[0].mxu0
        %v517 = vpop.f32.mrb[0].mxu0
        %v518 = vadd.f32 0.0, %v517
        %v519 = vpop.f32.mrb[0].mxu0
        %520 = vmatprep.mubr.bf16.mxu0 0
        %521 = vmatmul.mubr.bf16.gmra.mrb[0].mxu0 %v465
        %v522 = vpop.f32.mrb[0].mxu0
        %v523 = vadd.f32 0.0, %v522
        %v524 = vpop.f32.mrb[0].mxu0
        %v525 = vpop.f32.mrb[0].mxu0
        %v526 = vadd.f32 0.0, %v525
        %v527 = vpop.f32.mrb[0].mxu0
        %528 = vmatprep.mubr.bf16.mxu0 0
        %529 = vmatmul.mubr.bf16.gmra.mrb[0].mxu0 %v468
        %v530 = vpop.f32.mrb[0].mxu0
        %v531 = vadd.f32 0.0, %v530
        %v532 = vpop.f32.mrb[0].mxu0
        %v533 = vpop.f32.mrb[0].mxu0
        %v534 = vadd.f32 0.0, %v533
        %v535 = vpop.f32.mrb[0].mxu0
        %536 = vmatprep.mubr.bf16.mxu0 0
        %537 = vmatmul.mubr.bf16.gmra.mrb[0].mxu0 %v471
        %v538 = vpop.f32.mrb[0].mxu0
        %v539 = vadd.f32 0.0, %v538
        %v540 = vpop.f32.mrb[0].mxu0
        %v541 = vpop.f32.mrb[0].mxu0
        %v542 = vadd.f32 0.0, %v541
        %v543 = vpop.f32.mrb[0].mxu0
        %544 = vmatprep.mubr.bf16.mxu0 0
        %545 = vmatmul.mubr.bf16.gmra.mrb[0].mxu0 %v474
        %v546 = vpop.f32.mrb[0].mxu0
        %v547 = vadd.f32 0.0, %v546
        %v548 = vpop.f32.mrb[0].mxu0
        %v549 = vpop.f32.mrb[0].mxu0
        %v550 = vadd.f32 0.0, %v549
        %v551 = vpop.f32.mrb[0].mxu0
        %552 = vdwg.mxu0
        %v563 = vunpack.c.l.b16 %v411
        %v564 = vunpack.c.l.b16 %v412
        %v565 = vunpack.c.l.b16 %v413
        %v566 = vunpack.c.l.b16 %v414
        %v567 = vunpack.c.l.b16 %v415
        %v568 = vunpack.c.l.b16 %v416
        %v569 = vunpack.c.l.b16 %v417
        %v570 = vunpack.c.l.b16 %v418
        %v571 = vunpack.c.l.b16 %v419
        %v572 = vunpack.c.l.b16 %v420
        %v573 = vpack.c.b16 %v564, %v563
        %v574 = vpack.c.b16 %v566, %v565
        %v575 = vpack.c.b16 %v568, %v567
        %v576 = vpack.c.b16 %v570, %v569
        %v577 = vpack.c.b16 %v572, %v571
        %v579 = vsel %vm460, %v573, 0
        %v582 = vsel %vm460, %v574, 0
        %v585 = vsel %vm460, %v575, 0
        %v588 = vsel %vm460, %v576, 0
        %v591 = vsel %vm460, %v577, 0
        %v594 = vsel %vm476, %v421, 0
        %596 = vmatprep.subr.bf16.mxu0 0
        %597 = vmatpush1.bf16.msra.mxu0 %v594
        %598 = vmatprep.subr.bf16.mxu0 0
        %599 = vmatpush1.bf16.msra.mxu0 0
        %600 = vmatprep.subr.bf16.mxu0 0
        %601 = vmatpush1.bf16.msra.mxu0 0
        %602 = vmatprep.subr.bf16.mxu0 0
        %603 = vmatpush1.bf16.msra.mxu0 0
        %604 = vmatprep.subr.bf16.mxu0 0
        %605 = vmatpush1.bf16.msra.mxu0 0
        %606 = vmatprep.subr.bf16.mxu0 0
        %607 = vmatpush1.bf16.msra.mxu0 0
        %608 = vmatprep.subr.bf16.mxu0 0
        %609 = vmatpush1.bf16.msra.mxu0 0
        %610 = vmatprep.subr.bf16.mxu0 0
        %611 = vmatpush1.bf16.msra.mxu0 0
        %612 = vmatprep.subr.bf16.mxu0 0
        %613 = vmatpush1.bf16.msra.mxu0 0
        %614 = vmatprep.subr.bf16.mxu0 0
        %615 = vmatpush1.bf16.msra.mxu0 0
        %616 = vmatprep.subr.bf16.mxu0 0
        %617 = vmatpush1.bf16.msra.mxu0 0
        %618 = vmatprep.subr.bf16.mxu0 0
        %619 = vmatpush1.bf16.msra.mxu0 0
        %620 = vmatprep.subr.bf16.mxu0 0
        %621 = vmatpush1.bf16.msra.mxu0 0
        %622 = vmatprep.subr.bf16.mxu0 0
        %623 = vmatpush1.bf16.msra.mxu0 0
        %624 = vmatprep.subr.bf16.mxu0 0
        %625 = vmatpush1.bf16.msra.mxu0 0
        %626 = vmatprep.subr.bf16.mxu0 0
        %627 = vmatpush1.bf16.msra.mxu0 0
        %628 = vmatprep.mubr.bf16.mxu0 0
        %629 = vmatmul.mubr.bf16.gmra.mrb[0].mxu0 %v579
        %v630 = vpop.f32.mrb[0].mxu0
        %v631 = vadd.f32 %v515, %v630
        %v632 = vpop.f32.mrb[0].mxu0
        %v633 = vpop.f32.mrb[0].mxu0
        %v634 = vadd.f32 %v518, %v633
        %v635 = vpop.f32.mrb[0].mxu0
        %636 = vmatprep.mubr.bf16.mxu0 0
        %637 = vmatmul.mubr.bf16.gmra.mrb[0].mxu0 %v582
        %v638 = vpop.f32.mrb[0].mxu0
        %v639 = vadd.f32 %v523, %v638
        %v640 = vpop.f32.mrb[0].mxu0
        %v641 = vpop.f32.mrb[0].mxu0
        %v642 = vadd.f32 %v526, %v641
        %v643 = vpop.f32.mrb[0].mxu0
        %644 = vmatprep.mubr.bf16.mxu0 0
        %645 = vmatmul.mubr.bf16.gmra.mrb[0].mxu0 %v585
        %v646 = vpop.f32.mrb[0].mxu0
        %v647 = vadd.f32 %v531, %v646
        %v648 = vpop.f32.mrb[0].mxu0
        %v649 = vpop.f32.mrb[0].mxu0
        %v650 = vadd.f32 %v534, %v649
        %v651 = vpop.f32.mrb[0].mxu0
        %652 = vmatprep.mubr.bf16.mxu0 0
        %653 = vmatmul.mubr.bf16.gmra.mrb[0].mxu0 %v588
        %v654 = vpop.f32.mrb[0].mxu0
        %v655 = vadd.f32 %v539, %v654
        %v656 = vpop.f32.mrb[0].mxu0
        %v657 = vpop.f32.mrb[0].mxu0
        %v658 = vadd.f32 %v542, %v657
        %v659 = vpop.f32.mrb[0].mxu0
        %660 = vmatprep.mubr.bf16.mxu0 0
        %661 = vmatmul.mubr.bf16.gmra.mrb[0].mxu0 %v591
        %v662 = vpop.f32.mrb[0].mxu0
        %v663 = vadd.f32 %v547, %v662
        %v664 = vpop.f32.mrb[0].mxu0
        %v665 = vpop.f32.mrb[0].mxu0
        %v666 = vadd.f32 %v550, %v665
        %v667 = vpop.f32.mrb[0].mxu0
        %668 = vdwg.mxu0
        %v669 = vld [vmem:[%s340] sm:$0xf]
        %v670 = vld [vmem:[%s340 + $0x4] sm:$0xf]
        %v671 = vld [vmem:[%s340 + $0x8] sm:$0xf]
        %v672 = vld [vmem:[%s340 + $0xc] sm:$0xf]
        %v673 = vld [vmem:[%s340 + $0x10] sm:$0xf]
        %v674 = vld [vmem:[%s340 + $0x14] sm:$0xf]
        %v675 = vld [vmem:[%s340 + $0x18] sm:$0xf]
        %v676 = vld [vmem:[%s340 + $0x1c] sm:$0xf]
        %v677 = vld [vmem:[%s340 + $0x20] sm:$0xf]
        %v678 = vld [vmem:[%s340 + $0x24] sm:$0xf]
        %v679 = vld [vmem:[%s340 + $0x28] sm:$0x1]
        %s680 = scalar_lea.vmem [#allocation8], 4
        %v681 = vld [vmem:[%s680] sm:$0x3]
        %v693 = vunpack.c.l.b16 %v669
        %v694 = vunpack.c.l.b16 %v670
        %v695 = vunpack.c.l.b16 %v671
        %v696 = vunpack.c.l.b16 %v672
        %v697 = vunpack.c.l.b16 %v673
        %v698 = vunpack.c.l.b16 %v674
        %v699 = vunpack.c.l.b16 %v675
        %v700 = vunpack.c.l.b16 %v676
        %v701 = vunpack.c.l.b16 %v677
        %v702 = vunpack.c.l.b16 %v678
        %v703 = vunpack.c.l.b16 %v679
        %v704 = vpack.c.b16 %v694, %v693
        %v705 = vpack.c.b16 %v696, %v695
        %v706 = vpack.c.b16 %v698, %v697
        %v707 = vpack.c.b16 %v700, %v699
        %v708 = vpack.c.b16 %v702, %v701
        %v709 = vpack.c.b16 %v703, %v703
        %vm710 = vsmask.f32 7424
        %v712 = vshrl.u32 %v704, 16
        %v714 = vshll.u32 %v704, 16
        %v716 = vrot.slane %v714, 1
        %v717 = vor.u32 %v712, %v716
        %v719 = vshll.u32 %v705, 16
        %v721 = vrot.slane %v719, 1
        %v722 = vsel %vm710, %v717, %v721
        %v723 = vshrl.u32 %v705, 16
        %v725 = vor.u32 %v723, %v721
        %v727 = vshll.u32 %v706, 16
        %v729 = vrot.slane %v727, 1
        %v730 = vsel %vm710, %v725, %v729
        %v731 = vshrl.u32 %v706, 16
        %v733 = vor.u32 %v731, %v729
        %v735 = vshll.u32 %v707, 16
        %v737 = vrot.slane %v735, 1
        %v738 = vsel %vm710, %v733, %v737
        %v739 = vshrl.u32 %v707, 16
        %v741 = vor.u32 %v739, %v737
        %v743 = vshll.u32 %v708, 16
        %v745 = vrot.slane %v743, 1
        %v746 = vsel %vm710, %v741, %v745
        %v747 = vshrl.u32 %v708, 16
        %v749 = vor.u32 %v747, %v745
        %v751 = vshll.u32 %v709, 16
        %v753 = vrot.slane %v751, 1
        %v754 = vsel %vm710, %v749, %v753
        %v756 = vsel %vm460, %v722, 0
        %v759 = vsel %vm460, %v730, 0
        %v762 = vsel %vm460, %v738, 0
        %v765 = vsel %vm460, %v746, 0
        %v768 = vsel %vm460, %v754, 0
        %v771 = vsel %vm476, %v681, 0
        %773 = vmatprep.subr.bf16.mxu0 0
        %774 = vmatpush1.bf16.msra.mxu0 %v771
        %775 = vmatprep.subr.bf16.mxu0 0
        %776 = vmatpush1.bf16.msra.mxu0 0
        %777 = vmatprep.subr.bf16.mxu0 0
        %778 = vmatpush1.bf16.msra.mxu0 0
        %779 = vmatprep.subr.bf16.mxu0 0
        %780 = vmatpush1.bf16.msra.mxu0 0
        %781 = vmatprep.subr.bf16.mxu0 0
        %782 = vmatpush1.bf16.msra.mxu0 0
        %783 = vmatprep.subr.bf16.mxu0 0
        %784 = vmatpush1.bf16.msra.mxu0 0
        %785 = vmatprep.subr.bf16.mxu0 0
        %786 = vmatpush1.bf16.msra.mxu0 0
        %787 = vmatprep.subr.bf16.mxu0 0
        %788 = vmatpush1.bf16.msra.mxu0 0
        %789 = vmatprep.subr.bf16.mxu0 0
        %790 = vmatpush1.bf16.msra.mxu0 0
        %791 = vmatprep.subr.bf16.mxu0 0
        %792 = vmatpush1.bf16.msra.mxu0 0
        %793 = vmatprep.subr.bf16.mxu0 0
        %794 = vmatpush1.bf16.msra.mxu0 0
        %795 = vmatprep.subr.bf16.mxu0 0
        %796 = vmatpush1.bf16.msra.mxu0 0
        %797 = vmatprep.subr.bf16.mxu0 0
        %798 = vmatpush1.bf16.msra.mxu0 0
        %799 = vmatprep.subr.bf16.mxu0 0
        %800 = vmatpush1.bf16.msra.mxu0 0
        %801 = vmatprep.subr.bf16.mxu0 0
        %802 = vmatpush1.bf16.msra.mxu0 0
        %803 = vmatprep.subr.bf16.mxu0 0
        %804 = vmatpush1.bf16.msra.mxu0 0
        %805 = vmatprep.mubr.bf16.mxu0 0
        %806 = vmatmul.mubr.bf16.gmra.mrb[0].mxu0 %v756
        %v807 = vpop.f32.mrb[0].mxu0
        %v808 = vadd.f32 0.0, %v807
        %v809 = vpop.f32.mrb[0].mxu0
        %v810 = vpop.f32.mrb[0].mxu0
        %v811 = vadd.f32 0.0, %v810
        %v812 = vpop.f32.mrb[0].mxu0
        %813 = vmatprep.mubr.bf16.mxu0 0
        %814 = vmatmul.mubr.bf16.gmra.mrb[0].mxu0 %v759
        %v815 = vpop.f32.mrb[0].mxu0
        %v816 = vadd.f32 0.0, %v815
        %v817 = vpop.f32.mrb[0].mxu0
        %v818 = vpop.f32.mrb[0].mxu0
        %v819 = vadd.f32 0.0, %v818
        %v820 = vpop.f32.mrb[0].mxu0
        %821 = vmatprep.mubr.bf16.mxu0 0
        %822 = vmatmul.mubr.bf16.gmra.mrb[0].mxu0 %v762
        %v823 = vpop.f32.mrb[0].mxu0
        %v824 = vadd.f32 0.0, %v823
        %v825 = vpop.f32.mrb[0].mxu0
        %v826 = vpop.f32.mrb[0].mxu0
        %v827 = vadd.f32 0.0, %v826
        %v828 = vpop.f32.mrb[0].mxu0
        %829 = vmatprep.mubr.bf16.mxu0 0
        %830 = vmatmul.mubr.bf16.gmra.mrb[0].mxu0 %v765
        %v831 = vpop.f32.mrb[0].mxu0
        %v832 = vadd.f32 0.0, %v831
        %v833 = vpop.f32.mrb[0].mxu0
        %v834 = vpop.f32.mrb[0].mxu0
        %v835 = vadd.f32 0.0, %v834
        %v836 = vpop.f32.mrb[0].mxu0
        %837 = vmatprep.mubr.bf16.mxu0 0
        %838 = vmatmul.mubr.bf16.gmra.mrb[0].mxu0 %v768
        %v839 = vpop.f32.mrb[0].mxu0
        %v840 = vadd.f32 0.0, %v839
        %v841 = vpop.f32.mrb[0].mxu0
        %v842 = vpop.f32.mrb[0].mxu0
        %v843 = vadd.f32 0.0, %v842
        %v844 = vpop.f32.mrb[0].mxu0
        %845 = vdwg.mxu0
        %v846 = vadd.f32 %v631, %v808
        %v847 = vadd.f32 %v634, %v811
        %v848 = vadd.f32 %v639, %v816
        %v849 = vadd.f32 %v642, %v819
        %v850 = vadd.f32 %v647, %v824
        %v851 = vadd.f32 %v650, %v827
        %v852 = vadd.f32 %v655, %v832
        %v853 = vadd.f32 %v658, %v835
        %v854 = vadd.f32 %v663, %v840
        %v855 = vadd.f32 %v666, %v843
        %s856 = scalar_lea.vmem %s340, 96 [#allocation3]
        %v857 = vld [vmem:[%s856] sm:$0xf]
        %v858 = vld [vmem:[%s856 + $0x4] sm:$0xf]
        %v859 = vld [vmem:[%s856 + $0x8] sm:$0xf]
        %v860 = vld [vmem:[%s856 + $0xc] sm:$0xf]
        %v861 = vld [vmem:[%s856 + $0x10] sm:$0xf]
        %v862 = vld [vmem:[%s856 + $0x14] sm:$0xf]
        %v863 = vld [vmem:[%s856 + $0x18] sm:$0xf]
        %v864 = vld [vmem:[%s856 + $0x1c] sm:$0xf]
        %v865 = vld [vmem:[%s856 + $0x20] sm:$0xf]
        %v866 = vld [vmem:[%s856 + $0x24] sm:$0xf]
        %s867 = scalar_lea.vmem [#allocation8], 6
        %v868 = vld [vmem:[%s867] sm:$0x3]
        %v879 = vunpack.c.l.b16 %v857
        %v880 = vunpack.c.l.b16 %v858
        %v881 = vunpack.c.l.b16 %v859
        %v882 = vunpack.c.l.b16 %v860
        %v883 = vunpack.c.l.b16 %v861
        %v884 = vunpack.c.l.b16 %v862
        %v885 = vunpack.c.l.b16 %v863
        %v886 = vunpack.c.l.b16 %v864
        %v887 = vunpack.c.l.b16 %v865
        %v888 = vunpack.c.l.b16 %v866
        %v889 = vpack.c.b16 %v880, %v879
        %v890 = vpack.c.b16 %v882, %v881
        %v891 = vpack.c.b16 %v884, %v883
        %v892 = vpack.c.b16 %v886, %v885
        %v893 = vpack.c.b16 %v888, %v887
        %v895 = vsel %vm460, %v889, 0
        %v898 = vsel %vm460, %v890, 0
        %v901 = vsel %vm460, %v891, 0
        %v904 = vsel %vm460, %v892, 0
        %v907 = vsel %vm460, %v893, 0
        %v910 = vsel %vm476, %v868, 0
        %912 = vmatprep.subr.bf16.mxu0 0
        %913 = vmatpush1.bf16.msra.mxu0 %v910
        %914 = vmatprep.subr.bf16.mxu0 0
        %915 = vmatpush1.bf16.msra.mxu0 0
        %916 = vmatprep.subr.bf16.mxu0 0
        %917 = vmatpush1.bf16.msra.mxu0 0
        %918 = vmatprep.subr.bf16.mxu0 0
        %919 = vmatpush1.bf16.msra.mxu0 0
        %920 = vmatprep.subr.bf16.mxu0 0
        %921 = vmatpush1.bf16.msra.mxu0 0
        %922 = vmatprep.subr.bf16.mxu0 0
        %923 = vmatpush1.bf16.msra.mxu0 0
        %924 = vmatprep.subr.bf16.mxu0 0
        %925 = vmatpush1.bf16.msra.mxu0 0
        %926 = vmatprep.subr.bf16.mxu0 0
        %927 = vmatpush1.bf16.msra.mxu0 0
        %928 = vmatprep.subr.bf16.mxu0 0
        %929 = vmatpush1.bf16.msra.mxu0 0
        %930 = vmatprep.subr.bf16.mxu0 0
        %931 = vmatpush1.bf16.msra.mxu0 0
        %932 = vmatprep.subr.bf16.mxu0 0
        %933 = vmatpush1.bf16.msra.mxu0 0
        %934 = vmatprep.subr.bf16.mxu0 0
        %935 = vmatpush1.bf16.msra.mxu0 0
        %936 = vmatprep.subr.bf16.mxu0 0
        %937 = vmatpush1.bf16.msra.mxu0 0
        %938 = vmatprep.subr.bf16.mxu0 0
        %939 = vmatpush1.bf16.msra.mxu0 0
        %940 = vmatprep.subr.bf16.mxu0 0
        %941 = vmatpush1.bf16.msra.mxu0 0
        %942 = vmatprep.subr.bf16.mxu0 0
        %943 = vmatpush1.bf16.msra.mxu0 0
        %944 = vmatprep.mubr.bf16.mxu0 0
        %945 = vmatmul.mubr.bf16.gmra.mrb[0].mxu0 %v895
        %v946 = vpop.f32.mrb[0].mxu0
        %v947 = vadd.f32 0.0, %v946
        %v948 = vpop.f32.mrb[0].mxu0
        %v949 = vpop.f32.mrb[0].mxu0
        %v950 = vadd.f32 0.0, %v949
        %v951 = vpop.f32.mrb[0].mxu0
        %952 = vmatprep.mubr.bf16.mxu0 0
        %953 = vmatmul.mubr.bf16.gmra.mrb[0].mxu0 %v898
        %v954 = vpop.f32.mrb[0].mxu0
        %v955 = vadd.f32 0.0, %v954
        %v956 = vpop.f32.mrb[0].mxu0
        %v957 = vpop.f32.mrb[0].mxu0
        %v958 = vadd.f32 0.0, %v957
        %v959 = vpop.f32.mrb[0].mxu0
        %960 = vmatprep.mubr.bf16.mxu0 0
        %961 = vmatmul.mubr.bf16.gmra.mrb[0].mxu0 %v901
        %v962 = vpop.f32.mrb[0].mxu0
        %v963 = vadd.f32 0.0, %v962
        %v964 = vpop.f32.mrb[0].mxu0
        %v965 = vpop.f32.mrb[0].mxu0
        %v966 = vadd.f32 0.0, %v965
        %v967 = vpop.f32.mrb[0].mxu0
        %968 = vmatprep.mubr.bf16.mxu0 0
        %969 = vmatmul.mubr.bf16.gmra.mrb[0].mxu0 %v904
        %v970 = vpop.f32.mrb[0].mxu0
        %v971 = vadd.f32 0.0, %v970
        %v972 = vpop.f32.mrb[0].mxu0
        %v973 = vpop.f32.mrb[0].mxu0
        %v974 = vadd.f32 0.0, %v973
        %v975 = vpop.f32.mrb[0].mxu0
        %976 = vmatprep.mubr.bf16.mxu0 0
        %977 = vmatmul.mubr.bf16.gmra.mrb[0].mxu0 %v907
        %v978 = vpop.f32.mrb[0].mxu0
        %v979 = vadd.f32 0.0, %v978
        %v980 = vpop.f32.mrb[0].mxu0
        %v981 = vpop.f32.mrb[0].mxu0
        %v982 = vadd.f32 0.0, %v981
        %v983 = vpop.f32.mrb[0].mxu0
        %984 = vdwg.mxu0
        %v985 = vadd.f32 %v846, %v947
        %v986 = vadd.f32 %v847, %v950
        %v987 = vadd.f32 %v848, %v955
        %v988 = vadd.f32 %v849, %v958
        %v989 = vadd.f32 %v850, %v963
        %v990 = vadd.f32 %v851, %v966
        %v991 = vadd.f32 %v852, %v971
        %v992 = vadd.f32 %v853, %v974
        %v993 = vadd.f32 %v854, %v979
        %v994 = vadd.f32 %v855, %v982
        %s995 = scalar_lea.vmem %s340, 144 [#allocation3]
        %v996 = vld [vmem:[%s995] sm:$0xf]
        %v997 = vld [vmem:[%s995 + $0x4] sm:$0xf]
        %v998 = vld [vmem:[%s995 + $0x8] sm:$0xf]
        %v999 = vld [vmem:[%s995 + $0xc] sm:$0xf]
        %v1000 = vld [vmem:[%s995 + $0x10] sm:$0xf]
        %v1001 = vld [vmem:[%s995 + $0x14] sm:$0xf]
        %v1002 = vld [vmem:[%s995 + $0x18] sm:$0xf]
        %v1003 = vld [vmem:[%s995 + $0x1c] sm:$0xf]
        %v1004 = vld [vmem:[%s995 + $0x20] sm:$0xf]
        %v1005 = vld [vmem:[%s995 + $0x24] sm:$0xf]
        %s1006 = scalar_lea.vmem [#allocation8], 8
        %v1007 = vld [vmem:[%s1006] sm:$0x3]
        %v1018 = vunpack.c.l.b16 %v996
        %v1019 = vunpack.c.l.b16 %v997
        %v1020 = vunpack.c.l.b16 %v998
        %v1021 = vunpack.c.l.b16 %v999
        %v1022 = vunpack.c.l.b16 %v1000
        %v1023 = vunpack.c.l.b16 %v1001
        %v1024 = vunpack.c.l.b16 %v1002
        %v1025 = vunpack.c.l.b16 %v1003
        %v1026 = vunpack.c.l.b16 %v1004
        %v1027 = vunpack.c.l.b16 %v1005
        %v1028 = vpack.c.b16 %v1019, %v1018
        %v1029 = vpack.c.b16 %v1021, %v1020
        %v1030 = vpack.c.b16 %v1023, %v1022
        %v1031 = vpack.c.b16 %v1025, %v1024
        %v1032 = vpack.c.b16 %v1027, %v1026
        %v1034 = vsel %vm460, %v1028, 0
        %v1037 = vsel %vm460, %v1029, 0
        %v1040 = vsel %vm460, %v1030, 0
        %v1043 = vsel %vm460, %v1031, 0
        %v1046 = vsel %vm460, %v1032, 0
        %v1049 = vsel %vm476, %v1007, 0
        %1051 = vmatprep.subr.bf16.mxu0 0
        %1052 = vmatpush1.bf16.msra.mxu0 %v1049
        %1053 = vmatprep.subr.bf16.mxu0 0
        %1054 = vmatpush1.bf16.msra.mxu0 0
        %1055 = vmatprep.subr.bf16.mxu0 0
        %1056 = vmatpush1.bf16.msra.mxu0 0
        %1057 = vmatprep.subr.bf16.mxu0 0
        %1058 = vmatpush1.bf16.msra.mxu0 0
        %1059 = vmatprep.subr.bf16.mxu0 0
        %1060 = vmatpush1.bf16.msra.mxu0 0
        %1061 = vmatprep.subr.bf16.mxu0 0
        %1062 = vmatpush1.bf16.msra.mxu0 0
        %1063 = vmatprep.subr.bf16.mxu0 0
        %1064 = vmatpush1.bf16.msra.mxu0 0
        %1065 = vmatprep.subr.bf16.mxu0 0
        %1066 = vmatpush1.bf16.msra.mxu0 0
        %1067 = vmatprep.subr.bf16.mxu0 0
        %1068 = vmatpush1.bf16.msra.mxu0 0
        %1069 = vmatprep.subr.bf16.mxu0 0
        %1070 = vmatpush1.bf16.msra.mxu0 0
        %1071 = vmatprep.subr.bf16.mxu0 0
        %1072 = vmatpush1.bf16.msra.mxu0 0
        %1073 = vmatprep.subr.bf16.mxu0 0
        %1074 = vmatpush1.bf16.msra.mxu0 0
        %1075 = vmatprep.subr.bf16.mxu0 0
        %1076 = vmatpush1.bf16.msra.mxu0 0
        %1077 = vmatprep.subr.bf16.mxu0 0
        %1078 = vmatpush1.bf16.msra.mxu0 0
        %1079 = vmatprep.subr.bf16.mxu0 0
        %1080 = vmatpush1.bf16.msra.mxu0 0
        %1081 = vmatprep.subr.bf16.mxu0 0
        %1082 = vmatpush1.bf16.msra.mxu0 0
        %1083 = vmatprep.mubr.bf16.mxu0 0
        %1084 = vmatmul.mubr.bf16.gmra.mrb[0].mxu0 %v1034
        %v1085 = vpop.f32.mrb[0].mxu0
        %v1086 = vadd.f32 0.0, %v1085
        %v1087 = vpop.f32.mrb[0].mxu0
        %v1088 = vpop.f32.mrb[0].mxu0
        %v1089 = vadd.f32 0.0, %v1088
        %v1090 = vpop.f32.mrb[0].mxu0
        %1091 = vmatprep.mubr.bf16.mxu0 0
        %1092 = vmatmul.mubr.bf16.gmra.mrb[0].mxu0 %v1037
        %v1093 = vpop.f32.mrb[0].mxu0
        %v1094 = vadd.f32 0.0, %v1093
        %v1095 = vpop.f32.mrb[0].mxu0
        %v1096 = vpop.f32.mrb[0].mxu0
        %v1097 = vadd.f32 0.0, %v1096
        %v1098 = vpop.f32.mrb[0].mxu0
        %1099 = vmatprep.mubr.bf16.mxu0 0
        %1100 = vmatmul.mubr.bf16.gmra.mrb[0].mxu0 %v1040
        %v1101 = vpop.f32.mrb[0].mxu0
        %v1102 = vadd.f32 0.0, %v1101
        %v1103 = vpop.f32.mrb[0].mxu0
        %v1104 = vpop.f32.mrb[0].mxu0
        %v1105 = vadd.f32 0.0, %v1104
        %v1106 = vpop.f32.mrb[0].mxu0
        %1107 = vmatprep.mubr.bf16.mxu0 0
        %1108 = vmatmul.mubr.bf16.gmra.mrb[0].mxu0 %v1043
        %v1109 = vpop.f32.mrb[0].mxu0
        %v1110 = vadd.f32 0.0, %v1109
        %v1111 = vpop.f32.mrb[0].mxu0
        %v1112 = vpop.f32.mrb[0].mxu0
        %v1113 = vadd.f32 0.0, %v1112
        %v1114 = vpop.f32.mrb[0].mxu0
        %1115 = vmatprep.mubr.bf16.mxu0 0
        %1116 = vmatmul.mubr.bf16.gmra.mrb[0].mxu0 %v1046
        %v1117 = vpop.f32.mrb[0].mxu0
        %v1118 = vadd.f32 0.0, %v1117
        %v1119 = vpop.f32.mrb[0].mxu0
        %v1120 = vpop.f32.mrb[0].mxu0
        %v1121 = vadd.f32 0.0, %v1120
        %v1122 = vpop.f32.mrb[0].mxu0
        %1123 = vdwg.mxu0
        %v1124 = vadd.f32 %v985, %v1086
        %v1125 = vadd.f32 %v986, %v1089
        %v1126 = vadd.f32 %v987, %v1094
        %v1127 = vadd.f32 %v988, %v1097
        %v1128 = vadd.f32 %v989, %v1102
        %v1129 = vadd.f32 %v990, %v1105
        %v1130 = vadd.f32 %v991, %v1110
        %v1131 = vadd.f32 %v992, %v1113
        %v1132 = vadd.f32 %v993, %v1118
        %v1133 = vadd.f32 %v994, %v1121
        %v1134 = vld [vmem:[%s856] sm:$0xf]
        %v1135 = vld [vmem:[%s856 + $0x4] sm:$0xf]
        %v1136 = vld [vmem:[%s856 + $0x8] sm:$0xf]
        %v1137 = vld [vmem:[%s856 + $0xc] sm:$0xf]
        %v1138 = vld [vmem:[%s856 + $0x10] sm:$0xf]
        %v1139 = vld [vmem:[%s856 + $0x14] sm:$0xf]
        %v1140 = vld [vmem:[%s856 + $0x18] sm:$0xf]
        %v1141 = vld [vmem:[%s856 + $0x1c] sm:$0xf]
        %v1142 = vld [vmem:[%s856 + $0x20] sm:$0xf]
        %v1143 = vld [vmem:[%s856 + $0x24] sm:$0xf]
        %v1144 = vld [vmem:[%s856 + $0x28] sm:$0x1]
        %s1145 = scalar_lea.vmem [#allocation8], 10
        %v1146 = vld [vmem:[%s1145] sm:$0x3]
        %v1158 = vunpack.c.l.b16 %v1134
        %v1159 = vunpack.c.l.b16 %v1135
        %v1160 = vunpack.c.l.b16 %v1136
        %v1161 = vunpack.c.l.b16 %v1137
        %v1162 = vunpack.c.l.b16 %v1138
        %v1163 = vunpack.c.l.b16 %v1139
        %v1164 = vunpack.c.l.b16 %v1140
        %v1165 = vunpack.c.l.b16 %v1141
        %v1166 = vunpack.c.l.b16 %v1142
        %v1167 = vunpack.c.l.b16 %v1143
        %v1168 = vunpack.c.l.b16 %v1144
        %v1169 = vpack.c.b16 %v1159, %v1158
        %v1170 = vpack.c.b16 %v1161, %v1160
        %v1171 = vpack.c.b16 %v1163, %v1162
        %v1172 = vpack.c.b16 %v1165, %v1164
        %v1173 = vpack.c.b16 %v1167, %v1166
        %v1174 = vpack.c.b16 %v1168, %v1168
        %v1176 = vshrl.u32 %v1169, 16
        %v1178 = vshll.u32 %v1169, 16
        %v1180 = vrot.slane %v1178, 1
        %v1181 = vor.u32 %v1176, %v1180
        %v1183 = vshll.u32 %v1170, 16
        %v1185 = vrot.slane %v1183, 1
        %v1186 = vsel %vm710, %v1181, %v1185
        %v1187 = vshrl.u32 %v1170, 16
        %v1189 = vor.u32 %v1187, %v1185
        %v1191 = vshll.u32 %v1171, 16
        %v1193 = vrot.slane %v1191, 1
        %v1194 = vsel %vm710, %v1189, %v1193
        %v1195 = vshrl.u32 %v1171, 16
        %v1197 = vor.u32 %v1195, %v1193
        %v1199 = vshll.u32 %v1172, 16
        %v1201 = vrot.slane %v1199, 1
        %v1202 = vsel %vm710, %v1197, %v1201
        %v1203 = vshrl.u32 %v1172, 16
        %v1205 = vor.u32 %v1203, %v1201
        %v1207 = vshll.u32 %v1173, 16
        %v1209 = vrot.slane %v1207, 1
        %v1210 = vsel %vm710, %v1205, %v1209
        %v1211 = vshrl.u32 %v1173, 16
        %v1213 = vor.u32 %v1211, %v1209
        %v1215 = vshll.u32 %v1174, 16
        %v1217 = vrot.slane %v1215, 1
        %v1218 = vsel %vm710, %v1213, %v1217
        %v1220 = vsel %vm460, %v1186, 0
        %v1223 = vsel %vm460, %v1194, 0
        %v1226 = vsel %vm460, %v1202, 0
        %v1229 = vsel %vm460, %v1210, 0
        %v1232 = vsel %vm460, %v1218, 0
        %v1235 = vsel %vm476, %v1146, 0
        %1237 = vmatprep.subr.bf16.mxu0 0
        %1238 = vmatpush1.bf16.msra.mxu0 %v1235
        %1239 = vmatprep.subr.bf16.mxu0 0
        %1240 = vmatpush1.bf16.msra.mxu0 0
        %1241 = vmatprep.subr.bf16.mxu0 0
        %1242 = vmatpush1.bf16.msra.mxu0 0
        %1243 = vmatprep.subr.bf16.mxu0 0
        %1244 = vmatpush1.bf16.msra.mxu0 0
        %1245 = vmatprep.subr.bf16.mxu0 0
        %1246 = vmatpush1.bf16.msra.mxu0 0
        %1247 = vmatprep.subr.bf16.mxu0 0
        %1248 = vmatpush1.bf16.msra.mxu0 0
        %1249 = vmatprep.subr.bf16.mxu0 0
        %1250 = vmatpush1.bf16.msra.mxu0 0
        %1251 = vmatprep.subr.bf16.mxu0 0
        %1252 = vmatpush1.bf16.msra.mxu0 0
        %1253 = vmatprep.subr.bf16.mxu0 0
        %1254 = vmatpush1.bf16.msra.mxu0 0
        %1255 = vmatprep.subr.bf16.mxu0 0
        %1256 = vmatpush1.bf16.msra.mxu0 0
        %1257 = vmatprep.subr.bf16.mxu0 0
        %1258 = vmatpush1.bf16.msra.mxu0 0
        %1259 = vmatprep.subr.bf16.mxu0 0
        %1260 = vmatpush1.bf16.msra.mxu0 0
        %1261 = vmatprep.subr.bf16.mxu0 0
        %1262 = vmatpush1.bf16.msra.mxu0 0
        %1263 = vmatprep.subr.bf16.mxu0 0
        %1264 = vmatpush1.bf16.msra.mxu0 0
        %1265 = vmatprep.subr.bf16.mxu0 0
        %1266 = vmatpush1.bf16.msra.mxu0 0
        %1267 = vmatprep.subr.bf16.mxu0 0
        %1268 = vmatpush1.bf16.msra.mxu0 0
        %1269 = vmatprep.mubr.bf16.mxu0 0
        %1270 = vmatmul.mubr.bf16.gmra.mrb[0].mxu0 %v1220
        %v1271 = vpop.f32.mrb[0].mxu0
        %v1272 = vadd.f32 0.0, %v1271
        %v1273 = vpop.f32.mrb[0].mxu0
        %v1274 = vpop.f32.mrb[0].mxu0
        %v1275 = vadd.f32 0.0, %v1274
        %v1276 = vpop.f32.mrb[0].mxu0
        %1277 = vmatprep.mubr.bf16.mxu0 0
        %1278 = vmatmul.mubr.bf16.gmra.mrb[0].mxu0 %v1223
        %v1279 = vpop.f32.mrb[0].mxu0
        %v1280 = vadd.f32 0.0, %v1279
        %v1281 = vpop.f32.mrb[0].mxu0
        %v1282 = vpop.f32.mrb[0].mxu0
        %v1283 = vadd.f32 0.0, %v1282
        %v1284 = vpop.f32.mrb[0].mxu0
        %1285 = vmatprep.mubr.bf16.mxu0 0
        %1286 = vmatmul.mubr.bf16.gmra.mrb[0].mxu0 %v1226
        %v1287 = vpop.f32.mrb[0].mxu0
        %v1288 = vadd.f32 0.0, %v1287
        %v1289 = vpop.f32.mrb[0].mxu0
        %v1290 = vpop.f32.mrb[0].mxu0
        %v1291 = vadd.f32 0.0, %v1290
        %v1292 = vpop.f32.mrb[0].mxu0
        %1293 = vmatprep.mubr.bf16.mxu0 0
        %1294 = vmatmul.mubr.bf16.gmra.mrb[0].mxu0 %v1229
        %v1295 = vpop.f32.mrb[0].mxu0
        %v1296 = vadd.f32 0.0, %v1295
        %v1297 = vpop.f32.mrb[0].mxu0
        %v1298 = vpop.f32.mrb[0].mxu0
        %v1299 = vadd.f32 0.0, %v1298
        %v1300 = vpop.f32.mrb[0].mxu0
        %1301 = vmatprep.mubr.bf16.mxu0 0
        %1302 = vmatmul.mubr.bf16.gmra.mrb[0].mxu0 %v1232
        %v1303 = vpop.f32.mrb[0].mxu0
        %v1304 = vadd.f32 0.0, %v1303
        %v1305 = vpop.f32.mrb[0].mxu0
        %v1306 = vpop.f32.mrb[0].mxu0
        %v1307 = vadd.f32 0.0, %v1306
        %v1308 = vpop.f32.mrb[0].mxu0
        %1309 = vdwg.mxu0
        %v1310 = vadd.f32 %v1124, %v1272
        %v1311 = vadd.f32 %v1125, %v1275
        %v1312 = vadd.f32 %v1126, %v1280
        %v1313 = vadd.f32 %v1127, %v1283
        %v1314 = vadd.f32 %v1128, %v1288
        %v1315 = vadd.f32 %v1129, %v1291
        %v1316 = vadd.f32 %v1130, %v1296
        %v1317 = vadd.f32 %v1131, %v1299
        %v1318 = vadd.f32 %v1132, %v1304
        %v1319 = vadd.f32 %v1133, %v1307
        %v1320 = vld [vmem:[%s340 + $0x4] sm:$0xe]
        %v1321 = vld [vmem:[%s340 + $0x8] sm:$0xf]
        %v1322 = vld [vmem:[%s340 + $0xc] sm:$0xf]
        %v1323 = vld [vmem:[%s340 + $0x10] sm:$0xf]
        %v1324 = vld [vmem:[%s340 + $0x14] sm:$0xf]
        %v1325 = vld [vmem:[%s340 + $0x18] sm:$0xf]
        %v1326 = vld [vmem:[%s340 + $0x1c] sm:$0xf]
        %v1327 = vld [vmem:[%s340 + $0x20] sm:$0xf]
        %v1328 = vld [vmem:[%s340 + $0x24] sm:$0xf]
        %v1329 = vld [vmem:[%s340 + $0x28] sm:$0xf]
        %v1330 = vld [vmem:[%s340 + $0x2c] sm:$0x1]
        %s1331 = scalar_lea.vmem [#allocation8], 12
        %v1332 = vld [vmem:[%s1331] sm:$0x3]
        %v1344 = vunpack.c.l.b16 %v1320
        %v1345 = vunpack.c.l.b16 %v1321
        %v1346 = vunpack.c.l.b16 %v1322
        %v1347 = vunpack.c.l.b16 %v1323
        %v1348 = vunpack.c.l.b16 %v1324
        %v1349 = vunpack.c.l.b16 %v1325
        %v1350 = vunpack.c.l.b16 %v1326
        %v1351 = vunpack.c.l.b16 %v1327
        %v1352 = vunpack.c.l.b16 %v1328
        %v1353 = vunpack.c.l.b16 %v1329
        %v1354 = vunpack.c.l.b16 %v1330
        %v1355 = vpack.c.b16 %v1345, %v1344
        %v1356 = vpack.c.b16 %v1347, %v1346
        %v1357 = vpack.c.b16 %v1349, %v1348
        %v1358 = vpack.c.b16 %v1351, %v1350
        %v1359 = vpack.c.b16 %v1353, %v1352
        %v1360 = vpack.c.b16 %v1354, %v1354
        %vm1361 = vcmask 1046528
        %v1362 = vrot.slane %v1355, 1
        %v1363 = vrot.slane %v1356, 1
        %v1364 = vsel %vm1361, %v1362, %v1363
        %v1365 = vrot.slane %v1357, 1
        %v1366 = vsel %vm1361, %v1363, %v1365
        %v1367 = vrot.slane %v1358, 1
        %v1368 = vsel %vm1361, %v1365, %v1367
        %v1369 = vrot.slane %v1359, 1
        %v1370 = vsel %vm1361, %v1367, %v1369
        %v1371 = vrot.slane %v1360, 1
        %v1372 = vsel %vm1361, %v1369, %v1371
        %v1374 = vsel %vm460, %v1364, 0
        %v1377 = vsel %vm460, %v1366, 0
        %v1380 = vsel %vm460, %v1368, 0
        %v1383 = vsel %vm460, %v1370, 0
        %v1386 = vsel %vm460, %v1372, 0
        %v1389 = vsel %vm476, %v1332, 0
        %1391 = vmatprep.subr.bf16.mxu0 0
        %1392 = vmatpush1.bf16.msra.mxu0 %v1389
        %1393 = vmatprep.subr.bf16.mxu0 0
        %1394 = vmatpush1.bf16.msra.mxu0 0
        %1395 = vmatprep.subr.bf16.mxu0 0
        %1396 = vmatpush1.bf16.msra.mxu0 0
        %1397 = vmatprep.subr.bf16.mxu0 0
        %1398 = vmatpush1.bf16.msra.mxu0 0
        %1399 = vmatprep.subr.bf16.mxu0 0
        %1400 = vmatpush1.bf16.msra.mxu0 0
        %1401 = vmatprep.subr.bf16.mxu0 0
        %1402 = vmatpush1.bf16.msra.mxu0 0
        %1403 = vmatprep.subr.bf16.mxu0 0
        %1404 = vmatpush1.bf16.msra.mxu0 0
        %1405 = vmatprep.subr.bf16.mxu0 0
        %1406 = vmatpush1.bf16.msra.mxu0 0
        %1407 = vmatprep.subr.bf16.mxu0 0
        %1408 = vmatpush1.bf16.msra.mxu0 0
        %1409 = vmatprep.subr.bf16.mxu0 0
        %1410 = vmatpush1.bf16.msra.mxu0 0
        %1411 = vmatprep.subr.bf16.mxu0 0
        %1412 = vmatpush1.bf16.msra.mxu0 0
        %1413 = vmatprep.subr.bf16.mxu0 0
        %1414 = vmatpush1.bf16.msra.mxu0 0
        %1415 = vmatprep.subr.bf16.mxu0 0
        %1416 = vmatpush1.bf16.msra.mxu0 0
        %1417 = vmatprep.subr.bf16.mxu0 0
        %1418 = vmatpush1.bf16.msra.mxu0 0
        %1419 = vmatprep.subr.bf16.mxu0 0
        %1420 = vmatpush1.bf16.msra.mxu0 0
        %1421 = vmatprep.subr.bf16.mxu0 0
        %1422 = vmatpush1.bf16.msra.mxu0 0
        %1423 = vmatprep.mubr.bf16.mxu0 0
        %1424 = vmatmul.mubr.bf16.gmra.mrb[0].mxu0 %v1374
        %v1425 = vpop.f32.mrb[0].mxu0
        %v1426 = vadd.f32 0.0, %v1425
        %v1427 = vpop.f32.mrb[0].mxu0
        %v1428 = vpop.f32.mrb[0].mxu0
        %v1429 = vadd.f32 0.0, %v1428
        %v1430 = vpop.f32.mrb[0].mxu0
        %1431 = vmatprep.mubr.bf16.mxu0 0
        %1432 = vmatmul.mubr.bf16.gmra.mrb[0].mxu0 %v1377
        %v1433 = vpop.f32.mrb[0].mxu0
        %v1434 = vadd.f32 0.0, %v1433
        %v1435 = vpop.f32.mrb[0].mxu0
        %v1436 = vpop.f32.mrb[0].mxu0
        %v1437 = vadd.f32 0.0, %v1436
        %v1438 = vpop.f32.mrb[0].mxu0
        %1439 = vmatprep.mubr.bf16.mxu0 0
        %1440 = vmatmul.mubr.bf16.gmra.mrb[0].mxu0 %v1380
        %v1441 = vpop.f32.mrb[0].mxu0
        %v1442 = vadd.f32 0.0, %v1441
        %v1443 = vpop.f32.mrb[0].mxu0
        %v1444 = vpop.f32.mrb[0].mxu0
        %v1445 = vadd.f32 0.0, %v1444
        %v1446 = vpop.f32.mrb[0].mxu0
        %1447 = vmatprep.mubr.bf16.mxu0 0
        %1448 = vmatmul.mubr.bf16.gmra.mrb[0].mxu0 %v1383
        %v1449 = vpop.f32.mrb[0].mxu0
        %v1450 = vadd.f32 0.0, %v1449
        %v1451 = vpop.f32.mrb[0].mxu0
        %v1452 = vpop.f32.mrb[0].mxu0
        %v1453 = vadd.f32 0.0, %v1452
        %v1454 = vpop.f32.mrb[0].mxu0
        %1455 = vmatprep.mubr.bf16.mxu0 0
        %1456 = vmatmul.mubr.bf16.gmra.mrb[0].mxu0 %v1386
        %v1457 = vpop.f32.mrb[0].mxu0
        %v1458 = vadd.f32 0.0, %v1457
        %v1459 = vpop.f32.mrb[0].mxu0
        %v1460 = vpop.f32.mrb[0].mxu0
        %v1461 = vadd.f32 0.0, %v1460
        %v1462 = vpop.f32.mrb[0].mxu0
        %1463 = vdwg.mxu0
        %v1464 = vadd.f32 %v1310, %v1426
        %v1465 = vadd.f32 %v1311, %v1429
        %v1466 = vadd.f32 %v1312, %v1434
        %v1467 = vadd.f32 %v1313, %v1437
        %v1468 = vadd.f32 %v1314, %v1442
        %v1469 = vadd.f32 %v1315, %v1445
        %v1470 = vadd.f32 %v1316, %v1450
        %v1471 = vadd.f32 %v1317, %v1453
        %v1472 = vadd.f32 %v1318, %v1458
        %v1473 = vadd.f32 %v1319, %v1461
        %v1474 = vld [vmem:[%s422 + $0x4] sm:$0xe]
        %v1475 = vld [vmem:[%s422 + $0x8] sm:$0xf]
        %v1476 = vld [vmem:[%s422 + $0xc] sm:$0xf]
        %v1477 = vld [vmem:[%s422 + $0x10] sm:$0xf]
        %v1478 = vld [vmem:[%s422 + $0x14] sm:$0xf]
        %v1479 = vld [vmem:[%s422 + $0x18] sm:$0xf]
        %v1480 = vld [vmem:[%s422 + $0x1c] sm:$0xf]
        %v1481 = vld [vmem:[%s422 + $0x20] sm:$0xf]
        %v1482 = vld [vmem:[%s422 + $0x24] sm:$0xf]
        %v1483 = vld [vmem:[%s422 + $0x28] sm:$0xf]
        %v1484 = vld [vmem:[%s422 + $0x2c] sm:$0x1]
        %s1485 = scalar_lea.vmem [#allocation8], 14
        %v1486 = vld [vmem:[%s1485] sm:$0x3]
        %v1498 = vunpack.c.l.b16 %v1474
        %v1499 = vunpack.c.l.b16 %v1475
        %v1500 = vunpack.c.l.b16 %v1476
        %v1501 = vunpack.c.l.b16 %v1477
        %v1502 = vunpack.c.l.b16 %v1478
        %v1503 = vunpack.c.l.b16 %v1479
        %v1504 = vunpack.c.l.b16 %v1480
        %v1505 = vunpack.c.l.b16 %v1481
        %v1506 = vunpack.c.l.b16 %v1482
        %v1507 = vunpack.c.l.b16 %v1483
        %v1508 = vunpack.c.l.b16 %v1484
        %v1509 = vpack.c.b16 %v1499, %v1498
        %v1510 = vpack.c.b16 %v1501, %v1500
        %v1511 = vpack.c.b16 %v1503, %v1502
        %v1512 = vpack.c.b16 %v1505, %v1504
        %v1513 = vpack.c.b16 %v1507, %v1506
        %v1514 = vpack.c.b16 %v1508, %v1508
        %v1515 = vrot.slane %v1509, 1
        %v1516 = vrot.slane %v1510, 1
        %v1517 = vsel %vm1361, %v1515, %v1516
        %v1518 = vrot.slane %v1511, 1
        %v1519 = vsel %vm1361, %v1516, %v1518
        %v1520 = vrot.slane %v1512, 1
        %v1521 = vsel %vm1361, %v1518, %v1520
        %v1522 = vrot.slane %v1513, 1
        %v1523 = vsel %vm1361, %v1520, %v1522
        %v1524 = vrot.slane %v1514, 1
        %v1525 = vsel %vm1361, %v1522, %v1524
        %v1527 = vsel %vm460, %v1517, 0
        %v1530 = vsel %vm460, %v1519, 0
        %v1533 = vsel %vm460, %v1521, 0
        %v1536 = vsel %vm460, %v1523, 0
        %v1539 = vsel %vm460, %v1525, 0
        %v1542 = vsel %vm476, %v1486, 0
        %1544 = vmatprep.subr.bf16.mxu0 0
        %1545 = vmatpush1.bf16.msra.mxu0 %v1542
        %1546 = vmatprep.subr.bf16.mxu0 0
        %1547 = vmatpush1.bf16.msra.mxu0 0
        %1548 = vmatprep.subr.bf16.mxu0 0
        %1549 = vmatpush1.bf16.msra.mxu0 0
        %1550 = vmatprep.subr.bf16.mxu0 0
        %1551 = vmatpush1.bf16.msra.mxu0 0
        %1552 = vmatprep.subr.bf16.mxu0 0
        %1553 = vmatpush1.bf16.msra.mxu0 0
        %1554 = vmatprep.subr.bf16.mxu0 0
        %1555 = vmatpush1.bf16.msra.mxu0 0
        %1556 = vmatprep.subr.bf16.mxu0 0
        %1557 = vmatpush1.bf16.msra.mxu0 0
        %1558 = vmatprep.subr.bf16.mxu0 0
        %1559 = vmatpush1.bf16.msra.mxu0 0
        %1560 = vmatprep.subr.bf16.mxu0 0
        %1561 = vmatpush1.bf16.msra.mxu0 0
        %1562 = vmatprep.subr.bf16.mxu0 0
        %1563 = vmatpush1.bf16.msra.mxu0 0
        %1564 = vmatprep.subr.bf16.mxu0 0
        %1565 = vmatpush1.bf16.msra.mxu0 0
        %1566 = vmatprep.subr.bf16.mxu0 0
        %1567 = vmatpush1.bf16.msra.mxu0 0
        %1568 = vmatprep.subr.bf16.mxu0 0
        %1569 = vmatpush1.bf16.msra.mxu0 0
        %1570 = vmatprep.subr.bf16.mxu0 0
        %1571 = vmatpush1.bf16.msra.mxu0 0
        %1572 = vmatprep.subr.bf16.mxu0 0
        %1573 = vmatpush1.bf16.msra.mxu0 0
        %1574 = vmatprep.subr.bf16.mxu0 0
        %1575 = vmatpush1.bf16.msra.mxu0 0
        %1576 = vmatprep.mubr.bf16.mxu0 0
        %1577 = vmatmul.mubr.bf16.gmra.mrb[0].mxu0 %v1527
        %v1578 = vpop.f32.mrb[0].mxu0
        %v1579 = vadd.f32 0.0, %v1578
        %v1580 = vpop.f32.mrb[0].mxu0
        %v1581 = vpop.f32.mrb[0].mxu0
        %v1582 = vadd.f32 0.0, %v1581
        %v1583 = vpop.f32.mrb[0].mxu0
        %1584 = vmatprep.mubr.bf16.mxu0 0
        %1585 = vmatmul.mubr.bf16.gmra.mrb[0].mxu0 %v1530
        %v1586 = vpop.f32.mrb[0].mxu0
        %v1587 = vadd.f32 0.0, %v1586
        %v1588 = vpop.f32.mrb[0].mxu0
        %v1589 = vpop.f32.mrb[0].mxu0
        %v1590 = vadd.f32 0.0, %v1589
        %v1591 = vpop.f32.mrb[0].mxu0
        %1592 = vmatprep.mubr.bf16.mxu0 0
        %1593 = vmatmul.mubr.bf16.gmra.mrb[0].mxu0 %v1533
        %v1594 = vpop.f32.mrb[0].mxu0
        %v1595 = vadd.f32 0.0, %v1594
        %v1596 = vpop.f32.mrb[0].mxu0
        %v1597 = vpop.f32.mrb[0].mxu0
        %v1598 = vadd.f32 0.0, %v1597
        %v1599 = vpop.f32.mrb[0].mxu0
        %1600 = vmatprep.mubr.bf16.mxu0 0
        %1601 = vmatmul.mubr.bf16.gmra.mrb[0].mxu0 %v1536
        %v1602 = vpop.f32.mrb[0].mxu0
        %v1603 = vadd.f32 0.0, %v1602
        %v1604 = vpop.f32.mrb[0].mxu0
        %v1605 = vpop.f32.mrb[0].mxu0
        %v1606 = vadd.f32 0.0, %v1605
        %v1607 = vpop.f32.mrb[0].mxu0
        %1608 = vmatprep.mubr.bf16.mxu0 0
        %1609 = vmatmul.mubr.bf16.gmra.mrb[0].mxu0 %v1539
        %v1610 = vpop.f32.mrb[0].mxu0
        %v1611 = vadd.f32 0.0, %v1610
        %v1612 = vpop.f32.mrb[0].mxu0
        %v1613 = vpop.f32.mrb[0].mxu0
        %v1614 = vadd.f32 0.0, %v1613
        %v1615 = vpop.f32.mrb[0].mxu0
        %1616 = vdwg.mxu0
        %v1617 = vadd.f32 %v1464, %v1579
        %v1618 = vadd.f32 %v1465, %v1582
        %v1619 = vadd.f32 %v1466, %v1587
        %v1620 = vadd.f32 %v1467, %v1590
        %v1621 = vadd.f32 %v1468, %v1595
        %v1622 = vadd.f32 %v1469, %v1598
        %v1623 = vadd.f32 %v1470, %v1603
        %v1624 = vadd.f32 %v1471, %v1606
        %v1625 = vadd.f32 %v1472, %v1611
        %v1626 = vadd.f32 %v1473, %v1614
        %v1627 = vld [vmem:[%s340 + $0x2c] sm:$0x3]
        %s1628 = scalar_lea.vmem [#allocation8], 16
        %v1629 = vld [vmem:[%s1628] sm:$0x3]
        %v1631 = vunpack.c.l.b16 %v1627
        %v1632 = vpack.c.b16 %v1631, %v1631
        %vm1633 = vsmask.f32 6400
        %v1635 = vshrl.u32 %v1355, 16
        %v1637 = vrot.slane %v1635, 1
        %v1638 = vshll.u32 %v1355, 16
        %v1640 = vrot.slane %v1638, 2
        %v1641 = vor.u32 %v1637, %v1640
        %v1643 = vshrl.u32 %v1356, 16
        %v1645 = vrot.slane %v1643, 1
        %v1646 = vshll.u32 %v1356, 16
        %v1648 = vrot.slane %v1646, 2
        %v1649 = vor.u32 %v1645, %v1648
        %v1650 = vsel %vm1633, %v1641, %v1649
        %v1652 = vshrl.u32 %v1357, 16
        %v1654 = vrot.slane %v1652, 1
        %v1655 = vshll.u32 %v1357, 16
        %v1657 = vrot.slane %v1655, 2
        %v1658 = vor.u32 %v1654, %v1657
        %v1659 = vsel %vm1633, %v1649, %v1658
        %v1661 = vshrl.u32 %v1358, 16
        %v1663 = vrot.slane %v1661, 1
        %v1664 = vshll.u32 %v1358, 16
        %v1666 = vrot.slane %v1664, 2
        %v1667 = vor.u32 %v1663, %v1666
        %v1668 = vsel %vm1633, %v1658, %v1667
        %v1670 = vshrl.u32 %v1359, 16
        %v1672 = vrot.slane %v1670, 1
        %v1673 = vshll.u32 %v1359, 16
        %v1675 = vrot.slane %v1673, 2
        %v1676 = vor.u32 %v1672, %v1675
        %v1677 = vsel %vm1633, %v1667, %v1676
        %v1679 = vshrl.u32 %v1632, 16
        %v1681 = vrot.slane %v1679, 1
        %v1682 = vshll.u32 %v1632, 16
        %v1684 = vrot.slane %v1682, 2
        %v1685 = vor.u32 %v1681, %v1684
        %v1686 = vsel %vm1633, %v1676, %v1685
        %v1688 = vsel %vm460, %v1650, 0
        %v1691 = vsel %vm460, %v1659, 0
        %v1694 = vsel %vm460, %v1668, 0
        %v1697 = vsel %vm460, %v1677, 0
        %v1700 = vsel %vm460, %v1686, 0
        %v1703 = vsel %vm476, %v1629, 0
        %1705 = vmatprep.subr.bf16.mxu0 0
        %1706 = vmatpush1.bf16.msra.mxu0 %v1703
        %1707 = vmatprep.subr.bf16.mxu0 0
        %1708 = vmatpush1.bf16.msra.mxu0 0
        %1709 = vmatprep.subr.bf16.mxu0 0
        %1710 = vmatpush1.bf16.msra.mxu0 0
        %1711 = vmatprep.subr.bf16.mxu0 0
        %1712 = vmatpush1.bf16.msra.mxu0 0
        %1713 = vmatprep.subr.bf16.mxu0 0
        %1714 = vmatpush1.bf16.msra.mxu0 0
        %1715 = vmatprep.subr.bf16.mxu0 0
        %1716 = vmatpush1.bf16.msra.mxu0 0
        %1717 = vmatprep.subr.bf16.mxu0 0
        %1718 = vmatpush1.bf16.msra.mxu0 0
        %1719 = vmatprep.subr.bf16.mxu0 0
        %1720 = vmatpush1.bf16.msra.mxu0 0
        %1721 = vmatprep.subr.bf16.mxu0 0
        %1722 = vmatpush1.bf16.msra.mxu0 0
        %1723 = vmatprep.subr.bf16.mxu0 0
        %1724 = vmatpush1.bf16.msra.mxu0 0
        %1725 = vmatprep.subr.bf16.mxu0 0
        %1726 = vmatpush1.bf16.msra.mxu0 0
        %1727 = vmatprep.subr.bf16.mxu0 0
        %1728 = vmatpush1.bf16.msra.mxu0 0
        %1729 = vmatprep.subr.bf16.mxu0 0
        %1730 = vmatpush1.bf16.msra.mxu0 0
        %1731 = vmatprep.subr.bf16.mxu0 0
        %1732 = vmatpush1.bf16.msra.mxu0 0
        %1733 = vmatprep.subr.bf16.mxu0 0
        %1734 = vmatpush1.bf16.msra.mxu0 0
        %1735 = vmatprep.subr.bf16.mxu0 0
        %1736 = vmatpush1.bf16.msra.mxu0 0
        %1737 = vmatprep.mubr.bf16.mxu0 0
        %1738 = vmatmul.mubr.bf16.gmra.mrb[0].mxu0 %v1688
        %v1739 = vpop.f32.mrb[0].mxu0
        %v1740 = vadd.f32 0.0, %v1739
        %v1741 = vpop.f32.mrb[0].mxu0
        %v1742 = vpop.f32.mrb[0].mxu0
        %v1743 = vadd.f32 0.0, %v1742
        %v1744 = vpop.f32.mrb[0].mxu0
        %1745 = vmatprep.mubr.bf16.mxu0 0
        %1746 = vmatmul.mubr.bf16.gmra.mrb[0].mxu0 %v1691
        %v1747 = vpop.f32.mrb[0].mxu0
        %v1748 = vadd.f32 0.0, %v1747
        %v1749 = vpop.f32.mrb[0].mxu0
        %v1750 = vpop.f32.mrb[0].mxu0
        %v1751 = vadd.f32 0.0, %v1750
        %v1752 = vpop.f32.mrb[0].mxu0
        %1753 = vmatprep.mubr.bf16.mxu0 0
        %1754 = vmatmul.mubr.bf16.gmra.mrb[0].mxu0 %v1694
        %v1755 = vpop.f32.mrb[0].mxu0
        %v1756 = vadd.f32 0.0, %v1755
        %v1757 = vpop.f32.mrb[0].mxu0
        %v1758 = vpop.f32.mrb[0].mxu0
        %v1759 = vadd.f32 0.0, %v1758
        %v1760 = vpop.f32.mrb[0].mxu0
        %1761 = vmatprep.mubr.bf16.mxu0 0
        %1762 = vmatmul.mubr.bf16.gmra.mrb[0].mxu0 %v1697
        %v1763 = vpop.f32.mrb[0].mxu0
        %v1764 = vadd.f32 0.0, %v1763
        %v1765 = vpop.f32.mrb[0].mxu0
        %v1766 = vpop.f32.mrb[0].mxu0
        %v1767 = vadd.f32 0.0, %v1766
        %v1768 = vpop.f32.mrb[0].mxu0
        %1769 = vmatprep.mubr.bf16.mxu0 0
        %1770 = vmatmul.mubr.bf16.gmra.mrb[0].mxu0 %v1700
        %v1771 = vpop.f32.mrb[0].mxu0
        %v1772 = vadd.f32 0.0, %v1771
        %v1773 = vpop.f32.mrb[0].mxu0
        %v1774 = vpop.f32.mrb[0].mxu0
        %v1775 = vadd.f32 0.0, %v1774
        %v1776 = vpop.f32.mrb[0].mxu0
        %1777 = vdwg.mxu0
        %v1778 = vadd.f32 %v1617, %v1740
        %v1779 = vadd.f32 %v1618, %v1743
        %v1780 = vadd.f32 %v1619, %v1748
        %v1781 = vadd.f32 %v1620, %v1751
        %v1782 = vadd.f32 %v1621, %v1756
        %v1783 = vadd.f32 %v1622, %v1759
        %v1784 = vadd.f32 %v1623, %v1764
        %v1785 = vadd.f32 %v1624, %v1767
        %v1786 = vadd.f32 %v1625, %v1772
        %v1787 = vadd.f32 %v1626, %v1775
        %v1789 = vlaneseq
        %v1790 = vshrl.u32 %v1789, 7
        %v1791 = vsub.s32 0, %v1790
        %v1792 = vrot.slane %v409, %v1791
        %v1794 = vmul.f32 %v1778, %v1792
        %v1795 = vmul.f32 %v1779, %v1792
        %v1796 = vmul.f32 %v1780, %v1792
        %v1797 = vmul.f32 %v1781, %v1792
        %v1798 = vmul.f32 %v1782, %v1792
        %v1799 = vmul.f32 %v1783, %v1792
        %v1800 = vmul.f32 %v1784, %v1792
        %v1801 = vmul.f32 %v1785, %v1792
        %v1802 = vmul.f32 %v1786, %v1792
        %v1803 = vmul.f32 %v1787, %v1792
        %v1805 = vlaneseq
        %v1806 = vshrl.u32 %v1805, 7
        %v1807 = vsub.s32 0, %v1806
        %v1808 = vrot.slane %v410, %v1807
        %v1810 = vadd.f32 %v1794, %v1808
        %v1811 = vadd.f32 %v1795, %v1808
        %v1812 = vadd.f32 %v1796, %v1808
        %v1813 = vadd.f32 %v1797, %v1808
        %v1814 = vadd.f32 %v1798, %v1808
        %v1815 = vadd.f32 %v1799, %v1808
        %v1816 = vadd.f32 %v1800, %v1808
        %v1817 = vadd.f32 %v1801, %v1808
        %v1818 = vadd.f32 %v1802, %v1808
        %v1819 = vadd.f32 %v1803, %v1808
        %v1820 = vmax.f32 %v1810, 0.0
        %v1821 = vmax.f32 %v1811, 0.0
        %v1822 = vmax.f32 %v1812, 0.0
        %v1823 = vmax.f32 %v1813, 0.0
        %v1824 = vmax.f32 %v1814, 0.0
        %v1825 = vmax.f32 %v1815, 0.0
        %v1826 = vmax.f32 %v1816, 0.0
        %v1827 = vmax.f32 %v1817, 0.0
        %v1828 = vmax.f32 %v1818, 0.0
        %v1829 = vmax.f32 %v1819, 0.0
        %v1830 = vlaneseq
        %v1831 = vshrl.u32 %v1830, 7
        %v1832 = vadd.s32 %v1831, 8
        %v1833 = vadd.s32 %v1831, 16
        %v1834 = vadd.s32 %v1831, 24
        %v1835 = vadd.s32 %v1831, 32
        %v1836 = vadd.s32 %v1831, 40
        %v1837 = vadd.s32 %v1831, 48
        %v1838 = vadd.s32 %v1831, 56
        %v1839 = vadd.s32 %v1831, 64
        %v1840 = vadd.s32 %v1831, 72
        %vm1841 = vcmp.lt.s32.totalorder %v1831, 0
        %v1842 = vsub.s32 0, %v1831
        %v1843 = vsel %vm1841, %v1842, %v1831
        %v1844 = vmul.u32.u64.compose %v1843, 3435973837
        %v1845 = vextract.low.u32 %v1844
        %v1846 = vextract.high.u32 %v1844
        %v1847 = vshrl.u32 %v1846, 3
        %v1848 = vmul.u32 %v1847, 10
        %v1849 = vsub.s32 %v1843, %v1848
        %v1850 = vsub.s32 0, %v1849
        %v1851 = vsel %vm1841, %v1850, %v1849
        %vm1852 = vcmp.lt.s32.totalorder %v1832, 0
        %v1853 = vsub.s32 0, %v1832
        %v1854 = vsel %vm1852, %v1853, %v1832
        %v1855 = vmul.u32.u64.compose %v1854, 3435973837
        %v1856 = vextract.low.u32 %v1855
        %v1857 = vextract.high.u32 %v1855
        %v1858 = vshrl.u32 %v1857, 3
        %v1859 = vmul.u32 %v1858, 10
        %v1860 = vsub.s32 %v1854, %v1859
        %v1861 = vsub.s32 0, %v1860
        %v1862 = vsel %vm1852, %v1861, %v1860
        %vm1863 = vcmp.lt.s32.totalorder %v1833, 0
        %v1864 = vsub.s32 0, %v1833
        %v1865 = vsel %vm1863, %v1864, %v1833
        %v1866 = vmul.u32.u64.compose %v1865, 3435973837
        %v1867 = vextract.low.u32 %v1866
        %v1868 = vextract.high.u32 %v1866
        %v1869 = vshrl.u32 %v1868, 3
        %v1870 = vmul.u32 %v1869, 10
        %v1871 = vsub.s32 %v1865, %v1870
        %v1872 = vsub.s32 0, %v1871
        %v1873 = vsel %vm1863, %v1872, %v1871
        %vm1874 = vcmp.lt.s32.totalorder %v1834, 0
        %v1875 = vsub.s32 0, %v1834
        %v1876 = vsel %vm1874, %v1875, %v1834
        %v1877 = vmul.u32.u64.compose %v1876, 3435973837
        %v1878 = vextract.low.u32 %v1877
        %v1879 = vextract.high.u32 %v1877
        %v1880 = vshrl.u32 %v1879, 3
        %v1881 = vmul.u32 %v1880, 10
        %v1882 = vsub.s32 %v1876, %v1881
        %v1883 = vsub.s32 0, %v1882
        %v1884 = vsel %vm1874, %v1883, %v1882
        %vm1885 = vcmp.lt.s32.totalorder %v1835, 0
        %v1886 = vsub.s32 0, %v1835
        %v1887 = vsel %vm1885, %v1886, %v1835
        %v1888 = vmul.u32.u64.compose %v1887, 3435973837
        %v1889 = vextract.low.u32 %v1888
        %v1890 = vextract.high.u32 %v1888
        %v1891 = vshrl.u32 %v1890, 3
        %v1892 = vmul.u32 %v1891, 10
        %v1893 = vsub.s32 %v1887, %v1892
        %v1894 = vsub.s32 0, %v1893
        %v1895 = vsel %vm1885, %v1894, %v1893
        %vm1896 = vcmp.lt.s32.totalorder %v1836, 0
        %v1897 = vsub.s32 0, %v1836
        %v1898 = vsel %vm1896, %v1897, %v1836
        %v1899 = vmul.u32.u64.compose %v1898, 3435973837
        %v1900 = vextract.low.u32 %v1899
        %v1901 = vextract.high.u32 %v1899
        %v1902 = vshrl.u32 %v1901, 3
        %v1903 = vmul.u32 %v1902, 10
        %v1904 = vsub.s32 %v1898, %v1903
        %v1905 = vsub.s32 0, %v1904
        %v1906 = vsel %vm1896, %v1905, %v1904
        %vm1907 = vcmp.lt.s32.totalorder %v1837, 0
        %v1908 = vsub.s32 0, %v1837
        %v1909 = vsel %vm1907, %v1908, %v1837
        %v1910 = vmul.u32.u64.compose %v1909, 3435973837
        %v1911 = vextract.low.u32 %v1910
        %v1912 = vextract.high.u32 %v1910
        %v1913 = vshrl.u32 %v1912, 3
        %v1914 = vmul.u32 %v1913, 10
        %v1915 = vsub.s32 %v1909, %v1914
        %v1916 = vsub.s32 0, %v1915
        %v1917 = vsel %vm1907, %v1916, %v1915
        %vm1918 = vcmp.lt.s32.totalorder %v1838, 0
        %v1919 = vsub.s32 0, %v1838
        %v1920 = vsel %vm1918, %v1919, %v1838
        %v1921 = vmul.u32.u64.compose %v1920, 3435973837
        %v1922 = vextract.low.u32 %v1921
        %v1923 = vextract.high.u32 %v1921
        %v1924 = vshrl.u32 %v1923, 3
        %v1925 = vmul.u32 %v1924, 10
        %v1926 = vsub.s32 %v1920, %v1925
        %v1927 = vsub.s32 0, %v1926
        %v1928 = vsel %vm1918, %v1927, %v1926
        %vm1929 = vcmp.lt.s32.totalorder %v1839, 0
        %v1930 = vsub.s32 0, %v1839
        %v1931 = vsel %vm1929, %v1930, %v1839
        %v1932 = vmul.u32.u64.compose %v1931, 3435973837
        %v1933 = vextract.low.u32 %v1932
        %v1934 = vextract.high.u32 %v1932
        %v1935 = vshrl.u32 %v1934, 3
        %v1936 = vmul.u32 %v1935, 10
        %v1937 = vsub.s32 %v1931, %v1936
        %v1938 = vsub.s32 0, %v1937
        %v1939 = vsel %vm1929, %v1938, %v1937
        %vm1940 = vcmp.lt.s32.totalorder %v1840, 0
        %v1941 = vsub.s32 0, %v1840
        %v1942 = vsel %vm1940, %v1941, %v1840
        %v1943 = vmul.u32.u64.compose %v1942, 3435973837
        %v1944 = vextract.low.u32 %v1943
        %v1945 = vextract.high.u32 %v1943
        %v1946 = vshrl.u32 %v1945, 3
        %v1947 = vmul.u32 %v1946, 10
        %v1948 = vsub.s32 %v1942, %v1947
        %v1949 = vsub.s32 0, %v1948
        %v1950 = vsel %vm1940, %v1949, %v1948
        %vm1951 = vcmp.ne.s32.totalorder %v1851, 0
        %vm1952 = vcmp.ne.s32.totalorder %v1862, 0
        %vm1953 = vcmp.ne.s32.totalorder %v1873, 0
        %vm1954 = vcmp.ne.s32.totalorder %v1884, 0
        %vm1955 = vcmp.ne.s32.totalorder %v1895, 0
        %vm1956 = vcmp.ne.s32.totalorder %v1906, 0
        %vm1957 = vcmp.ne.s32.totalorder %v1917, 0
        %vm1958 = vcmp.ne.s32.totalorder %v1928, 0
        %vm1959 = vcmp.ne.s32.totalorder %v1939, 0
        %vm1960 = vcmp.ne.s32.totalorder %v1950, 0
        %vm1961 = vcmp.lt.s32.totalorder %v1851, 0
        %vm1962 = vcmp.lt.s32.totalorder %v1862, 0
        %vm1963 = vcmp.lt.s32.totalorder %v1873, 0
        %vm1964 = vcmp.lt.s32.totalorder %v1884, 0
        %vm1965 = vcmp.lt.s32.totalorder %v1895, 0
        %vm1966 = vcmp.lt.s32.totalorder %v1906, 0
        %vm1967 = vcmp.lt.s32.totalorder %v1917, 0
        %vm1968 = vcmp.lt.s32.totalorder %v1928, 0
        %vm1969 = vcmp.lt.s32.totalorder %v1939, 0
        %vm1970 = vcmp.lt.s32.totalorder %v1950, 0
        %vm1971 = vmand %vm1961, %vm1951
        %vm1972 = vmand %vm1962, %vm1952
        %vm1973 = vmand %vm1963, %vm1953
        %vm1974 = vmand %vm1964, %vm1954
        %vm1975 = vmand %vm1965, %vm1955
        %vm1976 = vmand %vm1966, %vm1956
        %vm1977 = vmand %vm1967, %vm1957
        %vm1978 = vmand %vm1968, %vm1958
        %vm1979 = vmand %vm1969, %vm1959
        %vm1980 = vmand %vm1970, %vm1960
        %v1981 = vadd.s32 %v1851, 10
        %v1982 = vadd.s32 %v1862, 10
        %v1983 = vadd.s32 %v1873, 10
        %v1984 = vadd.s32 %v1884, 10
        %v1985 = vadd.s32 %v1895, 10
        %v1986 = vadd.s32 %v1906, 10
        %v1987 = vadd.s32 %v1917, 10
        %v1988 = vadd.s32 %v1928, 10
        %v1989 = vadd.s32 %v1939, 10
        %v1990 = vadd.s32 %v1950, 10
        %v1991 = vsel %vm1971, %v1981, %v1851
        %v1992 = vsel %vm1972, %v1982, %v1862
        %v1993 = vsel %vm1973, %v1983, %v1873
        %v1994 = vsel %vm1974, %v1984, %v1884
        %v1995 = vsel %vm1975, %v1985, %v1895
        %v1996 = vsel %vm1976, %v1986, %v1906
        %v1997 = vsel %vm1977, %v1987, %v1917
        %v1998 = vsel %vm1978, %v1988, %v1928
        %v1999 = vsel %vm1979, %v1989, %v1939
        %v2000 = vsel %vm1980, %v1990, %v1950
        %vm2001 = vcmp.ge.s32.totalorder %v1991, 1
        %vm2002 = vcmp.ge.s32.totalorder %v1992, 1
        %vm2003 = vcmp.ge.s32.totalorder %v1993, 1
        %vm2004 = vcmp.ge.s32.totalorder %v1994, 1
        %vm2005 = vcmp.ge.s32.totalorder %v1995, 1
        %vm2006 = vcmp.ge.s32.totalorder %v1996, 1
        %vm2007 = vcmp.ge.s32.totalorder %v1997, 1
        %vm2008 = vcmp.ge.s32.totalorder %v1998, 1
        %vm2009 = vcmp.ge.s32.totalorder %v1999, 1
        %vm2010 = vcmp.ge.s32.totalorder %v2000, 1
        %vm2011 = vcmp.le.s32.totalorder %v1991, 8
        %vm2012 = vcmp.le.s32.totalorder %v1992, 8
        %vm2013 = vcmp.le.s32.totalorder %v1993, 8
        %vm2014 = vcmp.le.s32.totalorder %v1994, 8
        %vm2015 = vcmp.le.s32.totalorder %v1995, 8
        %vm2016 = vcmp.le.s32.totalorder %v1996, 8
        %vm2017 = vcmp.le.s32.totalorder %v1997, 8
        %vm2018 = vcmp.le.s32.totalorder %v1998, 8
        %vm2019 = vcmp.le.s32.totalorder %v1999, 8
        %vm2020 = vcmp.le.s32.totalorder %v2000, 8
        %vm2021 = vmand %vm2001, %vm2011
        %vm2022 = vmand %vm2002, %vm2012
        %vm2023 = vmand %vm2003, %vm2013
        %vm2024 = vmand %vm2004, %vm2014
        %vm2025 = vmand %vm2005, %vm2015
        %vm2026 = vmand %vm2006, %vm2016
        %vm2027 = vmand %vm2007, %vm2017
        %vm2028 = vmand %vm2008, %vm2018
        %vm2029 = vmand %vm2009, %vm2019
        %vm2030 = vmand %vm2010, %vm2020
        %vm2031 = vcmp.lt.s32.totalorder %v1831, 80
        %vm2032 = vcmp.lt.s32.totalorder %v1832, 80
        %vm2033 = vcmp.lt.s32.totalorder %v1833, 80
        %vm2034 = vcmp.lt.s32.totalorder %v1834, 80
        %vm2035 = vcmp.lt.s32.totalorder %v1835, 80
        %vm2036 = vcmp.lt.s32.totalorder %v1836, 80
        %vm2037 = vcmp.lt.s32.totalorder %v1837, 80
        %vm2038 = vcmp.lt.s32.totalorder %v1838, 80
        %vm2039 = vcmp.lt.s32.totalorder %v1839, 80
        %vm2040 = vcmp.lt.s32.totalorder %v1840, 80
        %vm2041 = vmand %vm2021, %vm2031
        %vm2042 = vmand %vm2022, %vm2032
        %vm2043 = vmand %vm2023, %vm2033
        %vm2044 = vmand %vm2024, %vm2034
        %vm2045 = vmand %vm2025, %vm2035
        %vm2046 = vmand %vm2026, %vm2036
        %vm2047 = vmand %vm2027, %vm2037
        %vm2048 = vmand %vm2028, %vm2038
        %vm2049 = vmand %vm2029, %vm2039
        %vm2050 = vmand %vm2030, %vm2040
        %v2051 = vsel %vm2041, 1, 0
        %v2052 = vsel %vm2042, 1, 0
        %v2053 = vsel %vm2043, 1, 0
        %v2054 = vsel %vm2044, 1, 0
        %v2055 = vsel %vm2045, 1, 0
        %v2056 = vsel %vm2046, 1, 0
        %v2057 = vsel %vm2047, 1, 0
        %v2058 = vsel %vm2048, 1, 0
        %v2059 = vsel %vm2049, 1, 0
        %v2060 = vsel %vm2050, 1, 0
        %vm2061 = vcmp.eq.s32.totalorder %v2051, 1
        %vm2062 = vcmp.eq.s32.totalorder %v2052, 1
        %vm2063 = vcmp.eq.s32.totalorder %v2053, 1
        %vm2064 = vcmp.eq.s32.totalorder %v2054, 1
        %vm2065 = vcmp.eq.s32.totalorder %v2055, 1
        %vm2066 = vcmp.eq.s32.totalorder %v2056, 1
        %vm2067 = vcmp.eq.s32.totalorder %v2057, 1
        %vm2068 = vcmp.eq.s32.totalorder %v2058, 1
        %vm2069 = vcmp.eq.s32.totalorder %v2059, 1
        %vm2070 = vcmp.eq.s32.totalorder %v2060, 1
        %v2071 = vsel %vm2061, %v1820, 0.0
        %v2072 = vsel %vm2062, %v1821, 0.0
        %v2073 = vsel %vm2063, %v1822, 0.0
        %v2074 = vsel %vm2064, %v1823, 0.0
        %v2075 = vsel %vm2065, %v1824, 0.0
        %v2076 = vsel %vm2066, %v1825, 0.0
        %v2077 = vsel %vm2067, %v1826, 0.0
        %v2078 = vsel %vm2068, %v1827, 0.0
        %v2079 = vsel %vm2069, %v1828, 0.0
        %v2080 = vsel %vm2070, %v1829, 0.0
        %v2081 = vpack.c.bf16 %v2072, %v2071
        %v2082 = vpack.c.bf16 %v2074, %v2073
        %v2083 = vpack.c.bf16 %v2076, %v2075
        %v2084 = vpack.c.bf16 %v2078, %v2077
        %v2085 = vpack.c.bf16 %v2080, %v2079
        %2086 = vst.msk [vmem:[#allocation2 + $0x8] sm:$0xff] %vm406, %v2081
        %2087 = vst.msk [vmem:[#allocation2 + $0x10] sm:$0xff] %vm406, %v2082
        %2088 = vst.msk [vmem:[#allocation2 + $0x18] sm:$0xff] %vm406, %v2083
        %2089 = vst.msk [vmem:[#allocation2 + $0x20] sm:$0xff] %vm406, %v2084
        %2090 = vst.msk [vmem:[#allocation2 + $0x28] sm:$0xff] %vm406, %v2085
        %v2091 = vld [vmem:[#allocation2] sm:$0xf8]
        %v2092 = vld [vmem:[#allocation2 + $0x8] sm:$0xff]
        %v2093 = vld [vmem:[#allocation2 + $0x10] sm:$0xff]
        %v2094 = vld [vmem:[#allocation2 + $0x18] sm:$0xff]
        %v2095 = vld [vmem:[#allocation2 + $0x20] sm:$0xff]
        %v2096 = vld [vmem:[#allocation2 + $0x28] sm:$0x7]
        %v2097 = vld [vmem:[%s349] sm:$0xf]
        %v2098 = vld [vmem:[%s349 + $0x4] sm:$0xf]
        %v2099 = vld [vmem:[%s349 + $0x8] sm:$0xf]
        %v2100 = vld [vmem:[%s349 + $0xc] sm:$0xf]
        %v2101 = vld [vmem:[%s349 + $0x10] sm:$0xf]
        %v2102 = vld [vmem:[%s349 + $0x14] sm:$0xf]
        %v2103 = vld [vmem:[%s349 + $0x18] sm:$0xf]
        %v2104 = vld [vmem:[%s349 + $0x1c] sm:$0xf]
        %v2105 = vld [vmem:[%s349 + $0x20] sm:$0xf]
        %v2106 = vld [vmem:[%s349 + $0x24] sm:$0xf]
        %v2107 = vld [vmem:[#allocation12] sm:$0xf]
        %v2108 = vld [vmem:[#allocation14] sm:$0xf]
        %v2119 = vunpack.c.l.b16 %v2097
        %v2120 = vunpack.c.l.b16 %v2098
        %v2121 = vunpack.c.l.b16 %v2099
        %v2122 = vunpack.c.l.b16 %v2100
        %v2123 = vunpack.c.l.b16 %v2101
        %v2124 = vunpack.c.l.b16 %v2102
        %v2125 = vunpack.c.l.b16 %v2103
        %v2126 = vunpack.c.l.b16 %v2104
        %v2127 = vunpack.c.l.b16 %v2105
        %v2128 = vunpack.c.l.b16 %v2106
        %v2129 = vpack.c.b16 %v2120, %v2119
        %v2130 = vpack.c.b16 %v2122, %v2121
        %v2131 = vpack.c.b16 %v2124, %v2123
        %v2132 = vpack.c.b16 %v2126, %v2125
        %v2133 = vpack.c.b16 %v2128, %v2127
        %v2135 = vsel %vm406, %v2129, 0
        %v2138 = vsel %vm406, %v2130, 0
        %v2141 = vsel %vm406, %v2131, 0
        %v2144 = vsel %vm406, %v2132, 0
        %v2147 = vsel %vm406, %v2133, 0
        %vm2149 = vcmask 1043456
        %v2151 = vsel %vm2149, %v2108, 0
        %2153 = vmatprep.subr.bf16.mxu0 0
        %2154 = vmatpush1.bf16.msra.mxu0 %v2151
        %2155 = vmatprep.subr.bf16.mxu0 0
        %2156 = vmatpush1.bf16.msra.mxu0 0
        %2157 = vmatprep.subr.bf16.mxu0 0
        %2158 = vmatpush1.bf16.msra.mxu0 0
        %2159 = vmatprep.subr.bf16.mxu0 0
        %2160 = vmatpush1.bf16.msra.mxu0 0
        %2161 = vmatprep.subr.bf16.mxu0 0
        %2162 = vmatpush1.bf16.msra.mxu0 0
        %2163 = vmatprep.subr.bf16.mxu0 0
        %2164 = vmatpush1.bf16.msra.mxu0 0
        %2165 = vmatprep.subr.bf16.mxu0 0
        %2166 = vmatpush1.bf16.msra.mxu0 0
        %2167 = vmatprep.subr.bf16.mxu0 0
        %2168 = vmatpush1.bf16.msra.mxu0 0
        %2169 = vmatprep.subr.bf16.mxu0 0
        %2170 = vmatpush1.bf16.msra.mxu0 0
        %2171 = vmatprep.subr.bf16.mxu0 0
        %2172 = vmatpush1.bf16.msra.mxu0 0
        %2173 = vmatprep.subr.bf16.mxu0 0
        %2174 = vmatpush1.bf16.msra.mxu0 0
        %2175 = vmatprep.subr.bf16.mxu0 0
        %2176 = vmatpush1.bf16.msra.mxu0 0
        %2177 = vmatprep.subr.bf16.mxu0 0
        %2178 = vmatpush1.bf16.msra.mxu0 0
        %2179 = vmatprep.subr.bf16.mxu0 0
        %2180 = vmatpush1.bf16.msra.mxu0 0
        %2181 = vmatprep.subr.bf16.mxu0 0
        %2182 = vmatpush1.bf16.msra.mxu0 0
        %2183 = vmatprep.subr.bf16.mxu0 0
        %2184 = vmatpush1.bf16.msra.mxu0 0
        %2185 = vmatprep.mubr.bf16.mxu0 0
        %2186 = vmatmul.mubr.bf16.gmra.mrb[0].mxu0 %v2135
        %v2187 = vpop.f32.mrb[0].mxu0
        %v2188 = vadd.f32 0.0, %v2187
        %v2189 = vpop.f32.mrb[0].mxu0
        %v2190 = vpop.f32.mrb[0].mxu0
        %v2191 = vadd.f32 0.0, %v2190
        %v2192 = vpop.f32.mrb[0].mxu0
        %2193 = vmatprep.mubr.bf16.mxu0 0
        %2194 = vmatmul.mubr.bf16.gmra.mrb[0].mxu0 %v2138
        %v2195 = vpop.f32.mrb[0].mxu0
        %v2196 = vadd.f32 0.0, %v2195
        %v2197 = vpop.f32.mrb[0].mxu0
        %v2198 = vpop.f32.mrb[0].mxu0
        %v2199 = vadd.f32 0.0, %v2198
        %v2200 = vpop.f32.mrb[0].mxu0
        %2201 = vmatprep.mubr.bf16.mxu0 0
        %2202 = vmatmul.mubr.bf16.gmra.mrb[0].mxu0 %v2141
        %v2203 = vpop.f32.mrb[0].mxu0
        %v2204 = vadd.f32 0.0, %v2203
        %v2205 = vpop.f32.mrb[0].mxu0
        %v2206 = vpop.f32.mrb[0].mxu0
        %v2207 = vadd.f32 0.0, %v2206
        %v2208 = vpop.f32.mrb[0].mxu0
        %2209 = vmatprep.mubr.bf16.mxu0 0
        %2210 = vmatmul.mubr.bf16.gmra.mrb[0].mxu0 %v2144
        %v2211 = vpop.f32.mrb[0].mxu0
        %v2212 = vadd.f32 0.0, %v2211
        %v2213 = vpop.f32.mrb[0].mxu0
        %v2214 = vpop.f32.mrb[0].mxu0
        %v2215 = vadd.f32 0.0, %v2214
        %v2216 = vpop.f32.mrb[0].mxu0
        %2217 = vmatprep.mubr.bf16.mxu0 0
        %2218 = vmatmul.mubr.bf16.gmra.mrb[0].mxu0 %v2147
        %v2219 = vpop.f32.mrb[0].mxu0
        %v2220 = vadd.f32 0.0, %v2219
        %v2221 = vpop.f32.mrb[0].mxu0
        %v2222 = vpop.f32.mrb[0].mxu0
        %v2223 = vadd.f32 0.0, %v2222
        %v2224 = vpop.f32.mrb[0].mxu0
        %2225 = vdwg.mxu0
        %vm2232 = vcmask 1044480
        %v2233 = vrot.slane %v2091, 3
        %v2234 = vrot.slane %v2092, 3
        %v2235 = vsel %vm2232, %v2233, %v2234
        %v2236 = vrot.slane %v2093, 3
        %v2237 = vsel %vm2232, %v2234, %v2236
        %v2238 = vrot.slane %v2094, 3
        %v2239 = vsel %vm2232, %v2236, %v2238
        %v2240 = vrot.slane %v2095, 3
        %v2241 = vsel %vm2232, %v2238, %v2240
        %v2242 = vrot.slane %v2096, 3
        %v2243 = vsel %vm2232, %v2240, %v2242
        %v2245 = vsel %vm406, %v2235, 0
        %v2248 = vsel %vm406, %v2237, 0
        %v2251 = vsel %vm406, %v2239, 0
        %v2254 = vsel %vm406, %v2241, 0
        %v2257 = vsel %vm406, %v2243, 0
        %v2260 = vsel %vm2149, %v2107, 0
        %2262 = vmatprep.subr.bf16.mxu0 0
        %2263 = vmatpush1.bf16.msra.mxu0 %v2260
        %2264 = vmatprep.subr.bf16.mxu0 0
        %2265 = vmatpush1.bf16.msra.mxu0 0
        %2266 = vmatprep.subr.bf16.mxu0 0
        %2267 = vmatpush1.bf16.msra.mxu0 0
        %2268 = vmatprep.subr.bf16.mxu0 0
        %2269 = vmatpush1.bf16.msra.mxu0 0
        %2270 = vmatprep.subr.bf16.mxu0 0
        %2271 = vmatpush1.bf16.msra.mxu0 0
        %2272 = vmatprep.subr.bf16.mxu0 0
        %2273 = vmatpush1.bf16.msra.mxu0 0
        %2274 = vmatprep.subr.bf16.mxu0 0
        %2275 = vmatpush1.bf16.msra.mxu0 0
        %2276 = vmatprep.subr.bf16.mxu0 0
        %2277 = vmatpush1.bf16.msra.mxu0 0
        %2278 = vmatprep.subr.bf16.mxu0 0
        %2279 = vmatpush1.bf16.msra.mxu0 0
        %2280 = vmatprep.subr.bf16.mxu0 0
        %2281 = vmatpush1.bf16.msra.mxu0 0
        %2282 = vmatprep.subr.bf16.mxu0 0
        %2283 = vmatpush1.bf16.msra.mxu0 0
        %2284 = vmatprep.subr.bf16.mxu0 0
        %2285 = vmatpush1.bf16.msra.mxu0 0
        %2286 = vmatprep.subr.bf16.mxu0 0
        %2287 = vmatpush1.bf16.msra.mxu0 0
        %2288 = vmatprep.subr.bf16.mxu0 0
        %2289 = vmatpush1.bf16.msra.mxu0 0
        %2290 = vmatprep.subr.bf16.mxu0 0
        %2291 = vmatpush1.bf16.msra.mxu0 0
        %2292 = vmatprep.subr.bf16.mxu0 0
        %2293 = vmatpush1.bf16.msra.mxu0 0
        %2294 = vmatprep.mubr.bf16.mxu0 0
        %2295 = vmatmul.mubr.bf16.gmra.mrb[0].mxu0 %v2245
        %v2296 = vpop.f32.mrb[0].mxu0
        %v2297 = vadd.f32 %v2188, %v2296
        %v2298 = vpop.f32.mrb[0].mxu0
        %v2299 = vpop.f32.mrb[0].mxu0
        %v2300 = vadd.f32 %v2191, %v2299
        %v2301 = vpop.f32.mrb[0].mxu0
        %2302 = vmatprep.mubr.bf16.mxu0 0
        %2303 = vmatmul.mubr.bf16.gmra.mrb[0].mxu0 %v2248
        %v2304 = vpop.f32.mrb[0].mxu0
        %v2305 = vadd.f32 %v2196, %v2304
        %v2306 = vpop.f32.mrb[0].mxu0
        %v2307 = vpop.f32.mrb[0].mxu0
        %v2308 = vadd.f32 %v2199, %v2307
        %v2309 = vpop.f32.mrb[0].mxu0
        %2310 = vmatprep.mubr.bf16.mxu0 0
        %2311 = vmatmul.mubr.bf16.gmra.mrb[0].mxu0 %v2251
        %v2312 = vpop.f32.mrb[0].mxu0
        %v2313 = vadd.f32 %v2204, %v2312
        %v2314 = vpop.f32.mrb[0].mxu0
        %v2315 = vpop.f32.mrb[0].mxu0
        %v2316 = vadd.f32 %v2207, %v2315
        %v2317 = vpop.f32.mrb[0].mxu0
        %2318 = vmatprep.mubr.bf16.mxu0 0
        %2319 = vmatmul.mubr.bf16.gmra.mrb[0].mxu0 %v2254
        %v2320 = vpop.f32.mrb[0].mxu0
        %v2321 = vadd.f32 %v2212, %v2320
        %v2322 = vpop.f32.mrb[0].mxu0
        %v2323 = vpop.f32.mrb[0].mxu0
        %v2324 = vadd.f32 %v2215, %v2323
        %v2325 = vpop.f32.mrb[0].mxu0
        %2326 = vmatprep.mubr.bf16.mxu0 0
        %2327 = vmatmul.mubr.bf16.gmra.mrb[0].mxu0 %v2257
        %v2328 = vpop.f32.mrb[0].mxu0
        %v2329 = vadd.f32 %v2220, %v2328
        %v2330 = vpop.f32.mrb[0].mxu0
        %v2331 = vpop.f32.mrb[0].mxu0
        %v2332 = vadd.f32 %v2223, %v2331
        %v2333 = vpop.f32.mrb[0].mxu0
        %2334 = vdwg.mxu0
        %v2335 = vld [vmem:[#allocation2 + $0x28] sm:$0xf]
        %v2336 = vld [vmem:[%s349] sm:$0xf]
        %v2337 = vld [vmem:[%s349 + $0x4] sm:$0xf]
        %v2338 = vld [vmem:[%s349 + $0x8] sm:$0xf]
        %v2339 = vld [vmem:[%s349 + $0xc] sm:$0xf]
        %v2340 = vld [vmem:[%s349 + $0x10] sm:$0xf]
        %v2341 = vld [vmem:[%s349 + $0x14] sm:$0xf]
        %v2342 = vld [vmem:[%s349 + $0x18] sm:$0xf]
        %v2343 = vld [vmem:[%s349 + $0x1c] sm:$0xf]
        %v2344 = vld [vmem:[%s349 + $0x20] sm:$0xf]
        %v2345 = vld [vmem:[%s349 + $0x24] sm:$0xf]
        %v2346 = vld [vmem:[%s349 + $0x28] sm:$0x1]
        %s2347 = scalar_lea.vmem [#allocation12], 4
        %v2348 = vld [vmem:[%s2347] sm:$0xf]
        %vm2349 = vsmask.f32 4352
        %v2351 = vshrl.u32 %v2091, 16
        %v2353 = vrot.slane %v2351, 3
        %v2354 = vshll.u32 %v2091, 16
        %v2356 = vrot.slane %v2354, 4
        %v2357 = vor.u32 %v2353, %v2356
        %v2359 = vshrl.u32 %v2092, 16
        %v2361 = vrot.slane %v2359, 3
        %v2362 = vshll.u32 %v2092, 16
        %v2364 = vrot.slane %v2362, 4
        %v2365 = vor.u32 %v2361, %v2364
        %v2366 = vsel %vm2349, %v2357, %v2365
        %v2368 = vshrl.u32 %v2093, 16
        %v2370 = vrot.slane %v2368, 3
        %v2371 = vshll.u32 %v2093, 16
        %v2373 = vrot.slane %v2371, 4
        %v2374 = vor.u32 %v2370, %v2373
        %v2375 = vsel %vm2349, %v2365, %v2374
        %v2377 = vshrl.u32 %v2094, 16
        %v2379 = vrot.slane %v2377, 3
        %v2380 = vshll.u32 %v2094, 16
        %v2382 = vrot.slane %v2380, 4
        %v2383 = vor.u32 %v2379, %v2382
        %v2384 = vsel %vm2349, %v2374, %v2383
        %v2386 = vshrl.u32 %v2095, 16
        %v2388 = vrot.slane %v2386, 3
        %v2389 = vshll.u32 %v2095, 16
        %v2391 = vrot.slane %v2389, 4
        %v2392 = vor.u32 %v2388, %v2391
        %v2393 = vsel %vm2349, %v2383, %v2392
        %v2395 = vshrl.u32 %v2335, 16
        %v2397 = vrot.slane %v2395, 3
        %v2398 = vshll.u32 %v2335, 16
        %v2400 = vrot.slane %v2398, 4
        %v2401 = vor.u32 %v2397, %v2400
        %v2402 = vsel %vm2349, %v2392, %v2401
        %v2404 = vsel %vm406, %v2366, 0
        %v2407 = vsel %vm406, %v2375, 0
        %v2410 = vsel %vm406, %v2384, 0
        %v2413 = vsel %vm406, %v2393, 0
        %v2416 = vsel %vm406, %v2402, 0
        %v2419 = vsel %vm2149, %v2348, 0
        %2421 = vmatprep.subr.bf16.mxu0 0
        %2422 = vmatpush1.bf16.msra.mxu0 %v2419
        %2423 = vmatprep.subr.bf16.mxu0 0
        %2424 = vmatpush1.bf16.msra.mxu0 0
        %2425 = vmatprep.subr.bf16.mxu0 0
        %2426 = vmatpush1.bf16.msra.mxu0 0
        %2427 = vmatprep.subr.bf16.mxu0 0
        %2428 = vmatpush1.bf16.msra.mxu0 0
        %2429 = vmatprep.subr.bf16.mxu0 0
        %2430 = vmatpush1.bf16.msra.mxu0 0
        %2431 = vmatprep.subr.bf16.mxu0 0
        %2432 = vmatpush1.bf16.msra.mxu0 0
        %2433 = vmatprep.subr.bf16.mxu0 0
        %2434 = vmatpush1.bf16.msra.mxu0 0
        %2435 = vmatprep.subr.bf16.mxu0 0
        %2436 = vmatpush1.bf16.msra.mxu0 0
        %2437 = vmatprep.subr.bf16.mxu0 0
        %2438 = vmatpush1.bf16.msra.mxu0 0
        %2439 = vmatprep.subr.bf16.mxu0 0
        %2440 = vmatpush1.bf16.msra.mxu0 0
        %2441 = vmatprep.subr.bf16.mxu0 0
        %2442 = vmatpush1.bf16.msra.mxu0 0
        %2443 = vmatprep.subr.bf16.mxu0 0
        %2444 = vmatpush1.bf16.msra.mxu0 0
        %2445 = vmatprep.subr.bf16.mxu0 0
        %2446 = vmatpush1.bf16.msra.mxu0 0
        %2447 = vmatprep.subr.bf16.mxu0 0
        %2448 = vmatpush1.bf16.msra.mxu0 0
        %2449 = vmatprep.subr.bf16.mxu0 0
        %2450 = vmatpush1.bf16.msra.mxu0 0
        %2451 = vmatprep.subr.bf16.mxu0 0
        %2452 = vmatpush1.bf16.msra.mxu0 0
        %2453 = vmatprep.mubr.bf16.mxu0 0
        %2454 = vmatmul.mubr.bf16.gmra.mrb[0].mxu0 %v2404
        %v2455 = vpop.f32.mrb[0].mxu0
        %v2456 = vadd.f32 0.0, %v2455
        %v2457 = vpop.f32.mrb[0].mxu0
        %v2458 = vpop.f32.mrb[0].mxu0
        %v2459 = vadd.f32 0.0, %v2458
        %v2460 = vpop.f32.mrb[0].mxu0
        %2461 = vmatprep.mubr.bf16.mxu0 0
        %2462 = vmatmul.mubr.bf16.gmra.mrb[0].mxu0 %v2407
        %v2463 = vpop.f32.mrb[0].mxu0
        %v2464 = vadd.f32 0.0, %v2463
        %v2465 = vpop.f32.mrb[0].mxu0
        %v2466 = vpop.f32.mrb[0].mxu0
        %v2467 = vadd.f32 0.0, %v2466
        %v2468 = vpop.f32.mrb[0].mxu0
        %2469 = vmatprep.mubr.bf16.mxu0 0
        %2470 = vmatmul.mubr.bf16.gmra.mrb[0].mxu0 %v2410
        %v2471 = vpop.f32.mrb[0].mxu0
        %v2472 = vadd.f32 0.0, %v2471
        %v2473 = vpop.f32.mrb[0].mxu0
        %v2474 = vpop.f32.mrb[0].mxu0
        %v2475 = vadd.f32 0.0, %v2474
        %v2476 = vpop.f32.mrb[0].mxu0
        %2477 = vmatprep.mubr.bf16.mxu0 0
        %2478 = vmatmul.mubr.bf16.gmra.mrb[0].mxu0 %v2413
        %v2479 = vpop.f32.mrb[0].mxu0
        %v2480 = vadd.f32 0.0, %v2479
        %v2481 = vpop.f32.mrb[0].mxu0
        %v2482 = vpop.f32.mrb[0].mxu0
        %v2483 = vadd.f32 0.0, %v2482
        %v2484 = vpop.f32.mrb[0].mxu0
        %2485 = vmatprep.mubr.bf16.mxu0 0
        %2486 = vmatmul.mubr.bf16.gmra.mrb[0].mxu0 %v2416
        %v2487 = vpop.f32.mrb[0].mxu0
        %v2488 = vadd.f32 0.0, %v2487
        %v2489 = vpop.f32.mrb[0].mxu0
        %v2490 = vpop.f32.mrb[0].mxu0
        %v2491 = vadd.f32 0.0, %v2490
        %v2492 = vpop.f32.mrb[0].mxu0
        %2493 = vdwg.mxu0
        %v2494 = vadd.f32 %v2297, %v2456
        %v2495 = vadd.f32 %v2300, %v2459
        %v2496 = vadd.f32 %v2305, %v2464
        %v2497 = vadd.f32 %v2308, %v2467
        %v2498 = vadd.f32 %v2313, %v2472
        %v2499 = vadd.f32 %v2316, %v2475
        %v2500 = vadd.f32 %v2321, %v2480
        %v2501 = vadd.f32 %v2324, %v2483
        %v2502 = vadd.f32 %v2329, %v2488
        %v2503 = vadd.f32 %v2332, %v2491
        %s2504 = scalar_lea.vmem [#allocation14], 4
        %v2505 = vld [vmem:[%s2504] sm:$0xf]
        %v2517 = vunpack.c.l.b16 %v2336
        %v2518 = vunpack.c.l.b16 %v2337
        %v2519 = vunpack.c.l.b16 %v2338
        %v2520 = vunpack.c.l.b16 %v2339
        %v2521 = vunpack.c.l.b16 %v2340
        %v2522 = vunpack.c.l.b16 %v2341
        %v2523 = vunpack.c.l.b16 %v2342
        %v2524 = vunpack.c.l.b16 %v2343
        %v2525 = vunpack.c.l.b16 %v2344
        %v2526 = vunpack.c.l.b16 %v2345
        %v2527 = vunpack.c.l.b16 %v2346
        %v2528 = vpack.c.b16 %v2518, %v2517
        %v2529 = vpack.c.b16 %v2520, %v2519
        %v2530 = vpack.c.b16 %v2522, %v2521
        %v2531 = vpack.c.b16 %v2524, %v2523
        %v2532 = vpack.c.b16 %v2526, %v2525
        %v2533 = vpack.c.b16 %v2527, %v2527
        %v2535 = vshrl.u32 %v2528, 16
        %v2537 = vshll.u32 %v2528, 16
        %v2539 = vrot.slane %v2537, 1
        %v2540 = vor.u32 %v2535, %v2539
        %v2542 = vshll.u32 %v2529, 16
        %v2544 = vrot.slane %v2542, 1
        %v2545 = vsel %vm710, %v2540, %v2544
        %v2546 = vshrl.u32 %v2529, 16
        %v2548 = vor.u32 %v2546, %v2544
        %v2550 = vshll.u32 %v2530, 16
        %v2552 = vrot.slane %v2550, 1
        %v2553 = vsel %vm710, %v2548, %v2552
        %v2554 = vshrl.u32 %v2530, 16
        %v2556 = vor.u32 %v2554, %v2552
        %v2558 = vshll.u32 %v2531, 16
        %v2560 = vrot.slane %v2558, 1
        %v2561 = vsel %vm710, %v2556, %v2560
        %v2562 = vshrl.u32 %v2531, 16
        %v2564 = vor.u32 %v2562, %v2560
        %v2566 = vshll.u32 %v2532, 16
        %v2568 = vrot.slane %v2566, 1
        %v2569 = vsel %vm710, %v2564, %v2568
        %v2570 = vshrl.u32 %v2532, 16
        %v2572 = vor.u32 %v2570, %v2568
        %v2574 = vshll.u32 %v2533, 16
        %v2576 = vrot.slane %v2574, 1
        %v2577 = vsel %vm710, %v2572, %v2576
        %v2579 = vsel %vm406, %v2545, 0
        %v2582 = vsel %vm406, %v2553, 0
        %v2585 = vsel %vm406, %v2561, 0
        %v2588 = vsel %vm406, %v2569, 0
        %v2591 = vsel %vm406, %v2577, 0
        %v2594 = vsel %vm2149, %v2505, 0
        %2596 = vmatprep.subr.bf16.mxu0 0
        %2597 = vmatpush1.bf16.msra.mxu0 %v2594
        %2598 = vmatprep.subr.bf16.mxu0 0
        %2599 = vmatpush1.bf16.msra.mxu0 0
        %2600 = vmatprep.subr.bf16.mxu0 0
        %2601 = vmatpush1.bf16.msra.mxu0 0
        %2602 = vmatprep.subr.bf16.mxu0 0
        %2603 = vmatpush1.bf16.msra.mxu0 0
        %2604 = vmatprep.subr.bf16.mxu0 0
        %2605 = vmatpush1.bf16.msra.mxu0 0
        %2606 = vmatprep.subr.bf16.mxu0 0
        %2607 = vmatpush1.bf16.msra.mxu0 0
        %2608 = vmatprep.subr.bf16.mxu0 0
        %2609 = vmatpush1.bf16.msra.mxu0 0
        %2610 = vmatprep.subr.bf16.mxu0 0
        %2611 = vmatpush1.bf16.msra.mxu0 0
        %2612 = vmatprep.subr.bf16.mxu0 0
        %2613 = vmatpush1.bf16.msra.mxu0 0
        %2614 = vmatprep.subr.bf16.mxu0 0
        %2615 = vmatpush1.bf16.msra.mxu0 0
        %2616 = vmatprep.subr.bf16.mxu0 0
        %2617 = vmatpush1.bf16.msra.mxu0 0
        %2618 = vmatprep.subr.bf16.mxu0 0
        %2619 = vmatpush1.bf16.msra.mxu0 0
        %2620 = vmatprep.subr.bf16.mxu0 0
        %2621 = vmatpush1.bf16.msra.mxu0 0
        %2622 = vmatprep.subr.bf16.mxu0 0
        %2623 = vmatpush1.bf16.msra.mxu0 0
        %2624 = vmatprep.subr.bf16.mxu0 0
        %2625 = vmatpush1.bf16.msra.mxu0 0
        %2626 = vmatprep.subr.bf16.mxu0 0
        %2627 = vmatpush1.bf16.msra.mxu0 0
        %2628 = vmatprep.mubr.bf16.mxu0 0
        %2629 = vmatmul.mubr.bf16.gmra.mrb[0].mxu0 %v2579
        %v2630 = vpop.f32.mrb[0].mxu0
        %v2631 = vadd.f32 0.0, %v2630
        %v2632 = vpop.f32.mrb[0].mxu0
        %v2633 = vpop.f32.mrb[0].mxu0
        %v2634 = vadd.f32 0.0, %v2633
        %v2635 = vpop.f32.mrb[0].mxu0
        %2636 = vmatprep.mubr.bf16.mxu0 0
        %2637 = vmatmul.mubr.bf16.gmra.mrb[0].mxu0 %v2582
        %v2638 = vpop.f32.mrb[0].mxu0
        %v2639 = vadd.f32 0.0, %v2638
        %v2640 = vpop.f32.mrb[0].mxu0
        %v2641 = vpop.f32.mrb[0].mxu0
        %v2642 = vadd.f32 0.0, %v2641
        %v2643 = vpop.f32.mrb[0].mxu0
        %2644 = vmatprep.mubr.bf16.mxu0 0
        %2645 = vmatmul.mubr.bf16.gmra.mrb[0].mxu0 %v2585
        %v2646 = vpop.f32.mrb[0].mxu0
        %v2647 = vadd.f32 0.0, %v2646
        %v2648 = vpop.f32.mrb[0].mxu0
        %v2649 = vpop.f32.mrb[0].mxu0
        %v2650 = vadd.f32 0.0, %v2649
        %v2651 = vpop.f32.mrb[0].mxu0
        %2652 = vmatprep.mubr.bf16.mxu0 0
        %2653 = vmatmul.mubr.bf16.gmra.mrb[0].mxu0 %v2588
        %v2654 = vpop.f32.mrb[0].mxu0
        %v2655 = vadd.f32 0.0, %v2654
        %v2656 = vpop.f32.mrb[0].mxu0
        %v2657 = vpop.f32.mrb[0].mxu0
        %v2658 = vadd.f32 0.0, %v2657
        %v2659 = vpop.f32.mrb[0].mxu0
        %2660 = vmatprep.mubr.bf16.mxu0 0
        %2661 = vmatmul.mubr.bf16.gmra.mrb[0].mxu0 %v2591
        %v2662 = vpop.f32.mrb[0].mxu0
        %v2663 = vadd.f32 0.0, %v2662
        %v2664 = vpop.f32.mrb[0].mxu0
        %v2665 = vpop.f32.mrb[0].mxu0
        %v2666 = vadd.f32 0.0, %v2665
        %v2667 = vpop.f32.mrb[0].mxu0
        %2668 = vdwg.mxu0
        %v2669 = vadd.f32 %v2494, %v2631
        %v2670 = vadd.f32 %v2495, %v2634
        %v2671 = vadd.f32 %v2496, %v2639
        %v2672 = vadd.f32 %v2497, %v2642
        %v2673 = vadd.f32 %v2498, %v2647
        %v2674 = vadd.f32 %v2499, %v2650
        %v2675 = vadd.f32 %v2500, %v2655
        %v2676 = vadd.f32 %v2501, %v2658
        %v2677 = vadd.f32 %v2502, %v2663
        %v2678 = vadd.f32 %v2503, %v2666
        %v2679 = vld [vmem:[#allocation2] sm:$0xf0]
        %v2680 = vld [vmem:[%s349] sm:$0xe]
        %s2681 = scalar_lea.vmem [#allocation12], 8
        %v2682 = vld [vmem:[%s2681] sm:$0xf]
        %vm2685 = vcmask 1043456
        %v2686 = vrot.slane %v2679, 4
        %v2687 = vrot.slane %v2092, 4
        %v2688 = vsel %vm2685, %v2686, %v2687
        %v2689 = vrot.slane %v2093, 4
        %v2690 = vsel %vm2685, %v2687, %v2689
        %v2691 = vrot.slane %v2094, 4
        %v2692 = vsel %vm2685, %v2689, %v2691
        %v2693 = vrot.slane %v2095, 4
        %v2694 = vsel %vm2685, %v2691, %v2693
        %v2695 = vrot.slane %v2335, 4
        %v2696 = vsel %vm2685, %v2693, %v2695
        %v2698 = vsel %vm406, %v2688, 0
        %v2701 = vsel %vm406, %v2690, 0
        %v2704 = vsel %vm406, %v2692, 0
        %v2707 = vsel %vm406, %v2694, 0
        %v2710 = vsel %vm406, %v2696, 0
        %v2713 = vsel %vm2149, %v2682, 0
        %2715 = vmatprep.subr.bf16.mxu0 0
        %2716 = vmatpush1.bf16.msra.mxu0 %v2713
        %2717 = vmatprep.subr.bf16.mxu0 0
        %2718 = vmatpush1.bf16.msra.mxu0 0
        %2719 = vmatprep.subr.bf16.mxu0 0
        %2720 = vmatpush1.bf16.msra.mxu0 0
        %2721 = vmatprep.subr.bf16.mxu0 0
        %2722 = vmatpush1.bf16.msra.mxu0 0
        %2723 = vmatprep.subr.bf16.mxu0 0
        %2724 = vmatpush1.bf16.msra.mxu0 0
        %2725 = vmatprep.subr.bf16.mxu0 0
        %2726 = vmatpush1.bf16.msra.mxu0 0
        %2727 = vmatprep.subr.bf16.mxu0 0
        %2728 = vmatpush1.bf16.msra.mxu0 0
        %2729 = vmatprep.subr.bf16.mxu0 0
        %2730 = vmatpush1.bf16.msra.mxu0 0
        %2731 = vmatprep.subr.bf16.mxu0 0
        %2732 = vmatpush1.bf16.msra.mxu0 0
        %2733 = vmatprep.subr.bf16.mxu0 0
        %2734 = vmatpush1.bf16.msra.mxu0 0
        %2735 = vmatprep.subr.bf16.mxu0 0
        %2736 = vmatpush1.bf16.msra.mxu0 0
        %2737 = vmatprep.subr.bf16.mxu0 0
        %2738 = vmatpush1.bf16.msra.mxu0 0
        %2739 = vmatprep.subr.bf16.mxu0 0
        %2740 = vmatpush1.bf16.msra.mxu0 0
        %2741 = vmatprep.subr.bf16.mxu0 0
        %2742 = vmatpush1.bf16.msra.mxu0 0
        %2743 = vmatprep.subr.bf16.mxu0 0
        %2744 = vmatpush1.bf16.msra.mxu0 0
        %2745 = vmatprep.subr.bf16.mxu0 0
        %2746 = vmatpush1.bf16.msra.mxu0 0
        %2747 = vmatprep.mubr.bf16.mxu0 0
        %2748 = vmatmul.mubr.bf16.gmra.mrb[0].mxu0 %v2698
        %v2749 = vpop.f32.mrb[0].mxu0
        %v2750 = vadd.f32 0.0, %v2749
        %v2751 = vpop.f32.mrb[0].mxu0
        %v2752 = vpop.f32.mrb[0].mxu0
        %v2753 = vadd.f32 0.0, %v2752
        %v2754 = vpop.f32.mrb[0].mxu0
        %2755 = vmatprep.mubr.bf16.mxu0 0
        %2756 = vmatmul.mubr.bf16.gmra.mrb[0].mxu0 %v2701
        %v2757 = vpop.f32.mrb[0].mxu0
        %v2758 = vadd.f32 0.0, %v2757
        %v2759 = vpop.f32.mrb[0].mxu0
        %v2760 = vpop.f32.mrb[0].mxu0
        %v2761 = vadd.f32 0.0, %v2760
        %v2762 = vpop.f32.mrb[0].mxu0
        %2763 = vmatprep.mubr.bf16.mxu0 0
        %2764 = vmatmul.mubr.bf16.gmra.mrb[0].mxu0 %v2704
        %v2765 = vpop.f32.mrb[0].mxu0
        %v2766 = vadd.f32 0.0, %v2765
        %v2767 = vpop.f32.mrb[0].mxu0
        %v2768 = vpop.f32.mrb[0].mxu0
        %v2769 = vadd.f32 0.0, %v2768
        %v2770 = vpop.f32.mrb[0].mxu0
        %2771 = vmatprep.mubr.bf16.mxu0 0
        %2772 = vmatmul.mubr.bf16.gmra.mrb[0].mxu0 %v2707
        %v2773 = vpop.f32.mrb[0].mxu0
        %v2774 = vadd.f32 0.0, %v2773
        %v2775 = vpop.f32.mrb[0].mxu0
        %v2776 = vpop.f32.mrb[0].mxu0
        %v2777 = vadd.f32 0.0, %v2776
        %v2778 = vpop.f32.mrb[0].mxu0
        %2779 = vmatprep.mubr.bf16.mxu0 0
        %2780 = vmatmul.mubr.bf16.gmra.mrb[0].mxu0 %v2710
        %v2781 = vpop.f32.mrb[0].mxu0
        %v2782 = vadd.f32 0.0, %v2781
        %v2783 = vpop.f32.mrb[0].mxu0
        %v2784 = vpop.f32.mrb[0].mxu0
        %v2785 = vadd.f32 0.0, %v2784
        %v2786 = vpop.f32.mrb[0].mxu0
        %2787 = vdwg.mxu0
        %v2788 = vadd.f32 %v2669, %v2750
        %v2789 = vadd.f32 %v2670, %v2753
        %v2790 = vadd.f32 %v2671, %v2758
        %v2791 = vadd.f32 %v2672, %v2761
        %v2792 = vadd.f32 %v2673, %v2766
        %v2793 = vadd.f32 %v2674, %v2769
        %v2794 = vadd.f32 %v2675, %v2774
        %v2795 = vadd.f32 %v2676, %v2777
        %v2796 = vadd.f32 %v2677, %v2782
        %v2797 = vadd.f32 %v2678, %v2785
        %s2798 = scalar_lea.vmem [#allocation14], 8
        %v2799 = vld [vmem:[%s2798] sm:$0xf]
        %v2801 = vunpack.c.l.b16 %v2680
        %v2802 = vpack.c.b16 %v2518, %v2801
        %v2803 = vrot.slane %v2802, 1
        %v2804 = vrot.slane %v2529, 1
        %v2805 = vsel %vm1361, %v2803, %v2804
        %v2806 = vrot.slane %v2530, 1
        %v2807 = vsel %vm1361, %v2804, %v2806
        %v2808 = vrot.slane %v2531, 1
        %v2809 = vsel %vm1361, %v2806, %v2808
        %v2810 = vrot.slane %v2532, 1
        %v2811 = vsel %vm1361, %v2808, %v2810
        %v2812 = vrot.slane %v2533, 1
        %v2813 = vsel %vm1361, %v2810, %v2812
        %v2815 = vsel %vm406, %v2805, 0
        %v2818 = vsel %vm406, %v2807, 0
        %v2821 = vsel %vm406, %v2809, 0
        %v2824 = vsel %vm406, %v2811, 0
        %v2827 = vsel %vm406, %v2813, 0
        %v2830 = vsel %vm2149, %v2799, 0
        %2832 = vmatprep.subr.bf16.mxu0 0
        %2833 = vmatpush1.bf16.msra.mxu0 %v2830
        %2834 = vmatprep.subr.bf16.mxu0 0
        %2835 = vmatpush1.bf16.msra.mxu0 0
        %2836 = vmatprep.subr.bf16.mxu0 0
        %2837 = vmatpush1.bf16.msra.mxu0 0
        %2838 = vmatprep.subr.bf16.mxu0 0
        %2839 = vmatpush1.bf16.msra.mxu0 0
        %2840 = vmatprep.subr.bf16.mxu0 0
        %2841 = vmatpush1.bf16.msra.mxu0 0
        %2842 = vmatprep.subr.bf16.mxu0 0
        %2843 = vmatpush1.bf16.msra.mxu0 0
        %2844 = vmatprep.subr.bf16.mxu0 0
        %2845 = vmatpush1.bf16.msra.mxu0 0
        %2846 = vmatprep.subr.bf16.mxu0 0
        %2847 = vmatpush1.bf16.msra.mxu0 0
        %2848 = vmatprep.subr.bf16.mxu0 0
        %2849 = vmatpush1.bf16.msra.mxu0 0
        %2850 = vmatprep.subr.bf16.mxu0 0
        %2851 = vmatpush1.bf16.msra.mxu0 0
        %2852 = vmatprep.subr.bf16.mxu0 0
        %2853 = vmatpush1.bf16.msra.mxu0 0
        %2854 = vmatprep.subr.bf16.mxu0 0
        %2855 = vmatpush1.bf16.msra.mxu0 0
        %2856 = vmatprep.subr.bf16.mxu0 0
        %2857 = vmatpush1.bf16.msra.mxu0 0
        %2858 = vmatprep.subr.bf16.mxu0 0
        %2859 = vmatpush1.bf16.msra.mxu0 0
        %2860 = vmatprep.subr.bf16.mxu0 0
        %2861 = vmatpush1.bf16.msra.mxu0 0
        %2862 = vmatprep.subr.bf16.mxu0 0
        %2863 = vmatpush1.bf16.msra.mxu0 0
        %2864 = vmatprep.mubr.bf16.mxu0 0
        %2865 = vmatmul.mubr.bf16.gmra.mrb[0].mxu0 %v2815
        %v2866 = vpop.f32.mrb[0].mxu0
        %v2867 = vadd.f32 0.0, %v2866
        %v2868 = vpop.f32.mrb[0].mxu0
        %v2869 = vpop.f32.mrb[0].mxu0
        %v2870 = vadd.f32 0.0, %v2869
        %v2871 = vpop.f32.mrb[0].mxu0
        %2872 = vmatprep.mubr.bf16.mxu0 0
        %2873 = vmatmul.mubr.bf16.gmra.mrb[0].mxu0 %v2818
        %v2874 = vpop.f32.mrb[0].mxu0
        %v2875 = vadd.f32 0.0, %v2874
        %v2876 = vpop.f32.mrb[0].mxu0
        %v2877 = vpop.f32.mrb[0].mxu0
        %v2878 = vadd.f32 0.0, %v2877
        %v2879 = vpop.f32.mrb[0].mxu0
        %2880 = vmatprep.mubr.bf16.mxu0 0
        %2881 = vmatmul.mubr.bf16.gmra.mrb[0].mxu0 %v2821
        %v2882 = vpop.f32.mrb[0].mxu0
        %v2883 = vadd.f32 0.0, %v2882
        %v2884 = vpop.f32.mrb[0].mxu0
        %v2885 = vpop.f32.mrb[0].mxu0
        %v2886 = vadd.f32 0.0, %v2885
        %v2887 = vpop.f32.mrb[0].mxu0
        %2888 = vmatprep.mubr.bf16.mxu0 0
        %2889 = vmatmul.mubr.bf16.gmra.mrb[0].mxu0 %v2824
        %v2890 = vpop.f32.mrb[0].mxu0
        %v2891 = vadd.f32 0.0, %v2890
        %v2892 = vpop.f32.mrb[0].mxu0
        %v2893 = vpop.f32.mrb[0].mxu0
        %v2894 = vadd.f32 0.0, %v2893
        %v2895 = vpop.f32.mrb[0].mxu0
        %2896 = vmatprep.mubr.bf16.mxu0 0
        %2897 = vmatmul.mubr.bf16.gmra.mrb[0].mxu0 %v2827
        %v2898 = vpop.f32.mrb[0].mxu0
        %v2899 = vadd.f32 0.0, %v2898
        %v2900 = vpop.f32.mrb[0].mxu0
        %v2901 = vpop.f32.mrb[0].mxu0
        %v2902 = vadd.f32 0.0, %v2901
        %v2903 = vpop.f32.mrb[0].mxu0
        %2904 = vdwg.mxu0
        %v2905 = vadd.f32 %v2788, %v2867
        %v2906 = vadd.f32 %v2789, %v2870
        %v2907 = vadd.f32 %v2790, %v2875
        %v2908 = vadd.f32 %v2791, %v2878
        %v2909 = vadd.f32 %v2792, %v2883
        %v2910 = vadd.f32 %v2793, %v2886
        %v2911 = vadd.f32 %v2794, %v2891
        %v2912 = vadd.f32 %v2795, %v2894
        %v2913 = vadd.f32 %v2796, %v2899
        %v2914 = vadd.f32 %v2797, %v2902
        %v2915 = vld [vmem:[#allocation2 + $0x28] sm:$0xff]
        %v2916 = vld [vmem:[%s349 + $0x4] sm:$0xe]
        %v2917 = vld [vmem:[%s349 + $0x8] sm:$0xf]
        %v2918 = vld [vmem:[%s349 + $0xc] sm:$0xf]
        %v2919 = vld [vmem:[%s349 + $0x10] sm:$0xf]
        %v2920 = vld [vmem:[%s349 + $0x14] sm:$0xf]
        %v2921 = vld [vmem:[%s349 + $0x18] sm:$0xf]
        %v2922 = vld [vmem:[%s349 + $0x1c] sm:$0xf]
        %v2923 = vld [vmem:[%s349 + $0x20] sm:$0xf]
        %v2924 = vld [vmem:[%s349 + $0x24] sm:$0xf]
        %v2925 = vld [vmem:[%s349 + $0x28] sm:$0xf]
        %v2926 = vld [vmem:[%s349 + $0x2c] sm:$0x1]
        %s2927 = scalar_lea.vmem [#allocation12], 12
        %v2928 = vld [vmem:[%s2927] sm:$0xf]
        %v2929 = vsel %vm406, %v2092, 0
        %v2931 = vsel %vm406, %v2093, 0
        %v2933 = vsel %vm406, %v2094, 0
        %v2935 = vsel %vm406, %v2095, 0
        %v2938 = vsel %vm406, %v2915, 0
        %v2941 = vsel %vm2149, %v2928, 0
        %2943 = vmatprep.subr.bf16.mxu0 0
        %2944 = vmatpush1.bf16.msra.mxu0 %v2941
        %2945 = vmatprep.subr.bf16.mxu0 0
        %2946 = vmatpush1.bf16.msra.mxu0 0
        %2947 = vmatprep.subr.bf16.mxu0 0
        %2948 = vmatpush1.bf16.msra.mxu0 0
        %2949 = vmatprep.subr.bf16.mxu0 0
        %2950 = vmatpush1.bf16.msra.mxu0 0
        %2951 = vmatprep.subr.bf16.mxu0 0
        %2952 = vmatpush1.bf16.msra.mxu0 0
        %2953 = vmatprep.subr.bf16.mxu0 0
        %2954 = vmatpush1.bf16.msra.mxu0 0
        %2955 = vmatprep.subr.bf16.mxu0 0
        %2956 = vmatpush1.bf16.msra.mxu0 0
        %2957 = vmatprep.subr.bf16.mxu0 0
        %2958 = vmatpush1.bf16.msra.mxu0 0
        %2959 = vmatprep.subr.bf16.mxu0 0
        %2960 = vmatpush1.bf16.msra.mxu0 0
        %2961 = vmatprep.subr.bf16.mxu0 0
        %2962 = vmatpush1.bf16.msra.mxu0 0
        %2963 = vmatprep.subr.bf16.mxu0 0
        %2964 = vmatpush1.bf16.msra.mxu0 0
        %2965 = vmatprep.subr.bf16.mxu0 0
        %2966 = vmatpush1.bf16.msra.mxu0 0
        %2967 = vmatprep.subr.bf16.mxu0 0
        %2968 = vmatpush1.bf16.msra.mxu0 0
        %2969 = vmatprep.subr.bf16.mxu0 0
        %2970 = vmatpush1.bf16.msra.mxu0 0
        %2971 = vmatprep.subr.bf16.mxu0 0
        %2972 = vmatpush1.bf16.msra.mxu0 0
        %2973 = vmatprep.subr.bf16.mxu0 0
        %2974 = vmatpush1.bf16.msra.mxu0 0
        %2975 = vmatprep.mubr.bf16.mxu0 0
        %2976 = vmatmul.mubr.bf16.gmra.mrb[0].mxu0 %v2929
        %v2977 = vpop.f32.mrb[0].mxu0
        %v2978 = vadd.f32 0.0, %v2977
        %v2979 = vpop.f32.mrb[0].mxu0
        %v2980 = vpop.f32.mrb[0].mxu0
        %v2981 = vadd.f32 0.0, %v2980
        %v2982 = vpop.f32.mrb[0].mxu0
        %2983 = vmatprep.mubr.bf16.mxu0 0
        %2984 = vmatmul.mubr.bf16.gmra.mrb[0].mxu0 %v2931
        %v2985 = vpop.f32.mrb[0].mxu0
        %v2986 = vadd.f32 0.0, %v2985
        %v2987 = vpop.f32.mrb[0].mxu0
        %v2988 = vpop.f32.mrb[0].mxu0
        %v2989 = vadd.f32 0.0, %v2988
        %v2990 = vpop.f32.mrb[0].mxu0
        %2991 = vmatprep.mubr.bf16.mxu0 0
        %2992 = vmatmul.mubr.bf16.gmra.mrb[0].mxu0 %v2933
        %v2993 = vpop.f32.mrb[0].mxu0
        %v2994 = vadd.f32 0.0, %v2993
        %v2995 = vpop.f32.mrb[0].mxu0
        %v2996 = vpop.f32.mrb[0].mxu0
        %v2997 = vadd.f32 0.0, %v2996
        %v2998 = vpop.f32.mrb[0].mxu0
        %2999 = vmatprep.mubr.bf16.mxu0 0
        %3000 = vmatmul.mubr.bf16.gmra.mrb[0].mxu0 %v2935
        %v3001 = vpop.f32.mrb[0].mxu0
        %v3002 = vadd.f32 0.0, %v3001
        %v3003 = vpop.f32.mrb[0].mxu0
        %v3004 = vpop.f32.mrb[0].mxu0
        %v3005 = vadd.f32 0.0, %v3004
        %v3006 = vpop.f32.mrb[0].mxu0
        %3007 = vmatprep.mubr.bf16.mxu0 0
        %3008 = vmatmul.mubr.bf16.gmra.mrb[0].mxu0 %v2938
        %v3009 = vpop.f32.mrb[0].mxu0
        %v3010 = vadd.f32 0.0, %v3009
        %v3011 = vpop.f32.mrb[0].mxu0
        %v3012 = vpop.f32.mrb[0].mxu0
        %v3013 = vadd.f32 0.0, %v3012
        %v3014 = vpop.f32.mrb[0].mxu0
        %3015 = vdwg.mxu0
        %v3016 = vadd.f32 %v2905, %v2978
        %v3017 = vadd.f32 %v2906, %v2981
        %v3018 = vadd.f32 %v2907, %v2986
        %v3019 = vadd.f32 %v2908, %v2989
        %v3020 = vadd.f32 %v2909, %v2994
        %v3021 = vadd.f32 %v2910, %v2997
        %v3022 = vadd.f32 %v2911, %v3002
        %v3023 = vadd.f32 %v2912, %v3005
        %v3024 = vadd.f32 %v2913, %v3010
        %v3025 = vadd.f32 %v2914, %v3013
        %s3026 = scalar_lea.vmem [#allocation14], 12
        %v3027 = vld [vmem:[%s3026] sm:$0xf]
        %v3039 = vunpack.c.l.b16 %v2916
        %v3040 = vunpack.c.l.b16 %v2917
        %v3041 = vunpack.c.l.b16 %v2918
        %v3042 = vunpack.c.l.b16 %v2919
        %v3043 = vunpack.c.l.b16 %v2920
        %v3044 = vunpack.c.l.b16 %v2921
        %v3045 = vunpack.c.l.b16 %v2922
        %v3046 = vunpack.c.l.b16 %v2923
        %v3047 = vunpack.c.l.b16 %v2924
        %v3048 = vunpack.c.l.b16 %v2925
        %v3049 = vunpack.c.l.b16 %v2926
        %v3050 = vpack.c.b16 %v3040, %v3039
        %v3051 = vpack.c.b16 %v3042, %v3041
        %v3052 = vpack.c.b16 %v3044, %v3043
        %v3053 = vpack.c.b16 %v3046, %v3045
        %v3054 = vpack.c.b16 %v3048, %v3047
        %v3055 = vpack.c.b16 %v3049, %v3049
        %v3056 = vrot.slane %v3050, 1
        %v3057 = vrot.slane %v3051, 1
        %v3058 = vsel %vm1361, %v3056, %v3057
        %v3059 = vrot.slane %v3052, 1
        %v3060 = vsel %vm1361, %v3057, %v3059
        %v3061 = vrot.slane %v3053, 1
        %v3062 = vsel %vm1361, %v3059, %v3061
        %v3063 = vrot.slane %v3054, 1
        %v3064 = vsel %vm1361, %v3061, %v3063
        %v3065 = vrot.slane %v3055, 1
        %v3066 = vsel %vm1361, %v3063, %v3065
        %v3068 = vsel %vm406, %v3058, 0
        %v3071 = vsel %vm406, %v3060, 0
        %v3074 = vsel %vm406, %v3062, 0
        %v3077 = vsel %vm406, %v3064, 0
        %v3080 = vsel %vm406, %v3066, 0
        %v3083 = vsel %vm2149, %v3027, 0
        %3085 = vmatprep.subr.bf16.mxu0 0
        %3086 = vmatpush1.bf16.msra.mxu0 %v3083
        %3087 = vmatprep.subr.bf16.mxu0 0
        %3088 = vmatpush1.bf16.msra.mxu0 0
        %3089 = vmatprep.subr.bf16.mxu0 0
        %3090 = vmatpush1.bf16.msra.mxu0 0
        %3091 = vmatprep.subr.bf16.mxu0 0
        %3092 = vmatpush1.bf16.msra.mxu0 0
        %3093 = vmatprep.subr.bf16.mxu0 0
        %3094 = vmatpush1.bf16.msra.mxu0 0
        %3095 = vmatprep.subr.bf16.mxu0 0
        %3096 = vmatpush1.bf16.msra.mxu0 0
        %3097 = vmatprep.subr.bf16.mxu0 0
        %3098 = vmatpush1.bf16.msra.mxu0 0
        %3099 = vmatprep.subr.bf16.mxu0 0
        %3100 = vmatpush1.bf16.msra.mxu0 0
        %3101 = vmatprep.subr.bf16.mxu0 0
        %3102 = vmatpush1.bf16.msra.mxu0 0
        %3103 = vmatprep.subr.bf16.mxu0 0
        %3104 = vmatpush1.bf16.msra.mxu0 0
        %3105 = vmatprep.subr.bf16.mxu0 0
        %3106 = vmatpush1.bf16.msra.mxu0 0
        %3107 = vmatprep.subr.bf16.mxu0 0
        %3108 = vmatpush1.bf16.msra.mxu0 0
        %3109 = vmatprep.subr.bf16.mxu0 0
        %3110 = vmatpush1.bf16.msra.mxu0 0
        %3111 = vmatprep.subr.bf16.mxu0 0
        %3112 = vmatpush1.bf16.msra.mxu0 0
        %3113 = vmatprep.subr.bf16.mxu0 0
        %3114 = vmatpush1.bf16.msra.mxu0 0
        %3115 = vmatprep.subr.bf16.mxu0 0
        %3116 = vmatpush1.bf16.msra.mxu0 0
        %3117 = vmatprep.mubr.bf16.mxu0 0
        %3118 = vmatmul.mubr.bf16.gmra.mrb[0].mxu0 %v3068
        %v3119 = vpop.f32.mrb[0].mxu0
        %v3120 = vadd.f32 0.0, %v3119
        %v3121 = vpop.f32.mrb[0].mxu0
        %v3122 = vpop.f32.mrb[0].mxu0
        %v3123 = vadd.f32 0.0, %v3122
        %v3124 = vpop.f32.mrb[0].mxu0
        %3125 = vmatprep.mubr.bf16.mxu0 0
        %3126 = vmatmul.mubr.bf16.gmra.mrb[0].mxu0 %v3071
        %v3127 = vpop.f32.mrb[0].mxu0
        %v3128 = vadd.f32 0.0, %v3127
        %v3129 = vpop.f32.mrb[0].mxu0
        %v3130 = vpop.f32.mrb[0].mxu0
        %v3131 = vadd.f32 0.0, %v3130
        %v3132 = vpop.f32.mrb[0].mxu0
        %3133 = vmatprep.mubr.bf16.mxu0 0
        %3134 = vmatmul.mubr.bf16.gmra.mrb[0].mxu0 %v3074
        %v3135 = vpop.f32.mrb[0].mxu0
        %v3136 = vadd.f32 0.0, %v3135
        %v3137 = vpop.f32.mrb[0].mxu0
        %v3138 = vpop.f32.mrb[0].mxu0
        %v3139 = vadd.f32 0.0, %v3138
        %v3140 = vpop.f32.mrb[0].mxu0
        %3141 = vmatprep.mubr.bf16.mxu0 0
        %3142 = vmatmul.mubr.bf16.gmra.mrb[0].mxu0 %v3077
        %v3143 = vpop.f32.mrb[0].mxu0
        %v3144 = vadd.f32 0.0, %v3143
        %v3145 = vpop.f32.mrb[0].mxu0
        %v3146 = vpop.f32.mrb[0].mxu0
        %v3147 = vadd.f32 0.0, %v3146
        %v3148 = vpop.f32.mrb[0].mxu0
        %3149 = vmatprep.mubr.bf16.mxu0 0
        %3150 = vmatmul.mubr.bf16.gmra.mrb[0].mxu0 %v3080
        %v3151 = vpop.f32.mrb[0].mxu0
        %v3152 = vadd.f32 0.0, %v3151
        %v3153 = vpop.f32.mrb[0].mxu0
        %v3154 = vpop.f32.mrb[0].mxu0
        %v3155 = vadd.f32 0.0, %v3154
        %v3156 = vpop.f32.mrb[0].mxu0
        %3157 = vdwg.mxu0
        %v3158 = vadd.f32 %v3016, %v3120
        %v3159 = vadd.f32 %v3017, %v3123
        %v3160 = vadd.f32 %v3018, %v3128
        %v3161 = vadd.f32 %v3019, %v3131
        %v3162 = vadd.f32 %v3020, %v3136
        %v3163 = vadd.f32 %v3021, %v3139
        %v3164 = vadd.f32 %v3022, %v3144
        %v3165 = vadd.f32 %v3023, %v3147
        %v3166 = vadd.f32 %v3024, %v3152
        %v3167 = vadd.f32 %v3025, %v3155
        %v3168 = vld [vmem:[#allocation2 + $0x8] sm:$0xff]
        %v3169 = vld [vmem:[#allocation2 + $0x10] sm:$0xff]
        %v3170 = vld [vmem:[#allocation2 + $0x18] sm:$0xff]
        %v3171 = vld [vmem:[#allocation2 + $0x20] sm:$0xff]
        %v3172 = vld [vmem:[#allocation2 + $0x28] sm:$0xff]
        %v3173 = vld [vmem:[#allocation2 + $0x30] sm:$0x1]
        %v3174 = vld [vmem:[%s349 + $0x2c] sm:$0x3]
        %s3175 = scalar_lea.vmem [#allocation12], 16
        %v3176 = vld [vmem:[%s3175] sm:$0xf]
        %v3178 = vshrl.u32 %v3168, 16
        %v3180 = vshll.u32 %v3168, 16
        %v3182 = vrot.slane %v3180, 1
        %v3183 = vor.u32 %v3178, %v3182
        %v3185 = vshll.u32 %v3169, 16
        %v3187 = vrot.slane %v3185, 1
        %v3188 = vsel %vm710, %v3183, %v3187
        %v3189 = vshrl.u32 %v3169, 16
        %v3191 = vor.u32 %v3189, %v3187
        %v3193 = vshll.u32 %v3170, 16
        %v3195 = vrot.slane %v3193, 1
        %v3196 = vsel %vm710, %v3191, %v3195
        %v3197 = vshrl.u32 %v3170, 16
        %v3199 = vor.u32 %v3197, %v3195
        %v3201 = vshll.u32 %v3171, 16
        %v3203 = vrot.slane %v3201, 1
        %v3204 = vsel %vm710, %v3199, %v3203
        %v3205 = vshrl.u32 %v3171, 16
        %v3207 = vor.u32 %v3205, %v3203
        %v3209 = vshll.u32 %v3172, 16
        %v3211 = vrot.slane %v3209, 1
        %v3212 = vsel %vm710, %v3207, %v3211
        %v3213 = vshrl.u32 %v3172, 16
        %v3215 = vor.u32 %v3213, %v3211
        %v3217 = vshll.u32 %v3173, 16
        %v3219 = vrot.slane %v3217, 1
        %v3220 = vsel %vm710, %v3215, %v3219
        %v3222 = vsel %vm406, %v3188, 0
        %v3225 = vsel %vm406, %v3196, 0
        %v3228 = vsel %vm406, %v3204, 0
        %v3231 = vsel %vm406, %v3212, 0
        %v3234 = vsel %vm406, %v3220, 0
        %v3237 = vsel %vm2149, %v3176, 0
        %3239 = vmatprep.subr.bf16.mxu0 0
        %3240 = vmatpush1.bf16.msra.mxu0 %v3237
        %3241 = vmatprep.subr.bf16.mxu0 0
        %3242 = vmatpush1.bf16.msra.mxu0 0
        %3243 = vmatprep.subr.bf16.mxu0 0
        %3244 = vmatpush1.bf16.msra.mxu0 0
        %3245 = vmatprep.subr.bf16.mxu0 0
        %3246 = vmatpush1.bf16.msra.mxu0 0
        %3247 = vmatprep.subr.bf16.mxu0 0
        %3248 = vmatpush1.bf16.msra.mxu0 0
        %3249 = vmatprep.subr.bf16.mxu0 0
        %3250 = vmatpush1.bf16.msra.mxu0 0
        %3251 = vmatprep.subr.bf16.mxu0 0
        %3252 = vmatpush1.bf16.msra.mxu0 0
        %3253 = vmatprep.subr.bf16.mxu0 0
        %3254 = vmatpush1.bf16.msra.mxu0 0
        %3255 = vmatprep.subr.bf16.mxu0 0
        %3256 = vmatpush1.bf16.msra.mxu0 0
        %3257 = vmatprep.subr.bf16.mxu0 0
        %3258 = vmatpush1.bf16.msra.mxu0 0
        %3259 = vmatprep.subr.bf16.mxu0 0
        %3260 = vmatpush1.bf16.msra.mxu0 0
        %3261 = vmatprep.subr.bf16.mxu0 0
        %3262 = vmatpush1.bf16.msra.mxu0 0
        %3263 = vmatprep.subr.bf16.mxu0 0
        %3264 = vmatpush1.bf16.msra.mxu0 0
        %3265 = vmatprep.subr.bf16.mxu0 0
        %3266 = vmatpush1.bf16.msra.mxu0 0
        %3267 = vmatprep.subr.bf16.mxu0 0
        %3268 = vmatpush1.bf16.msra.mxu0 0
        %3269 = vmatprep.subr.bf16.mxu0 0
        %3270 = vmatpush1.bf16.msra.mxu0 0
        %3271 = vmatprep.mubr.bf16.mxu0 0
        %3272 = vmatmul.mubr.bf16.gmra.mrb[0].mxu0 %v3222
        %v3273 = vpop.f32.mrb[0].mxu0
        %v3274 = vadd.f32 0.0, %v3273
        %v3275 = vpop.f32.mrb[0].mxu0
        %v3276 = vpop.f32.mrb[0].mxu0
        %v3277 = vadd.f32 0.0, %v3276
        %v3278 = vpop.f32.mrb[0].mxu0
        %3279 = vmatprep.mubr.bf16.mxu0 0
        %3280 = vmatmul.mubr.bf16.gmra.mrb[0].mxu0 %v3225
        %v3281 = vpop.f32.mrb[0].mxu0
        %v3282 = vadd.f32 0.0, %v3281
        %v3283 = vpop.f32.mrb[0].mxu0
        %v3284 = vpop.f32.mrb[0].mxu0
        %v3285 = vadd.f32 0.0, %v3284
        %v3286 = vpop.f32.mrb[0].mxu0
        %3287 = vmatprep.mubr.bf16.mxu0 0
        %3288 = vmatmul.mubr.bf16.gmra.mrb[0].mxu0 %v3228
        %v3289 = vpop.f32.mrb[0].mxu0
        %v3290 = vadd.f32 0.0, %v3289
        %v3291 = vpop.f32.mrb[0].mxu0
        %v3292 = vpop.f32.mrb[0].mxu0
        %v3293 = vadd.f32 0.0, %v3292
        %v3294 = vpop.f32.mrb[0].mxu0
        %3295 = vmatprep.mubr.bf16.mxu0 0
        %3296 = vmatmul.mubr.bf16.gmra.mrb[0].mxu0 %v3231
        %v3297 = vpop.f32.mrb[0].mxu0
        %v3298 = vadd.f32 0.0, %v3297
        %v3299 = vpop.f32.mrb[0].mxu0
        %v3300 = vpop.f32.mrb[0].mxu0
        %v3301 = vadd.f32 0.0, %v3300
        %v3302 = vpop.f32.mrb[0].mxu0
        %3303 = vmatprep.mubr.bf16.mxu0 0
        %3304 = vmatmul.mubr.bf16.gmra.mrb[0].mxu0 %v3234
        %v3305 = vpop.f32.mrb[0].mxu0
        %v3306 = vadd.f32 0.0, %v3305
        %v3307 = vpop.f32.mrb[0].mxu0
        %v3308 = vpop.f32.mrb[0].mxu0
        %v3309 = vadd.f32 0.0, %v3308
        %v3310 = vpop.f32.mrb[0].mxu0
        %3311 = vdwg.mxu0
        %v3312 = vadd.f32 %v3158, %v3274
        %v3313 = vadd.f32 %v3159, %v3277
        %v3314 = vadd.f32 %v3160, %v3282
        %v3315 = vadd.f32 %v3161, %v3285
        %v3316 = vadd.f32 %v3162, %v3290
        %v3317 = vadd.f32 %v3163, %v3293
        %v3318 = vadd.f32 %v3164, %v3298
        %v3319 = vadd.f32 %v3165, %v3301
        %v3320 = vadd.f32 %v3166, %v3306
        %v3321 = vadd.f32 %v3167, %v3309
        %s3322 = scalar_lea.vmem [#allocation14], 16
        %v3323 = vld [vmem:[%s3322] sm:$0xf]
        %v3325 = vunpack.c.l.b16 %v3174
        %v3326 = vpack.c.b16 %v3325, %v3325
        %v3328 = vshrl.u32 %v3050, 16
        %v3330 = vrot.slane %v3328, 1
        %v3331 = vshll.u32 %v3050, 16
        %v3333 = vrot.slane %v3331, 2
        %v3334 = vor.u32 %v3330, %v3333
        %v3336 = vshrl.u32 %v3051, 16
        %v3338 = vrot.slane %v3336, 1
        %v3339 = vshll.u32 %v3051, 16
        %v3341 = vrot.slane %v3339, 2
        %v3342 = vor.u32 %v3338, %v3341
        %v3343 = vsel %vm1633, %v3334, %v3342
        %v3345 = vshrl.u32 %v3052, 16
        %v3347 = vrot.slane %v3345, 1
        %v3348 = vshll.u32 %v3052, 16
        %v3350 = vrot.slane %v3348, 2
        %v3351 = vor.u32 %v3347, %v3350
        %v3352 = vsel %vm1633, %v3342, %v3351
        %v3354 = vshrl.u32 %v3053, 16
        %v3356 = vrot.slane %v3354, 1
        %v3357 = vshll.u32 %v3053, 16
        %v3359 = vrot.slane %v3357, 2
        %v3360 = vor.u32 %v3356, %v3359
        %v3361 = vsel %vm1633, %v3351, %v3360
        %v3363 = vshrl.u32 %v3054, 16
        %v3365 = vrot.slane %v3363, 1
        %v3366 = vshll.u32 %v3054, 16
        %v3368 = vrot.slane %v3366, 2
        %v3369 = vor.u32 %v3365, %v3368
        %v3370 = vsel %vm1633, %v3360, %v3369
        %v3372 = vshrl.u32 %v3326, 16
        %v3374 = vrot.slane %v3372, 1
        %v3375 = vshll.u32 %v3326, 16
        %v3377 = vrot.slane %v3375, 2
        %v3378 = vor.u32 %v3374, %v3377
        %v3379 = vsel %vm1633, %v3369, %v3378
        %v3381 = vsel %vm406, %v3343, 0
        %v3384 = vsel %vm406, %v3352, 0
        %v3387 = vsel %vm406, %v3361, 0
        %v3390 = vsel %vm406, %v3370, 0
        %v3393 = vsel %vm406, %v3379, 0
        %v3396 = vsel %vm2149, %v3323, 0
        %3398 = vmatprep.subr.bf16.mxu0 0
        %3399 = vmatpush1.bf16.msra.mxu0 %v3396
        %3400 = vmatprep.subr.bf16.mxu0 0
        %3401 = vmatpush1.bf16.msra.mxu0 0
        %3402 = vmatprep.subr.bf16.mxu0 0
        %3403 = vmatpush1.bf16.msra.mxu0 0
        %3404 = vmatprep.subr.bf16.mxu0 0
        %3405 = vmatpush1.bf16.msra.mxu0 0
        %3406 = vmatprep.subr.bf16.mxu0 0
        %3407 = vmatpush1.bf16.msra.mxu0 0
        %3408 = vmatprep.subr.bf16.mxu0 0
        %3409 = vmatpush1.bf16.msra.mxu0 0
        %3410 = vmatprep.subr.bf16.mxu0 0
        %3411 = vmatpush1.bf16.msra.mxu0 0
        %3412 = vmatprep.subr.bf16.mxu0 0
        %3413 = vmatpush1.bf16.msra.mxu0 0
        %3414 = vmatprep.subr.bf16.mxu0 0
        %3415 = vmatpush1.bf16.msra.mxu0 0
        %3416 = vmatprep.subr.bf16.mxu0 0
        %3417 = vmatpush1.bf16.msra.mxu0 0
        %3418 = vmatprep.subr.bf16.mxu0 0
        %3419 = vmatpush1.bf16.msra.mxu0 0
        %3420 = vmatprep.subr.bf16.mxu0 0
        %3421 = vmatpush1.bf16.msra.mxu0 0
        %3422 = vmatprep.subr.bf16.mxu0 0
        %3423 = vmatpush1.bf16.msra.mxu0 0
        %3424 = vmatprep.subr.bf16.mxu0 0
        %3425 = vmatpush1.bf16.msra.mxu0 0
        %3426 = vmatprep.subr.bf16.mxu0 0
        %3427 = vmatpush1.bf16.msra.mxu0 0
        %3428 = vmatprep.subr.bf16.mxu0 0
        %3429 = vmatpush1.bf16.msra.mxu0 0
        %3430 = vmatprep.mubr.bf16.mxu0 0
        %3431 = vmatmul.mubr.bf16.gmra.mrb[0].mxu0 %v3381
        %v3432 = vpop.f32.mrb[0].mxu0
        %v3433 = vadd.f32 0.0, %v3432
        %v3434 = vpop.f32.mrb[0].mxu0
        %v3435 = vpop.f32.mrb[0].mxu0
        %v3436 = vadd.f32 0.0, %v3435
        %v3437 = vpop.f32.mrb[0].mxu0
        %3438 = vmatprep.mubr.bf16.mxu0 0
        %3439 = vmatmul.mubr.bf16.gmra.mrb[0].mxu0 %v3384
        %v3440 = vpop.f32.mrb[0].mxu0
        %v3441 = vadd.f32 0.0, %v3440
        %v3442 = vpop.f32.mrb[0].mxu0
        %v3443 = vpop.f32.mrb[0].mxu0
        %v3444 = vadd.f32 0.0, %v3443
        %v3445 = vpop.f32.mrb[0].mxu0
        %3446 = vmatprep.mubr.bf16.mxu0 0
        %3447 = vmatmul.mubr.bf16.gmra.mrb[0].mxu0 %v3387
        %v3448 = vpop.f32.mrb[0].mxu0
        %v3449 = vadd.f32 0.0, %v3448
        %v3450 = vpop.f32.mrb[0].mxu0
        %v3451 = vpop.f32.mrb[0].mxu0
        %v3452 = vadd.f32 0.0, %v3451
        %v3453 = vpop.f32.mrb[0].mxu0
        %3454 = vmatprep.mubr.bf16.mxu0 0
        %3455 = vmatmul.mubr.bf16.gmra.mrb[0].mxu0 %v3390
        %v3456 = vpop.f32.mrb[0].mxu0
        %v3457 = vadd.f32 0.0, %v3456
        %v3458 = vpop.f32.mrb[0].mxu0
        %v3459 = vpop.f32.mrb[0].mxu0
        %v3460 = vadd.f32 0.0, %v3459
        %v3461 = vpop.f32.mrb[0].mxu0
        %3462 = vmatprep.mubr.bf16.mxu0 0
        %3463 = vmatmul.mubr.bf16.gmra.mrb[0].mxu0 %v3393
        %v3464 = vpop.f32.mrb[0].mxu0
        %v3465 = vadd.f32 0.0, %v3464
        %v3466 = vpop.f32.mrb[0].mxu0
        %v3467 = vpop.f32.mrb[0].mxu0
        %v3468 = vadd.f32 0.0, %v3467
        %v3469 = vpop.f32.mrb[0].mxu0
        %3470 = vdwg.mxu0
        %v3471 = vadd.f32 %v3312, %v3433
        %v3472 = vadd.f32 %v3313, %v3436
        %v3473 = vadd.f32 %v3314, %v3441
        %v3474 = vadd.f32 %v3315, %v3444
        %v3475 = vadd.f32 %v3316, %v3449
        %v3476 = vadd.f32 %v3317, %v3452
        %v3477 = vadd.f32 %v3318, %v3457
        %v3478 = vadd.f32 %v3319, %v3460
        %v3479 = vadd.f32 %v3320, %v3465
        %v3480 = vadd.f32 %v3321, %v3468
        %v3481 = vld [vmem:[#allocation2 + $0x8] sm:$0xfe]
        %v3482 = vld [vmem:[%s349 + $0x4] sm:$0xc]
        %s3483 = scalar_lea.vmem [#allocation12], 20
        %v3484 = vld [vmem:[%s3483] sm:$0xf]
        %v3491 = vrot.slane %v3481, 1
        %v3492 = vrot.slane %v3169, 1
        %v3493 = vsel %vm1361, %v3491, %v3492
        %v3494 = vrot.slane %v3170, 1
        %v3495 = vsel %vm1361, %v3492, %v3494
        %v3496 = vrot.slane %v3171, 1
        %v3497 = vsel %vm1361, %v3494, %v3496
        %v3498 = vrot.slane %v3172, 1
        %v3499 = vsel %vm1361, %v3496, %v3498
        %v3500 = vrot.slane %v3173, 1
        %v3501 = vsel %vm1361, %v3498, %v3500
        %v3503 = vsel %vm406, %v3493, 0
        %v3506 = vsel %vm406, %v3495, 0
        %v3509 = vsel %vm406, %v3497, 0
        %v3512 = vsel %vm406, %v3499, 0
        %v3515 = vsel %vm406, %v3501, 0
        %v3518 = vsel %vm2149, %v3484, 0
        %3520 = vmatprep.subr.bf16.mxu0 0
        %3521 = vmatpush1.bf16.msra.mxu0 %v3518
        %3522 = vmatprep.subr.bf16.mxu0 0
        %3523 = vmatpush1.bf16.msra.mxu0 0
        %3524 = vmatprep.subr.bf16.mxu0 0
        %3525 = vmatpush1.bf16.msra.mxu0 0
        %3526 = vmatprep.subr.bf16.mxu0 0
        %3527 = vmatpush1.bf16.msra.mxu0 0
        %3528 = vmatprep.subr.bf16.mxu0 0
        %3529 = vmatpush1.bf16.msra.mxu0 0
        %3530 = vmatprep.subr.bf16.mxu0 0
        %3531 = vmatpush1.bf16.msra.mxu0 0
        %3532 = vmatprep.subr.bf16.mxu0 0
        %3533 = vmatpush1.bf16.msra.mxu0 0
        %3534 = vmatprep.subr.bf16.mxu0 0
        %3535 = vmatpush1.bf16.msra.mxu0 0
        %3536 = vmatprep.subr.bf16.mxu0 0
        %3537 = vmatpush1.bf16.msra.mxu0 0
        %3538 = vmatprep.subr.bf16.mxu0 0
        %3539 = vmatpush1.bf16.msra.mxu0 0
        %3540 = vmatprep.subr.bf16.mxu0 0
        %3541 = vmatpush1.bf16.msra.mxu0 0
        %3542 = vmatprep.subr.bf16.mxu0 0
        %3543 = vmatpush1.bf16.msra.mxu0 0
        %3544 = vmatprep.subr.bf16.mxu0 0
        %3545 = vmatpush1.bf16.msra.mxu0 0
        %3546 = vmatprep.subr.bf16.mxu0 0
        %3547 = vmatpush1.bf16.msra.mxu0 0
        %3548 = vmatprep.subr.bf16.mxu0 0
        %3549 = vmatpush1.bf16.msra.mxu0 0
        %3550 = vmatprep.subr.bf16.mxu0 0
        %3551 = vmatpush1.bf16.msra.mxu0 0
        %3552 = vmatprep.mubr.bf16.mxu0 0
        %3553 = vmatmul.mubr.bf16.gmra.mrb[0].mxu0 %v3503
        %v3554 = vpop.f32.mrb[0].mxu0
        %v3555 = vadd.f32 0.0, %v3554
        %v3556 = vpop.f32.mrb[0].mxu0
        %v3557 = vpop.f32.mrb[0].mxu0
        %v3558 = vadd.f32 0.0, %v3557
        %v3559 = vpop.f32.mrb[0].mxu0
        %3560 = vmatprep.mubr.bf16.mxu0 0
        %3561 = vmatmul.mubr.bf16.gmra.mrb[0].mxu0 %v3506
        %v3562 = vpop.f32.mrb[0].mxu0
        %v3563 = vadd.f32 0.0, %v3562
        %v3564 = vpop.f32.mrb[0].mxu0
        %v3565 = vpop.f32.mrb[0].mxu0
        %v3566 = vadd.f32 0.0, %v3565
        %v3567 = vpop.f32.mrb[0].mxu0
        %3568 = vmatprep.mubr.bf16.mxu0 0
        %3569 = vmatmul.mubr.bf16.gmra.mrb[0].mxu0 %v3509
        %v3570 = vpop.f32.mrb[0].mxu0
        %v3571 = vadd.f32 0.0, %v3570
        %v3572 = vpop.f32.mrb[0].mxu0
        %v3573 = vpop.f32.mrb[0].mxu0
        %v3574 = vadd.f32 0.0, %v3573
        %v3575 = vpop.f32.mrb[0].mxu0
        %3576 = vmatprep.mubr.bf16.mxu0 0
        %3577 = vmatmul.mubr.bf16.gmra.mrb[0].mxu0 %v3512
        %v3578 = vpop.f32.mrb[0].mxu0
        %v3579 = vadd.f32 0.0, %v3578
        %v3580 = vpop.f32.mrb[0].mxu0
        %v3581 = vpop.f32.mrb[0].mxu0
        %v3582 = vadd.f32 0.0, %v3581
        %v3583 = vpop.f32.mrb[0].mxu0
        %3584 = vmatprep.mubr.bf16.mxu0 0
        %3585 = vmatmul.mubr.bf16.gmra.mrb[0].mxu0 %v3515
        %v3586 = vpop.f32.mrb[0].mxu0
        %v3587 = vadd.f32 0.0, %v3586
        %v3588 = vpop.f32.mrb[0].mxu0
        %v3589 = vpop.f32.mrb[0].mxu0
        %v3590 = vadd.f32 0.0, %v3589
        %v3591 = vpop.f32.mrb[0].mxu0
        %3592 = vdwg.mxu0
        %v3593 = vadd.f32 %v3471, %v3555
        %v3594 = vadd.f32 %v3472, %v3558
        %v3595 = vadd.f32 %v3473, %v3563
        %v3596 = vadd.f32 %v3474, %v3566
        %v3597 = vadd.f32 %v3475, %v3571
        %v3598 = vadd.f32 %v3476, %v3574
        %v3599 = vadd.f32 %v3477, %v3579
        %v3600 = vadd.f32 %v3478, %v3582
        %v3601 = vadd.f32 %v3479, %v3587
        %v3602 = vadd.f32 %v3480, %v3590
        %s3603 = scalar_lea.vmem [#allocation14], 20
        %v3604 = vld [vmem:[%s3603] sm:$0xf]
        %v3606 = vunpack.c.l.b16 %v3482
        %v3607 = vpack.c.b16 %v3040, %v3606
        %vm3608 = vcmask 1045504
        %v3609 = vrot.slane %v3607, 2
        %v3610 = vrot.slane %v3051, 2
        %v3611 = vsel %vm3608, %v3609, %v3610
        %v3612 = vrot.slane %v3052, 2
        %v3613 = vsel %vm3608, %v3610, %v3612
        %v3614 = vrot.slane %v3053, 2
        %v3615 = vsel %vm3608, %v3612, %v3614
        %v3616 = vrot.slane %v3054, 2
        %v3617 = vsel %vm3608, %v3614, %v3616
        %v3618 = vrot.slane %v3326, 2
        %v3619 = vsel %vm3608, %v3616, %v3618
        %v3621 = vsel %vm406, %v3611, 0
        %v3624 = vsel %vm406, %v3613, 0
        %v3627 = vsel %vm406, %v3615, 0
        %v3630 = vsel %vm406, %v3617, 0
        %v3633 = vsel %vm406, %v3619, 0
        %v3636 = vsel %vm2149, %v3604, 0
        %3638 = vmatprep.subr.bf16.mxu0 0
        %3639 = vmatpush1.bf16.msra.mxu0 %v3636
        %3640 = vmatprep.subr.bf16.mxu0 0
        %3641 = vmatpush1.bf16.msra.mxu0 0
        %3642 = vmatprep.subr.bf16.mxu0 0
        %3643 = vmatpush1.bf16.msra.mxu0 0
        %3644 = vmatprep.subr.bf16.mxu0 0
        %3645 = vmatpush1.bf16.msra.mxu0 0
        %3646 = vmatprep.subr.bf16.mxu0 0
        %3647 = vmatpush1.bf16.msra.mxu0 0
        %3648 = vmatprep.subr.bf16.mxu0 0
        %3649 = vmatpush1.bf16.msra.mxu0 0
        %3650 = vmatprep.subr.bf16.mxu0 0
        %3651 = vmatpush1.bf16.msra.mxu0 0
        %3652 = vmatprep.subr.bf16.mxu0 0
        %3653 = vmatpush1.bf16.msra.mxu0 0
        %3654 = vmatprep.subr.bf16.mxu0 0
        %3655 = vmatpush1.bf16.msra.mxu0 0
        %3656 = vmatprep.subr.bf16.mxu0 0
        %3657 = vmatpush1.bf16.msra.mxu0 0
        %3658 = vmatprep.subr.bf16.mxu0 0
        %3659 = vmatpush1.bf16.msra.mxu0 0
        %3660 = vmatprep.subr.bf16.mxu0 0
        %3661 = vmatpush1.bf16.msra.mxu0 0
        %3662 = vmatprep.subr.bf16.mxu0 0
        %3663 = vmatpush1.bf16.msra.mxu0 0
        %3664 = vmatprep.subr.bf16.mxu0 0
        %3665 = vmatpush1.bf16.msra.mxu0 0
        %3666 = vmatprep.subr.bf16.mxu0 0
        %3667 = vmatpush1.bf16.msra.mxu0 0
        %3668 = vmatprep.subr.bf16.mxu0 0
        %3669 = vmatpush1.bf16.msra.mxu0 0
        %3670 = vmatprep.mubr.bf16.mxu0 0
        %3671 = vmatmul.mubr.bf16.gmra.mrb[0].mxu0 %v3621
        %v3672 = vpop.f32.mrb[0].mxu0
        %v3673 = vadd.f32 0.0, %v3672
        %v3674 = vpop.f32.mrb[0].mxu0
        %v3675 = vpop.f32.mrb[0].mxu0
        %v3676 = vadd.f32 0.0, %v3675
        %v3677 = vpop.f32.mrb[0].mxu0
        %3678 = vmatprep.mubr.bf16.mxu0 0
        %3679 = vmatmul.mubr.bf16.gmra.mrb[0].mxu0 %v3624
        %v3680 = vpop.f32.mrb[0].mxu0
        %v3681 = vadd.f32 0.0, %v3680
        %v3682 = vpop.f32.mrb[0].mxu0
        %v3683 = vpop.f32.mrb[0].mxu0
        %v3684 = vadd.f32 0.0, %v3683
        %v3685 = vpop.f32.mrb[0].mxu0
        %3686 = vmatprep.mubr.bf16.mxu0 0
        %3687 = vmatmul.mubr.bf16.gmra.mrb[0].mxu0 %v3627
        %v3688 = vpop.f32.mrb[0].mxu0
        %v3689 = vadd.f32 0.0, %v3688
        %v3690 = vpop.f32.mrb[0].mxu0
        %v3691 = vpop.f32.mrb[0].mxu0
        %v3692 = vadd.f32 0.0, %v3691
        %v3693 = vpop.f32.mrb[0].mxu0
        %3694 = vmatprep.mubr.bf16.mxu0 0
        %3695 = vmatmul.mubr.bf16.gmra.mrb[0].mxu0 %v3630
        %v3696 = vpop.f32.mrb[0].mxu0
        %v3697 = vadd.f32 0.0, %v3696
        %v3698 = vpop.f32.mrb[0].mxu0
        %v3699 = vpop.f32.mrb[0].mxu0
        %v3700 = vadd.f32 0.0, %v3699
        %v3701 = vpop.f32.mrb[0].mxu0
        %3702 = vmatprep.mubr.bf16.mxu0 0
        %3703 = vmatmul.mubr.bf16.gmra.mrb[0].mxu0 %v3633
        %v3704 = vpop.f32.mrb[0].mxu0
        %v3705 = vadd.f32 0.0, %v3704
        %v3706 = vpop.f32.mrb[0].mxu0
        %v3707 = vpop.f32.mrb[0].mxu0
        %v3708 = vadd.f32 0.0, %v3707
        %v3709 = vpop.f32.mrb[0].mxu0
        %3710 = vdwg.mxu0
        %v3711 = vadd.f32 %v3593, %v3673
        %v3712 = vadd.f32 %v3594, %v3676
        %v3713 = vadd.f32 %v3595, %v3681
        %v3714 = vadd.f32 %v3596, %v3684
        %v3715 = vadd.f32 %v3597, %v3689
        %v3716 = vadd.f32 %v3598, %v3692
        %v3717 = vadd.f32 %v3599, %v3697
        %v3718 = vadd.f32 %v3600, %v3700
        %v3719 = vadd.f32 %v3601, %v3705
        %v3720 = vadd.f32 %v3602, %v3708
        %v3721 = vld [vmem:[#allocation2 + $0x8] sm:$0xe0]
        %v3722 = vld [vmem:[#allocation2 + $0x30] sm:$0x1f]
        %v3723 = vld [vmem:[%s349 + $0x8] sm:$0xc]
        %v3724 = vld [vmem:[%s349 + $0xc] sm:$0xf]
        %v3725 = vld [vmem:[%s349 + $0x10] sm:$0xf]
        %v3726 = vld [vmem:[%s349 + $0x14] sm:$0xf]
        %v3727 = vld [vmem:[%s349 + $0x18] sm:$0xf]
        %v3728 = vld [vmem:[%s349 + $0x1c] sm:$0xf]
        %v3729 = vld [vmem:[%s349 + $0x20] sm:$0xf]
        %v3730 = vld [vmem:[%s349 + $0x24] sm:$0xf]
        %v3731 = vld [vmem:[%s349 + $0x28] sm:$0xf]
        %v3732 = vld [vmem:[%s349 + $0x2c] sm:$0xf]
        %v3733 = vld [vmem:[%s349 + $0x30] sm:$0x3]
        %s3734 = scalar_lea.vmem [#allocation12], 24
        %v3735 = vld [vmem:[%s3734] sm:$0xf]
        %vm3738 = vcmask 1042432
        %v3739 = vrot.slane %v3721, 5
        %v3740 = vrot.slane %v3169, 5
        %v3741 = vsel %vm3738, %v3739, %v3740
        %v3742 = vrot.slane %v3170, 5
        %v3743 = vsel %vm3738, %v3740, %v3742
        %v3744 = vrot.slane %v3171, 5
        %v3745 = vsel %vm3738, %v3742, %v3744
        %v3746 = vrot.slane %v3172, 5
        %v3747 = vsel %vm3738, %v3744, %v3746
        %v3748 = vrot.slane %v3722, 5
        %v3749 = vsel %vm3738, %v3746, %v3748
        %v3751 = vsel %vm406, %v3741, 0
        %v3754 = vsel %vm406, %v3743, 0
        %v3757 = vsel %vm406, %v3745, 0
        %v3760 = vsel %vm406, %v3747, 0
        %v3763 = vsel %vm406, %v3749, 0
        %v3766 = vsel %vm2149, %v3735, 0
        %3768 = vmatprep.subr.bf16.mxu0 0
        %3769 = vmatpush1.bf16.msra.mxu0 %v3766
        %3770 = vmatprep.subr.bf16.mxu0 0
        %3771 = vmatpush1.bf16.msra.mxu0 0
        %3772 = vmatprep.subr.bf16.mxu0 0
        %3773 = vmatpush1.bf16.msra.mxu0 0
        %3774 = vmatprep.subr.bf16.mxu0 0
        %3775 = vmatpush1.bf16.msra.mxu0 0
        %3776 = vmatprep.subr.bf16.mxu0 0
        %3777 = vmatpush1.bf16.msra.mxu0 0
        %3778 = vmatprep.subr.bf16.mxu0 0
        %3779 = vmatpush1.bf16.msra.mxu0 0
        %3780 = vmatprep.subr.bf16.mxu0 0
        %3781 = vmatpush1.bf16.msra.mxu0 0
        %3782 = vmatprep.subr.bf16.mxu0 0
        %3783 = vmatpush1.bf16.msra.mxu0 0
        %3784 = vmatprep.subr.bf16.mxu0 0
        %3785 = vmatpush1.bf16.msra.mxu0 0
        %3786 = vmatprep.subr.bf16.mxu0 0
        %3787 = vmatpush1.bf16.msra.mxu0 0
        %3788 = vmatprep.subr.bf16.mxu0 0
        %3789 = vmatpush1.bf16.msra.mxu0 0
        %3790 = vmatprep.subr.bf16.mxu0 0
        %3791 = vmatpush1.bf16.msra.mxu0 0
        %3792 = vmatprep.subr.bf16.mxu0 0
        %3793 = vmatpush1.bf16.msra.mxu0 0
        %3794 = vmatprep.subr.bf16.mxu0 0
        %3795 = vmatpush1.bf16.msra.mxu0 0
        %3796 = vmatprep.subr.bf16.mxu0 0
        %3797 = vmatpush1.bf16.msra.mxu0 0
        %3798 = vmatprep.subr.bf16.mxu0 0
        %3799 = vmatpush1.bf16.msra.mxu0 0
        %3800 = vmatprep.mubr.bf16.mxu0 0
        %3801 = vmatmul.mubr.bf16.gmra.mrb[0].mxu0 %v3751
        %v3802 = vpop.f32.mrb[0].mxu0
        %v3803 = vadd.f32 0.0, %v3802
        %v3804 = vpop.f32.mrb[0].mxu0
        %v3805 = vpop.f32.mrb[0].mxu0
        %v3806 = vadd.f32 0.0, %v3805
        %v3807 = vpop.f32.mrb[0].mxu0
        %3808 = vmatprep.mubr.bf16.mxu0 0
        %3809 = vmatmul.mubr.bf16.gmra.mrb[0].mxu0 %v3754
        %v3810 = vpop.f32.mrb[0].mxu0
        %v3811 = vadd.f32 0.0, %v3810
        %v3812 = vpop.f32.mrb[0].mxu0
        %v3813 = vpop.f32.mrb[0].mxu0
        %v3814 = vadd.f32 0.0, %v3813
        %v3815 = vpop.f32.mrb[0].mxu0
        %3816 = vmatprep.mubr.bf16.mxu0 0
        %3817 = vmatmul.mubr.bf16.gmra.mrb[0].mxu0 %v3757
        %v3818 = vpop.f32.mrb[0].mxu0
        %v3819 = vadd.f32 0.0, %v3818
        %v3820 = vpop.f32.mrb[0].mxu0
        %v3821 = vpop.f32.mrb[0].mxu0
        %v3822 = vadd.f32 0.0, %v3821
        %v3823 = vpop.f32.mrb[0].mxu0
        %3824 = vmatprep.mubr.bf16.mxu0 0
        %3825 = vmatmul.mubr.bf16.gmra.mrb[0].mxu0 %v3760
        %v3826 = vpop.f32.mrb[0].mxu0
        %v3827 = vadd.f32 0.0, %v3826
        %v3828 = vpop.f32.mrb[0].mxu0
        %v3829 = vpop.f32.mrb[0].mxu0
        %v3830 = vadd.f32 0.0, %v3829
        %v3831 = vpop.f32.mrb[0].mxu0
        %3832 = vmatprep.mubr.bf16.mxu0 0
        %3833 = vmatmul.mubr.bf16.gmra.mrb[0].mxu0 %v3763
        %v3834 = vpop.f32.mrb[0].mxu0
        %v3835 = vadd.f32 0.0, %v3834
        %v3836 = vpop.f32.mrb[0].mxu0
        %v3837 = vpop.f32.mrb[0].mxu0
        %v3838 = vadd.f32 0.0, %v3837
        %v3839 = vpop.f32.mrb[0].mxu0
        %3840 = vdwg.mxu0
        %v3841 = vadd.f32 %v3711, %v3803
        %v3842 = vadd.f32 %v3712, %v3806
        %v3843 = vadd.f32 %v3713, %v3811
        %v3844 = vadd.f32 %v3714, %v3814
        %v3845 = vadd.f32 %v3715, %v3819
        %v3846 = vadd.f32 %v3716, %v3822
        %v3847 = vadd.f32 %v3717, %v3827
        %v3848 = vadd.f32 %v3718, %v3830
        %v3849 = vadd.f32 %v3719, %v3835
        %v3850 = vadd.f32 %v3720, %v3838
        %s3851 = scalar_lea.vmem [#allocation14], 24
        %v3852 = vld [vmem:[%s3851] sm:$0xf]
        %v3864 = vunpack.c.l.b16 %v3723
        %v3865 = vunpack.c.l.b16 %v3724
        %v3866 = vunpack.c.l.b16 %v3725
        %v3867 = vunpack.c.l.b16 %v3726
        %v3868 = vunpack.c.l.b16 %v3727
        %v3869 = vunpack.c.l.b16 %v3728
        %v3870 = vunpack.c.l.b16 %v3729
        %v3871 = vunpack.c.l.b16 %v3730
        %v3872 = vunpack.c.l.b16 %v3731
        %v3873 = vunpack.c.l.b16 %v3732
        %v3874 = vunpack.c.l.b16 %v3733
        %v3875 = vpack.c.b16 %v3865, %v3864
        %v3876 = vpack.c.b16 %v3867, %v3866
        %v3877 = vpack.c.b16 %v3869, %v3868
        %v3878 = vpack.c.b16 %v3871, %v3870
        %v3879 = vpack.c.b16 %v3873, %v3872
        %v3880 = vpack.c.b16 %v3874, %v3874
        %v3881 = vrot.slane %v3875, 2
        %v3882 = vrot.slane %v3876, 2
        %v3883 = vsel %vm3608, %v3881, %v3882
        %v3884 = vrot.slane %v3877, 2
        %v3885 = vsel %vm3608, %v3882, %v3884
        %v3886 = vrot.slane %v3878, 2
        %v3887 = vsel %vm3608, %v3884, %v3886
        %v3888 = vrot.slane %v3879, 2
        %v3889 = vsel %vm3608, %v3886, %v3888
        %v3890 = vrot.slane %v3880, 2
        %v3891 = vsel %vm3608, %v3888, %v3890
        %v3893 = vsel %vm406, %v3883, 0
        %v3896 = vsel %vm406, %v3885, 0
        %v3899 = vsel %vm406, %v3887, 0
        %v3902 = vsel %vm406, %v3889, 0
        %v3905 = vsel %vm406, %v3891, 0
        %v3908 = vsel %vm2149, %v3852, 0
        %3910 = vmatprep.subr.bf16.mxu0 0
        %3911 = vmatpush1.bf16.msra.mxu0 %v3908
        %3912 = vmatprep.subr.bf16.mxu0 0
        %3913 = vmatpush1.bf16.msra.mxu0 0
        %3914 = vmatprep.subr.bf16.mxu0 0
        %3915 = vmatpush1.bf16.msra.mxu0 0
        %3916 = vmatprep.subr.bf16.mxu0 0
        %3917 = vmatpush1.bf16.msra.mxu0 0
        %3918 = vmatprep.subr.bf16.mxu0 0
        %3919 = vmatpush1.bf16.msra.mxu0 0
        %3920 = vmatprep.subr.bf16.mxu0 0
        %3921 = vmatpush1.bf16.msra.mxu0 0
        %3922 = vmatprep.subr.bf16.mxu0 0
        %3923 = vmatpush1.bf16.msra.mxu0 0
        %3924 = vmatprep.subr.bf16.mxu0 0
        %3925 = vmatpush1.bf16.msra.mxu0 0
        %3926 = vmatprep.subr.bf16.mxu0 0
        %3927 = vmatpush1.bf16.msra.mxu0 0
        %3928 = vmatprep.subr.bf16.mxu0 0
        %3929 = vmatpush1.bf16.msra.mxu0 0
        %3930 = vmatprep.subr.bf16.mxu0 0
        %3931 = vmatpush1.bf16.msra.mxu0 0
        %3932 = vmatprep.subr.bf16.mxu0 0
        %3933 = vmatpush1.bf16.msra.mxu0 0
        %3934 = vmatprep.subr.bf16.mxu0 0
        %3935 = vmatpush1.bf16.msra.mxu0 0
        %3936 = vmatprep.subr.bf16.mxu0 0
        %3937 = vmatpush1.bf16.msra.mxu0 0
        %3938 = vmatprep.subr.bf16.mxu0 0
        %3939 = vmatpush1.bf16.msra.mxu0 0
        %3940 = vmatprep.subr.bf16.mxu0 0
        %3941 = vmatpush1.bf16.msra.mxu0 0
        %3942 = vmatprep.mubr.bf16.mxu0 0
        %3943 = vmatmul.mubr.bf16.gmra.mrb[0].mxu0 %v3893
        %v3944 = vpop.f32.mrb[0].mxu0
        %v3945 = vadd.f32 0.0, %v3944
        %v3946 = vpop.f32.mrb[0].mxu0
        %v3947 = vpop.f32.mrb[0].mxu0
        %v3948 = vadd.f32 0.0, %v3947
        %v3949 = vpop.f32.mrb[0].mxu0
        %3950 = vmatprep.mubr.bf16.mxu0 0
        %3951 = vmatmul.mubr.bf16.gmra.mrb[0].mxu0 %v3896
        %v3952 = vpop.f32.mrb[0].mxu0
        %v3953 = vadd.f32 0.0, %v3952
        %v3954 = vpop.f32.mrb[0].mxu0
        %v3955 = vpop.f32.mrb[0].mxu0
        %v3956 = vadd.f32 0.0, %v3955
        %v3957 = vpop.f32.mrb[0].mxu0
        %3958 = vmatprep.mubr.bf16.mxu0 0
        %3959 = vmatmul.mubr.bf16.gmra.mrb[0].mxu0 %v3899
        %v3960 = vpop.f32.mrb[0].mxu0
        %v3961 = vadd.f32 0.0, %v3960
        %v3962 = vpop.f32.mrb[0].mxu0
        %v3963 = vpop.f32.mrb[0].mxu0
        %v3964 = vadd.f32 0.0, %v3963
        %v3965 = vpop.f32.mrb[0].mxu0
        %3966 = vmatprep.mubr.bf16.mxu0 0
        %3967 = vmatmul.mubr.bf16.gmra.mrb[0].mxu0 %v3902
        %v3968 = vpop.f32.mrb[0].mxu0
        %v3969 = vadd.f32 0.0, %v3968
        %v3970 = vpop.f32.mrb[0].mxu0
        %v3971 = vpop.f32.mrb[0].mxu0
        %v3972 = vadd.f32 0.0, %v3971
        %v3973 = vpop.f32.mrb[0].mxu0
        %3974 = vmatprep.mubr.bf16.mxu0 0
        %3975 = vmatmul.mubr.bf16.gmra.mrb[0].mxu0 %v3905
        %v3976 = vpop.f32.mrb[0].mxu0
        %v3977 = vadd.f32 0.0, %v3976
        %v3978 = vpop.f32.mrb[0].mxu0
        %v3979 = vpop.f32.mrb[0].mxu0
        %v3980 = vadd.f32 0.0, %v3979
        %v3981 = vpop.f32.mrb[0].mxu0
        %3982 = vdwg.mxu0
        %v3983 = vadd.f32 %v3841, %v3945
        %v3984 = vadd.f32 %v3842, %v3948
        %v3985 = vadd.f32 %v3843, %v3953
        %v3986 = vadd.f32 %v3844, %v3956
        %v3987 = vadd.f32 %v3845, %v3961
        %v3988 = vadd.f32 %v3846, %v3964
        %v3989 = vadd.f32 %v3847, %v3969
        %v3990 = vadd.f32 %v3848, %v3972
        %v3991 = vadd.f32 %v3849, %v3977
        %v3992 = vadd.f32 %v3850, %v3980
        %v3993 = vld [vmem:[#allocation2 + $0x30] sm:$0x3f]
        %v3994 = vld [vmem:[%s349 + $0x30] sm:$0x7]
        %s3995 = scalar_lea.vmem [#allocation12], 28
        %v3996 = vld [vmem:[%s3995] sm:$0xf]
        %vm3997 = vsmask.f32 2304
        %v3999 = vshrl.u32 %v3721, 16
        %v4001 = vrot.slane %v3999, 5
        %v4002 = vshll.u32 %v3721, 16
        %v4004 = vrot.slane %v4002, 6
        %v4005 = vor.u32 %v4001, %v4004
        %v4006 = vrot.slane %v3189, 5
        %v4007 = vrot.slane %v3185, 6
        %v4008 = vor.u32 %v4006, %v4007
        %v4009 = vsel %vm3997, %v4005, %v4008
        %v4010 = vrot.slane %v3197, 5
        %v4011 = vrot.slane %v3193, 6
        %v4012 = vor.u32 %v4010, %v4011
        %v4013 = vsel %vm3997, %v4008, %v4012
        %v4014 = vrot.slane %v3205, 5
        %v4015 = vrot.slane %v3201, 6
        %v4016 = vor.u32 %v4014, %v4015
        %v4017 = vsel %vm3997, %v4012, %v4016
        %v4018 = vrot.slane %v3213, 5
        %v4019 = vrot.slane %v3209, 6
        %v4020 = vor.u32 %v4018, %v4019
        %v4021 = vsel %vm3997, %v4016, %v4020
        %v4023 = vshrl.u32 %v3993, 16
        %v4025 = vrot.slane %v4023, 5
        %v4026 = vshll.u32 %v3993, 16
        %v4028 = vrot.slane %v4026, 6
        %v4029 = vor.u32 %v4025, %v4028
        %v4030 = vsel %vm3997, %v4020, %v4029
        %v4032 = vsel %vm406, %v4009, 0
        %v4035 = vsel %vm406, %v4013, 0
        %v4038 = vsel %vm406, %v4017, 0
        %v4041 = vsel %vm406, %v4021, 0
        %v4044 = vsel %vm406, %v4030, 0
        %v4047 = vsel %vm2149, %v3996, 0
        %4049 = vmatprep.subr.bf16.mxu0 0
        %4050 = vmatpush1.bf16.msra.mxu0 %v4047
        %4051 = vmatprep.subr.bf16.mxu0 0
        %4052 = vmatpush1.bf16.msra.mxu0 0
        %4053 = vmatprep.subr.bf16.mxu0 0
        %4054 = vmatpush1.bf16.msra.mxu0 0
        %4055 = vmatprep.subr.bf16.mxu0 0
        %4056 = vmatpush1.bf16.msra.mxu0 0
        %4057 = vmatprep.subr.bf16.mxu0 0
        %4058 = vmatpush1.bf16.msra.mxu0 0
        %4059 = vmatprep.subr.bf16.mxu0 0
        %4060 = vmatpush1.bf16.msra.mxu0 0
        %4061 = vmatprep.subr.bf16.mxu0 0
        %4062 = vmatpush1.bf16.msra.mxu0 0
        %4063 = vmatprep.subr.bf16.mxu0 0
        %4064 = vmatpush1.bf16.msra.mxu0 0
        %4065 = vmatprep.subr.bf16.mxu0 0
        %4066 = vmatpush1.bf16.msra.mxu0 0
        %4067 = vmatprep.subr.bf16.mxu0 0
        %4068 = vmatpush1.bf16.msra.mxu0 0
        %4069 = vmatprep.subr.bf16.mxu0 0
        %4070 = vmatpush1.bf16.msra.mxu0 0
        %4071 = vmatprep.subr.bf16.mxu0 0
        %4072 = vmatpush1.bf16.msra.mxu0 0
        %4073 = vmatprep.subr.bf16.mxu0 0
        %4074 = vmatpush1.bf16.msra.mxu0 0
        %4075 = vmatprep.subr.bf16.mxu0 0
        %4076 = vmatpush1.bf16.msra.mxu0 0
        %4077 = vmatprep.subr.bf16.mxu0 0
        %4078 = vmatpush1.bf16.msra.mxu0 0
        %4079 = vmatprep.subr.bf16.mxu0 0
        %4080 = vmatpush1.bf16.msra.mxu0 0
        %4081 = vmatprep.mubr.bf16.mxu0 0
        %4082 = vmatmul.mubr.bf16.gmra.mrb[0].mxu0 %v4032
        %v4083 = vpop.f32.mrb[0].mxu0
        %v4084 = vadd.f32 0.0, %v4083
        %v4085 = vpop.f32.mrb[0].mxu0
        %v4086 = vpop.f32.mrb[0].mxu0
        %v4087 = vadd.f32 0.0, %v4086
        %v4088 = vpop.f32.mrb[0].mxu0
        %4089 = vmatprep.mubr.bf16.mxu0 0
        %4090 = vmatmul.mubr.bf16.gmra.mrb[0].mxu0 %v4035
        %v4091 = vpop.f32.mrb[0].mxu0
        %v4092 = vadd.f32 0.0, %v4091
        %v4093 = vpop.f32.mrb[0].mxu0
        %v4094 = vpop.f32.mrb[0].mxu0
        %v4095 = vadd.f32 0.0, %v4094
        %v4096 = vpop.f32.mrb[0].mxu0
        %4097 = vmatprep.mubr.bf16.mxu0 0
        %4098 = vmatmul.mubr.bf16.gmra.mrb[0].mxu0 %v4038
        %v4099 = vpop.f32.mrb[0].mxu0
        %v4100 = vadd.f32 0.0, %v4099
        %v4101 = vpop.f32.mrb[0].mxu0
        %v4102 = vpop.f32.mrb[0].mxu0
        %v4103 = vadd.f32 0.0, %v4102
        %v4104 = vpop.f32.mrb[0].mxu0
        %4105 = vmatprep.mubr.bf16.mxu0 0
        %4106 = vmatmul.mubr.bf16.gmra.mrb[0].mxu0 %v4041
        %v4107 = vpop.f32.mrb[0].mxu0
        %v4108 = vadd.f32 0.0, %v4107
        %v4109 = vpop.f32.mrb[0].mxu0
        %v4110 = vpop.f32.mrb[0].mxu0
        %v4111 = vadd.f32 0.0, %v4110
        %v4112 = vpop.f32.mrb[0].mxu0
        %4113 = vmatprep.mubr.bf16.mxu0 0
        %4114 = vmatmul.mubr.bf16.gmra.mrb[0].mxu0 %v4044
        %v4115 = vpop.f32.mrb[0].mxu0
        %v4116 = vadd.f32 0.0, %v4115
        %v4117 = vpop.f32.mrb[0].mxu0
        %v4118 = vpop.f32.mrb[0].mxu0
        %v4119 = vadd.f32 0.0, %v4118
        %v4120 = vpop.f32.mrb[0].mxu0
        %4121 = vdwg.mxu0
        %v4122 = vadd.f32 %v3983, %v4084
        %v4123 = vadd.f32 %v3984, %v4087
        %v4124 = vadd.f32 %v3985, %v4092
        %v4125 = vadd.f32 %v3986, %v4095
        %v4126 = vadd.f32 %v3987, %v4100
        %v4127 = vadd.f32 %v3988, %v4103
        %v4128 = vadd.f32 %v3989, %v4108
        %v4129 = vadd.f32 %v3990, %v4111
        %v4130 = vadd.f32 %v3991, %v4116
        %v4131 = vadd.f32 %v3992, %v4119
        %s4132 = scalar_lea.vmem [#allocation14], 28
        %v4133 = vld [vmem:[%s4132] sm:$0xf]
        %v4135 = vunpack.c.l.b16 %v3994
        %v4136 = vpack.c.b16 %v4135, %v4135
        %vm4137 = vsmask.f32 5376
        %v4139 = vshrl.u32 %v3875, 16
        %v4141 = vrot.slane %v4139, 2
        %v4142 = vshll.u32 %v3875, 16
        %v4144 = vrot.slane %v4142, 3
        %v4145 = vor.u32 %v4141, %v4144
        %v4147 = vshrl.u32 %v3876, 16
        %v4149 = vrot.slane %v4147, 2
        %v4150 = vshll.u32 %v3876, 16
        %v4152 = vrot.slane %v4150, 3
        %v4153 = vor.u32 %v4149, %v4152
        %v4154 = vsel %vm4137, %v4145, %v4153
        %v4156 = vshrl.u32 %v3877, 16
        %v4158 = vrot.slane %v4156, 2
        %v4159 = vshll.u32 %v3877, 16
        %v4161 = vrot.slane %v4159, 3
        %v4162 = vor.u32 %v4158, %v4161
        %v4163 = vsel %vm4137, %v4153, %v4162
        %v4165 = vshrl.u32 %v3878, 16
        %v4167 = vrot.slane %v4165, 2
        %v4168 = vshll.u32 %v3878, 16
        %v4170 = vrot.slane %v4168, 3
        %v4171 = vor.u32 %v4167, %v4170
        %v4172 = vsel %vm4137, %v4162, %v4171
        %v4174 = vshrl.u32 %v3879, 16
        %v4176 = vrot.slane %v4174, 2
        %v4177 = vshll.u32 %v3879, 16
        %v4179 = vrot.slane %v4177, 3
        %v4180 = vor.u32 %v4176, %v4179
        %v4181 = vsel %vm4137, %v4171, %v4180
        %v4183 = vshrl.u32 %v4136, 16
        %v4185 = vrot.slane %v4183, 2
        %v4186 = vshll.u32 %v4136, 16
        %v4188 = vrot.slane %v4186, 3
        %v4189 = vor.u32 %v4185, %v4188
        %v4190 = vsel %vm4137, %v4180, %v4189
        %v4192 = vsel %vm406, %v4154, 0
        %v4195 = vsel %vm406, %v4163, 0
        %v4198 = vsel %vm406, %v4172, 0
        %v4201 = vsel %vm406, %v4181, 0
        %v4204 = vsel %vm406, %v4190, 0
        %v4207 = vsel %vm2149, %v4133, 0
        %4209 = vmatprep.subr.bf16.mxu0 0
        %4210 = vmatpush1.bf16.msra.mxu0 %v4207
        %4211 = vmatprep.subr.bf16.mxu0 0
        %4212 = vmatpush1.bf16.msra.mxu0 0
        %4213 = vmatprep.subr.bf16.mxu0 0
        %4214 = vmatpush1.bf16.msra.mxu0 0
        %4215 = vmatprep.subr.bf16.mxu0 0
        %4216 = vmatpush1.bf16.msra.mxu0 0
        %4217 = vmatprep.subr.bf16.mxu0 0
        %4218 = vmatpush1.bf16.msra.mxu0 0
        %4219 = vmatprep.subr.bf16.mxu0 0
        %4220 = vmatpush1.bf16.msra.mxu0 0
        %4221 = vmatprep.subr.bf16.mxu0 0
        %4222 = vmatpush1.bf16.msra.mxu0 0
        %4223 = vmatprep.subr.bf16.mxu0 0
        %4224 = vmatpush1.bf16.msra.mxu0 0
        %4225 = vmatprep.subr.bf16.mxu0 0
        %4226 = vmatpush1.bf16.msra.mxu0 0
        %4227 = vmatprep.subr.bf16.mxu0 0
        %4228 = vmatpush1.bf16.msra.mxu0 0
        %4229 = vmatprep.subr.bf16.mxu0 0
        %4230 = vmatpush1.bf16.msra.mxu0 0
        %4231 = vmatprep.subr.bf16.mxu0 0
        %4232 = vmatpush1.bf16.msra.mxu0 0
        %4233 = vmatprep.subr.bf16.mxu0 0
        %4234 = vmatpush1.bf16.msra.mxu0 0
        %4235 = vmatprep.subr.bf16.mxu0 0
        %4236 = vmatpush1.bf16.msra.mxu0 0
        %4237 = vmatprep.subr.bf16.mxu0 0
        %4238 = vmatpush1.bf16.msra.mxu0 0
        %4239 = vmatprep.subr.bf16.mxu0 0
        %4240 = vmatpush1.bf16.msra.mxu0 0
        %4241 = vmatprep.mubr.bf16.mxu0 0
        %4242 = vmatmul.mubr.bf16.gmra.mrb[0].mxu0 %v4192
        %v4243 = vpop.f32.mrb[0].mxu0
        %v4244 = vadd.f32 0.0, %v4243
        %v4245 = vpop.f32.mrb[0].mxu0
        %v4246 = vpop.f32.mrb[0].mxu0
        %v4247 = vadd.f32 0.0, %v4246
        %v4248 = vpop.f32.mrb[0].mxu0
        %4249 = vmatprep.mubr.bf16.mxu0 0
        %4250 = vmatmul.mubr.bf16.gmra.mrb[0].mxu0 %v4195
        %v4251 = vpop.f32.mrb[0].mxu0
        %v4252 = vadd.f32 0.0, %v4251
        %v4253 = vpop.f32.mrb[0].mxu0
        %v4254 = vpop.f32.mrb[0].mxu0
        %v4255 = vadd.f32 0.0, %v4254
        %v4256 = vpop.f32.mrb[0].mxu0
        %4257 = vmatprep.mubr.bf16.mxu0 0
        %4258 = vmatmul.mubr.bf16.gmra.mrb[0].mxu0 %v4198
        %v4259 = vpop.f32.mrb[0].mxu0
        %v4260 = vadd.f32 0.0, %v4259
        %v4261 = vpop.f32.mrb[0].mxu0
        %v4262 = vpop.f32.mrb[0].mxu0
        %v4263 = vadd.f32 0.0, %v4262
        %v4264 = vpop.f32.mrb[0].mxu0
        %4265 = vmatprep.mubr.bf16.mxu0 0
        %4266 = vmatmul.mubr.bf16.gmra.mrb[0].mxu0 %v4201
        %v4267 = vpop.f32.mrb[0].mxu0
        %v4268 = vadd.f32 0.0, %v4267
        %v4269 = vpop.f32.mrb[0].mxu0
        %v4270 = vpop.f32.mrb[0].mxu0
        %v4271 = vadd.f32 0.0, %v4270
        %v4272 = vpop.f32.mrb[0].mxu0
        %4273 = vmatprep.mubr.bf16.mxu0 0
        %4274 = vmatmul.mubr.bf16.gmra.mrb[0].mxu0 %v4204
        %v4275 = vpop.f32.mrb[0].mxu0
        %v4276 = vadd.f32 0.0, %v4275
        %v4277 = vpop.f32.mrb[0].mxu0
        %v4278 = vpop.f32.mrb[0].mxu0
        %v4279 = vadd.f32 0.0, %v4278
        %v4280 = vpop.f32.mrb[0].mxu0
        %4281 = vdwg.mxu0
        %v4282 = vadd.f32 %v4122, %v4244
        %v4283 = vadd.f32 %v4123, %v4247
        %v4284 = vadd.f32 %v4124, %v4252
        %v4285 = vadd.f32 %v4125, %v4255
        %v4286 = vadd.f32 %v4126, %v4260
        %v4287 = vadd.f32 %v4127, %v4263
        %v4288 = vadd.f32 %v4128, %v4268
        %v4289 = vadd.f32 %v4129, %v4271
        %v4290 = vadd.f32 %v4130, %v4276
        %v4291 = vadd.f32 %v4131, %v4279
        %v4292 = vld [vmem:[#allocation2 + $0x8] sm:$0xc0]
        %v4293 = vld [vmem:[%s349 + $0x8] sm:$0x8]
        %s4294 = scalar_lea.vmem [#allocation12], 32
        %v4295 = vld [vmem:[%s4294] sm:$0xf]
        %vm4298 = vcmask 1041408
        %v4299 = vrot.slane %v4292, 6
        %v4300 = vrot.slane %v3169, 6
        %v4301 = vsel %vm4298, %v4299, %v4300
        %v4302 = vrot.slane %v3170, 6
        %v4303 = vsel %vm4298, %v4300, %v4302
        %v4304 = vrot.slane %v3171, 6
        %v4305 = vsel %vm4298, %v4302, %v4304
        %v4306 = vrot.slane %v3172, 6
        %v4307 = vsel %vm4298, %v4304, %v4306
        %v4308 = vrot.slane %v3993, 6
        %v4309 = vsel %vm4298, %v4306, %v4308
        %v4311 = vsel %vm406, %v4301, 0
        %v4314 = vsel %vm406, %v4303, 0
        %v4317 = vsel %vm406, %v4305, 0
        %v4320 = vsel %vm406, %v4307, 0
        %v4323 = vsel %vm406, %v4309, 0
        %v4326 = vsel %vm2149, %v4295, 0
        %4328 = vmatprep.subr.bf16.mxu0 0
        %4329 = vmatpush1.bf16.msra.mxu0 %v4326
        %4330 = vmatprep.subr.bf16.mxu0 0
        %4331 = vmatpush1.bf16.msra.mxu0 0
        %4332 = vmatprep.subr.bf16.mxu0 0
        %4333 = vmatpush1.bf16.msra.mxu0 0
        %4334 = vmatprep.subr.bf16.mxu0 0
        %4335 = vmatpush1.bf16.msra.mxu0 0
        %4336 = vmatprep.subr.bf16.mxu0 0
        %4337 = vmatpush1.bf16.msra.mxu0 0
        %4338 = vmatprep.subr.bf16.mxu0 0
        %4339 = vmatpush1.bf16.msra.mxu0 0
        %4340 = vmatprep.subr.bf16.mxu0 0
        %4341 = vmatpush1.bf16.msra.mxu0 0
        %4342 = vmatprep.subr.bf16.mxu0 0
        %4343 = vmatpush1.bf16.msra.mxu0 0
        %4344 = vmatprep.subr.bf16.mxu0 0
        %4345 = vmatpush1.bf16.msra.mxu0 0
        %4346 = vmatprep.subr.bf16.mxu0 0
        %4347 = vmatpush1.bf16.msra.mxu0 0
        %4348 = vmatprep.subr.bf16.mxu0 0
        %4349 = vmatpush1.bf16.msra.mxu0 0
        %4350 = vmatprep.subr.bf16.mxu0 0
        %4351 = vmatpush1.bf16.msra.mxu0 0
        %4352 = vmatprep.subr.bf16.mxu0 0
        %4353 = vmatpush1.bf16.msra.mxu0 0
        %4354 = vmatprep.subr.bf16.mxu0 0
        %4355 = vmatpush1.bf16.msra.mxu0 0
        %4356 = vmatprep.subr.bf16.mxu0 0
        %4357 = vmatpush1.bf16.msra.mxu0 0
        %4358 = vmatprep.subr.bf16.mxu0 0
        %4359 = vmatpush1.bf16.msra.mxu0 0
        %4360 = vmatprep.mubr.bf16.mxu0 0
        %4361 = vmatmul.mubr.bf16.gmra.mrb[0].mxu0 %v4311
        %v4362 = vpop.f32.mrb[0].mxu0
        %v4363 = vadd.f32 0.0, %v4362
        %v4364 = vpop.f32.mrb[0].mxu0
        %v4365 = vpop.f32.mrb[0].mxu0
        %v4366 = vadd.f32 0.0, %v4365
        %v4367 = vpop.f32.mrb[0].mxu0
        %4368 = vmatprep.mubr.bf16.mxu0 0
        %4369 = vmatmul.mubr.bf16.gmra.mrb[0].mxu0 %v4314
        %v4370 = vpop.f32.mrb[0].mxu0
        %v4371 = vadd.f32 0.0, %v4370
        %v4372 = vpop.f32.mrb[0].mxu0
        %v4373 = vpop.f32.mrb[0].mxu0
        %v4374 = vadd.f32 0.0, %v4373
        %v4375 = vpop.f32.mrb[0].mxu0
        %4376 = vmatprep.mubr.bf16.mxu0 0
        %4377 = vmatmul.mubr.bf16.gmra.mrb[0].mxu0 %v4317
        %v4378 = vpop.f32.mrb[0].mxu0
        %v4379 = vadd.f32 0.0, %v4378
        %v4380 = vpop.f32.mrb[0].mxu0
        %v4381 = vpop.f32.mrb[0].mxu0
        %v4382 = vadd.f32 0.0, %v4381
        %v4383 = vpop.f32.mrb[0].mxu0
        %4384 = vmatprep.mubr.bf16.mxu0 0
        %4385 = vmatmul.mubr.bf16.gmra.mrb[0].mxu0 %v4320
        %v4386 = vpop.f32.mrb[0].mxu0
        %v4387 = vadd.f32 0.0, %v4386
        %v4388 = vpop.f32.mrb[0].mxu0
        %v4389 = vpop.f32.mrb[0].mxu0
        %v4390 = vadd.f32 0.0, %v4389
        %v4391 = vpop.f32.mrb[0].mxu0
        %4392 = vmatprep.mubr.bf16.mxu0 0
        %4393 = vmatmul.mubr.bf16.gmra.mrb[0].mxu0 %v4323
        %v4394 = vpop.f32.mrb[0].mxu0
        %v4395 = vadd.f32 0.0, %v4394
        %v4396 = vpop.f32.mrb[0].mxu0
        %v4397 = vpop.f32.mrb[0].mxu0
        %v4398 = vadd.f32 0.0, %v4397
        %v4399 = vpop.f32.mrb[0].mxu0
        %4400 = vdwg.mxu0
        %v4401 = vadd.f32 %v4282, %v4363
        %v4402 = vadd.f32 %v4283, %v4366
        %v4403 = vadd.f32 %v4284, %v4371
        %v4404 = vadd.f32 %v4285, %v4374
        %v4405 = vadd.f32 %v4286, %v4379
        %v4406 = vadd.f32 %v4287, %v4382
        %v4407 = vadd.f32 %v4288, %v4387
        %v4408 = vadd.f32 %v4289, %v4390
        %v4409 = vadd.f32 %v4290, %v4395
        %v4410 = vadd.f32 %v4291, %v4398
        %s4411 = scalar_lea.vmem [#allocation14], 32
        %v4412 = vld [vmem:[%s4411] sm:$0xf]
        %v4414 = vunpack.c.l.b16 %v4293
        %v4415 = vpack.c.b16 %v3865, %v4414
        %v4416 = vrot.slane %v4415, 3
        %v4417 = vrot.slane %v3876, 3
        %v4418 = vsel %vm2232, %v4416, %v4417
        %v4419 = vrot.slane %v3877, 3
        %v4420 = vsel %vm2232, %v4417, %v4419
        %v4421 = vrot.slane %v3878, 3
        %v4422 = vsel %vm2232, %v4419, %v4421
        %v4423 = vrot.slane %v3879, 3
        %v4424 = vsel %vm2232, %v4421, %v4423
        %v4425 = vrot.slane %v4136, 3
        %v4426 = vsel %vm2232, %v4423, %v4425
        %v4428 = vsel %vm406, %v4418, 0
        %v4431 = vsel %vm406, %v4420, 0
        %v4434 = vsel %vm406, %v4422, 0
        %v4437 = vsel %vm406, %v4424, 0
        %v4440 = vsel %vm406, %v4426, 0
        %v4443 = vsel %vm2149, %v4412, 0
        %4445 = vmatprep.subr.bf16.mxu0 0
        %4446 = vmatpush1.bf16.msra.mxu0 %v4443
        %4447 = vmatprep.subr.bf16.mxu0 0
        %4448 = vmatpush1.bf16.msra.mxu0 0
        %4449 = vmatprep.subr.bf16.mxu0 0
        %4450 = vmatpush1.bf16.msra.mxu0 0
        %4451 = vmatprep.subr.bf16.mxu0 0
        %4452 = vmatpush1.bf16.msra.mxu0 0
        %4453 = vmatprep.subr.bf16.mxu0 0
        %4454 = vmatpush1.bf16.msra.mxu0 0
        %4455 = vmatprep.subr.bf16.mxu0 0
        %4456 = vmatpush1.bf16.msra.mxu0 0
        %4457 = vmatprep.subr.bf16.mxu0 0
        %4458 = vmatpush1.bf16.msra.mxu0 0
        %4459 = vmatprep.subr.bf16.mxu0 0
        %4460 = vmatpush1.bf16.msra.mxu0 0
        %4461 = vmatprep.subr.bf16.mxu0 0
        %4462 = vmatpush1.bf16.msra.mxu0 0
        %4463 = vmatprep.subr.bf16.mxu0 0
        %4464 = vmatpush1.bf16.msra.mxu0 0
        %4465 = vmatprep.subr.bf16.mxu0 0
        %4466 = vmatpush1.bf16.msra.mxu0 0
        %4467 = vmatprep.subr.bf16.mxu0 0
        %4468 = vmatpush1.bf16.msra.mxu0 0
        %4469 = vmatprep.subr.bf16.mxu0 0
        %4470 = vmatpush1.bf16.msra.mxu0 0
        %4471 = vmatprep.subr.bf16.mxu0 0
        %4472 = vmatpush1.bf16.msra.mxu0 0
        %4473 = vmatprep.subr.bf16.mxu0 0
        %4474 = vmatpush1.bf16.msra.mxu0 0
        %4475 = vmatprep.subr.bf16.mxu0 0
        %4476 = vmatpush1.bf16.msra.mxu0 0
        %4477 = vmatprep.mubr.bf16.mxu0 0
        %4478 = vmatmul.mubr.bf16.gmra.mrb[0].mxu0 %v4428
        %v4479 = vpop.f32.mrb[0].mxu0
        %v4480 = vadd.f32 0.0, %v4479
        %v4481 = vpop.f32.mrb[0].mxu0
        %v4482 = vpop.f32.mrb[0].mxu0
        %v4483 = vadd.f32 0.0, %v4482
        %v4484 = vpop.f32.mrb[0].mxu0
        %4485 = vmatprep.mubr.bf16.mxu0 0
        %4486 = vmatmul.mubr.bf16.gmra.mrb[0].mxu0 %v4431
        %v4487 = vpop.f32.mrb[0].mxu0
        %v4488 = vadd.f32 0.0, %v4487
        %v4489 = vpop.f32.mrb[0].mxu0
        %v4490 = vpop.f32.mrb[0].mxu0
        %v4491 = vadd.f32 0.0, %v4490
        %v4492 = vpop.f32.mrb[0].mxu0
        %4493 = vmatprep.mubr.bf16.mxu0 0
        %4494 = vmatmul.mubr.bf16.gmra.mrb[0].mxu0 %v4434
        %v4495 = vpop.f32.mrb[0].mxu0
        %v4496 = vadd.f32 0.0, %v4495
        %v4497 = vpop.f32.mrb[0].mxu0
        %v4498 = vpop.f32.mrb[0].mxu0
        %v4499 = vadd.f32 0.0, %v4498
        %v4500 = vpop.f32.mrb[0].mxu0
        %4501 = vmatprep.mubr.bf16.mxu0 0
        %4502 = vmatmul.mubr.bf16.gmra.mrb[0].mxu0 %v4437
        %v4503 = vpop.f32.mrb[0].mxu0
        %v4504 = vadd.f32 0.0, %v4503
        %v4505 = vpop.f32.mrb[0].mxu0
        %v4506 = vpop.f32.mrb[0].mxu0
        %v4507 = vadd.f32 0.0, %v4506
        %v4508 = vpop.f32.mrb[0].mxu0
        %4509 = vmatprep.mubr.bf16.mxu0 0
        %4510 = vmatmul.mubr.bf16.gmra.mrb[0].mxu0 %v4440
        %v4511 = vpop.f32.mrb[0].mxu0
        %v4512 = vadd.f32 0.0, %v4511
        %v4513 = vpop.f32.mrb[0].mxu0
        %v4514 = vpop.f32.mrb[0].mxu0
        %v4515 = vadd.f32 0.0, %v4514
        %v4516 = vpop.f32.mrb[0].mxu0
        %4517 = vdwg.mxu0
        %v4518 = vadd.f32 %v4401, %v4480
        %v4519 = vadd.f32 %v4402, %v4483
        %v4520 = vadd.f32 %v4403, %v4488
        %v4521 = vadd.f32 %v4404, %v4491
        %v4522 = vadd.f32 %v4405, %v4496
        %v4523 = vadd.f32 %v4406, %v4499
        %v4524 = vadd.f32 %v4407, %v4504
        %v4525 = vadd.f32 %v4408, %v4507
        %v4526 = vadd.f32 %v4409, %v4512
        %v4527 = vadd.f32 %v4410, %v4515
        %v4528 = vpack.c.bf16 %v4519, %v4518
        %v4529 = vpack.c.bf16 %v4521, %v4520
        %v4530 = vpack.c.bf16 %v4523, %v4522
        %v4531 = vpack.c.bf16 %v4525, %v4524
        %v4532 = vpack.c.bf16 %v4527, %v4526
        %v4538 = vunpack.c.l.b16 %v4528
        %v4539 = vunpack.c.h.b16 %v4528
        %v4540 = vunpack.c.l.b16 %v4529
        %v4541 = vunpack.c.h.b16 %v4529
        %v4542 = vunpack.c.l.b16 %v4530
        %v4543 = vunpack.c.h.b16 %v4530
        %v4544 = vunpack.c.l.b16 %v4531
        %v4545 = vunpack.c.h.b16 %v4531
        %v4546 = vunpack.c.l.b16 %v4532
        %v4547 = vunpack.c.h.b16 %v4532
        %v4548 = vpack.c.b16 %v4538, %v4538
        %v4549 = vpack.c.b16 %v4539, %v4539
        %v4550 = vpack.c.b16 %v4540, %v4540
        %v4551 = vpack.c.b16 %v4541, %v4541
        %v4552 = vpack.c.b16 %v4542, %v4542
        %v4553 = vpack.c.b16 %v4543, %v4543
        %v4554 = vpack.c.b16 %v4544, %v4544
        %v4555 = vpack.c.b16 %v4545, %v4545
        %v4556 = vpack.c.b16 %v4546, %v4546
        %v4557 = vpack.c.b16 %v4547, %v4547
        %vm4568 = vcmask 60416
        %4569 = vst.msk [vmem:[%s404] sm:$0xf] %vm4568, %v4548
        %4570 = vst.msk [vmem:[%s404 + $0x4] sm:$0xf] %vm4568, %v4549
        %4571 = vst.msk [vmem:[%s404 + $0x8] sm:$0xf] %vm4568, %v4550
        %4572 = vst.msk [vmem:[%s404 + $0xc] sm:$0xf] %vm4568, %v4551
        %4573 = vst.msk [vmem:[%s404 + $0x10] sm:$0xf] %vm4568, %v4552
        %4574 = vst.msk [vmem:[%s404 + $0x14] sm:$0xf] %vm4568, %v4553
        %4575 = vst.msk [vmem:[%s404 + $0x18] sm:$0xf] %vm4568, %v4554
        %4576 = vst.msk [vmem:[%s404 + $0x1c] sm:$0xf] %vm4568, %v4555
        %4577 = vst.msk [vmem:[%s404 + $0x20] sm:$0xf] %vm4568, %v4556
        %4578 = vst.msk [vmem:[%s404 + $0x24] sm:$0xf] %vm4568, %v4557
        %s4579 = sand.u32 %s194, 1
        %s4580 = scalar_lea.sflag [#allocation5], %s4579
        %s4581 = sand.u32 %s194, 1
        %s4582 = smul.addr %s4581, 40
        %s4583 = scalar_lea.vmem [#allocation15], %s4582
        // Predicated region
        $region77: #{conv2x_forward.1} parent=47 // pred_check
          %p4584 = pneg %p204
        $region78: #{conv2x_forward.1} parent=47 // pred_check_branch
          %4586 = sbr.rel (%p4584) target = $region80
        $region79: #{conv2x_forward.1} parent=47 // pred_region
          %s4588 = ssub.s32 640, 640
          %4589 = vsyncadd %s4580, %s4588
          %s4590 = smul.addr %s29, 10
          %s4591 = smul.addr %s4590, 64
          %s4592 = scalar_lea.hbm %s7, %s4591
          %s4593 = sshll.u32 %s4583, 4
          %s4594 = int_to_ptr.vmem [resolvable:$true] %s4593
          %4599 = dma.vmem_to_hbm [thread:$0]  %s4594, 640, %s4592, %s4580, 64, 64, 4
        $region80: #{conv2x_forward.1} parent=47 // pred_fallthru
          _
      $region48: #{conv2x_forward.1} parent=5 // pred_fallthru
        _
      %p4600 = scmp.le.s32.totalorder 2, %s24
      // Predicated region
      $region81: #{conv2x_forward.1} parent=5 // pred_check
        %p4601 = pneg %p4600
      $region82: #{conv2x_forward.1} parent=5 // pred_check_branch
        %4603 = sbr.rel (%p4601) target = $region84
      $region83: #{conv2x_forward.1} parent=5 // pred_region
        %s4604 = ssub.s32 %s24, 2
        // Predicated region
        $region85: #{conv2x_forward.1} parent=83 // pred_check
          %p4605 = pneg %p210
        $region86: #{conv2x_forward.1} parent=83 // pred_check_branch
          %4607 = sbr.rel (%p4605) target = $region88
        $region87: #{conv2x_forward.1} parent=83 // pred_region
          %s4608 = sand.u32 %s195, 1
          %s4609 = scalar_lea.sflag [#allocation5], %s4608
          %s4610 = sand.u32 %s195, 1
          %s4611 = smul.addr %s4610, 40
          %s4612 = scalar_lea.vmem [#allocation15], %s4611
          %4613 = dma.done %s4609, 640
        $region88: #{conv2x_forward.1} parent=83 // pred_fallthru
          _
      $region84: #{conv2x_forward.1} parent=5 // pred_fallthru
        _
    $region6: #{conv2x_forward.1} parent=1 // loop_footer
      %s28 = sadd.s32 1, %s24
    $region7: #{conv2x_forward.1} parent=1 // loop_footer_branch
      %23 = sbr.rel target = $region3
    $region8: #{conv2x_forward.1} parent=1 // loop_exit
      _
    %4614 = vsyncpa [#allocation4], 1
    %s4615 = scalar_lea.sflag [#allocation4], 1
    %4616 = vsyncpa %s4615, 1
    %4617 = vsyncpa [#allocation7], 1
    %s4618 = scalar_lea.sflag [#allocation7], 1
    %4619 = vsyncpa %s4618, 1
    %4620 = vsyncpa [#allocation10], 1
    %4621 = vsyncpa [#allocation13], 1
    %4622 = vsyncpa [#allocation5], 1
    %s4623 = scalar_lea.sflag [#allocation5], 1
    %4624 = vsyncpa %s4623, 1

</llo_original>
